<compile_context>
chip_gen: v7x
topology: tpu7x:2x2x1
jax: 0.10.0
libtpu: 0.0.40
codegen_flags: <defaults>
</compile_context>

<pallas_src>
import jax
import jax.numpy as jnp
from jax.experimental import pallas as pl
from jax.experimental.pallas import tpu as pltpu

LANE = 128

# Packed gate slot order (i, f, o, g); PyTorch row-block order is (i, f, g, o).
_GATE_PERM = (0, 1, 3, 2)   # slot s holds PyTorch gate _GATE_PERM[s]


def _round_up(x, m):
    return (x + m - 1) // m * m


# ----------------------------- Pallas kernel -----------------------------

def _lstm_fc_kernel(x_ref, h_init_ref, c_init_ref,
                    wih0_ref, whh0_ref, b0_ref,
                    w1a_ref, w1b_ref, b1_ref,
                    fcw_ref, fcb_ref,
                    out_ref, hn_ref, cn_ref,
                    xg_ref, h1hist_ref):
    T = x_ref.shape[0]
    HP = whh0_ref.shape[0]          # lane-padded hidden size (multiple of 128)

    # (1) Input projection for ALL timesteps in a single bf16 (T, in) @ (in, 4*HP)
    #     MXU pass; only the h-dependent terms stay on the recurrent path.
    xg_ref[...] = (jnp.dot(x_ref[...], wih0_ref[...],
                           preferred_element_type=jnp.float32) + b0_ref[...])

    # Recurrent weights loaded once (bf16; compiler keeps them VMEM/vreg resident).
    whh0 = whh0_ref[...]
    w1a = w1a_ref[...]
    w1b = w1b_ref[...]
    b1 = b1_ref[...]

    def gates_to_state(gates, c_prev):
        # Gate slots are (i | f | o | g), each 128-lane-aligned and HP wide:
        # one contiguous 3*HP sigmoid stream + one HP tanh per cell.
        sig = jax.nn.sigmoid(gates[:, :3 * HP])
        i = sig[:, 0 * HP:1 * HP]
        f = sig[:, 1 * HP:2 * HP]
        o = sig[:, 2 * HP:3 * HP]
        g = jnp.tanh(gates[:, 3 * HP:4 * HP])
        c_new = f * c_prev + i * g
        h_new = o * jnp.tanh(c_new)
        return h_new, c_new

    h0 = h_init_ref[0:1, :]
    c0 = c_init_ref[0:1, :]
    h1 = h_init_ref[1:2, :]
    c1 = c_init_ref[1:2, :]

    # (2) Fully static, straight-line recurrence: T is small and compile-time
    #     known, so every slice/store below is a static index and the scheduler
    #     can co-issue layer-1(t) and layer-0(t+1) MXU pushes.
    for t in range(T):
        # Layer 0: one bf16 recurrent matmul (1, HP) @ (HP, 4*HP).
        g0 = xg_ref[t:t + 1, :] + jnp.dot(
            h0.astype(jnp.bfloat16), whh0, preferred_element_type=jnp.float32)
        h0, c0 = gates_to_state(g0, c0)
        # Layer 1: two K=HP bf16 dots -- no per-step concatenate of [h0, h1].
        g1 = (jnp.dot(h0.astype(jnp.bfloat16), w1a,
                      preferred_element_type=jnp.float32)
              + jnp.dot(h1.astype(jnp.bfloat16), w1b,
                        preferred_element_type=jnp.float32)
              + b1)
        h1, c1 = gates_to_state(g1, c1)
        # Stash h1 (f32); the FC head is applied once after the loop.
        h1hist_ref[t:t + 1, :] = h1

    # (3) FC head: one bf16 (T, HP) @ (HP, OP) matmul, lane-dense (OP = 128-pad)
    #     unmasked store.  Wrapper slices [:, :output_size].
    out_ref[...] = (jnp.dot(h1hist_ref[...].astype(jnp.bfloat16), fcw_ref[...],
                            preferred_element_type=jnp.float32) + fcb_ref[...])

    # Final states (lane-padded; wrapper slices back to the true hidden size).
    hn_ref[0:1, :] = h0
    hn_ref[1:2, :] = h1
    cn_ref[0:1, :] = c0
    cn_ref[1:2, :] = c1


def _run_kernel(x_seq, h_init_p, c_init_p, packed, hp, op):
    T = x_seq.shape[0]
    vmem = pl.BlockSpec(memory_space=pltpu.MemorySpace.VMEM)
    # Everything is whole-array VMEM resident (well under 1 MiB total); no
    # grid/tiling -- the kernel is purely serial-latency bound on the recurrence.
    return pl.pallas_call(
        _lstm_fc_kernel,
        out_shape=(
            jax.ShapeDtypeStruct((T, op), jnp.float32),    # fc output (lane-padded)
            jax.ShapeDtypeStruct((2, hp), jnp.float32),    # h_n (padded)
            jax.ShapeDtypeStruct((2, hp), jnp.float32),    # c_n (padded)
        ),
        in_specs=[vmem] * 11,
        out_specs=(vmem, vmem, vmem),
        scratch_shapes=[
            pltpu.VMEM((T, 4 * hp), jnp.float32),   # precomputed input gates
            pltpu.VMEM((T, hp), jnp.float32),       # h1 history for FC head
        ],
    )(x_seq, h_init_p, c_init_p,
      packed["wih0"], packed["whh0"], packed["b0"],
      packed["w1a"], packed["w1b"], packed["b1"],
      packed["fcw"], packed["fcb"])


# --------------------------- Parameter handling ----------------------------

def make_params(input_size, hidden_size, output_size, seed=0):
    """Raw PyTorch-layout weights, uniform(-1/sqrt(H), 1/sqrt(H)) init."""
    key = jax.random.PRNGKey(seed)
    ks = jax.random.split(key, 10)
    bound = 1.0 / jnp.sqrt(jnp.float32(hidden_size))

    def u(k, shape):
        return jax.random.uniform(k, shape, jnp.float32, -bound, bound)

    return {
        "w_ih0": u(ks[0], (4 * hidden_size, input_size)),
        "w_hh0": u(ks[1], (4 * hidden_size, hidden_size)),
        "b_ih0": u(ks[2], (4 * hidden_size,)),
        "b_hh0": u(ks[3], (4 * hidden_size,)),
        "w_ih1": u(ks[4], (4 * hidden_size, hidden_size)),
        "w_hh1": u(ks[5], (4 * hidden_size, hidden_size)),
        "b_ih1": u(ks[6], (4 * hidden_size,)),
        "b_hh1": u(ks[7], (4 * hidden_size,)),
        "fc_w": u(ks[8], (output_size, hidden_size)),
        "fc_b": u(ks[9], (output_size,)),
    }


def _pad_gate_weight_t(w, H, HP, dtype):
    """(4H, K) PyTorch gate weight (rows i|f|g|o) -> (K, 4*HP) transposed with
    packed slot order (i|f|o|g); each gate's columns land in its own
    lane-aligned HP-wide slot and padding columns are exactly zero."""
    K = w.shape[1]
    out = jnp.zeros((K, 4 * HP), jnp.float32)
    for slot, g in enumerate(_GATE_PERM):
        out = out.at[:, slot * HP:slot * HP + H].set(w[g * H:(g + 1) * H, :].T)
    return out.astype(dtype)


def _pad_gate_bias(b, H, HP):
    out = jnp.zeros((4 * HP,), jnp.float32)
    for slot, g in enumerate(_GATE_PERM):
        out = out.at[slot * HP:slot * HP + H].set(b[g * H:(g + 1) * H])
    return out.reshape(1, 4 * HP)


def _pad_to(w, rows, cols, dtype):
    out = jnp.zeros((rows, cols), jnp.float32)
    out = out.at[:w.shape[0], :w.shape[1]].set(w)
    return out.astype(dtype)


def pack_params(raw, input_size, hidden_size, output_size):
    """Build lane-padded, pre-transposed, gate-reordered bf16 kernel weights.

    Padded-lane invariant: padded gate columns have zero weight AND zero bias,
    padded weight rows are zero, and the wrapper zero-pads the initial h/c, so
    padded hidden/cell lanes stay exactly 0 through the recurrence
    (sigmoid(0)=0.5 only ever multiplies 0).  Do not change this.
    """
    H = hidden_size
    HP = _round_up(H, LANE)
    OP = _round_up(output_size, LANE)
    bf16 = jnp.bfloat16

    wih0 = _pad_gate_weight_t(raw["w_ih0"], H, HP, bf16)                 # (in, 4*HP)
    whh0 = _pad_to(_pad_gate_weight_t(raw["w_hh0"], H, HP, jnp.float32),
                   HP, 4 * HP, bf16)                                     # (HP, 4*HP)
    b0 = _pad_gate_bias(raw["b_ih0"] + raw["b_hh0"], H, HP)              # (1, 4*HP) f32
    # Layer-1 split weights: g1 = h0 @ W1a + h1 @ W1b (+ b1); no per-step concat.
    w1a = _pad_to(_pad_gate_weight_t(raw["w_ih1"], H, HP, jnp.float32),
                  HP, 4 * HP, bf16)                                      # (HP, 4*HP)
    w1b = _pad_to(_pad_gate_weight_t(raw["w_hh1"], H, HP, jnp.float32),
                  HP, 4 * HP, bf16)                                      # (HP, 4*HP)
    b1 = _pad_gate_bias(raw["b_ih1"] + raw["b_hh1"], H, HP)              # (1, 4*HP) f32
    # Lane-dense FC head.
    fcw = _pad_to(raw["fc_w"].T, HP, OP, bf16)                           # (HP, OP)
    fcb = _pad_to(raw["fc_b"].reshape(1, -1), 1, OP, jnp.float32)        # (1, OP)
    return {"wih0": wih0, "whh0": whh0, "b0": b0,
            "w1a": w1a, "w1b": w1b, "b1": b1,
            "fcw": fcw, "fcb": fcb, "hp": HP, "op": OP}


# --------------------------- Module wrapper -------------------------------

def route_optimizer_forward(x, hidden, packed, hidden_size, output_size):
    """Matches RouteOptimizer.forward(x, hidden)."""
    h0, c0 = hidden                                       # each (2, 1, hidden_size)
    hp, op = packed["hp"], packed["op"]
    n = x.shape[0]                                        # len(x) in PyTorch
    # x.view(1, -1, len(x)), batch squeezed; bf16 operand for the MXU.
    x_seq = x.reshape(1, -1, n)[0].astype(jnp.bfloat16)
    h_init = jnp.zeros((2, hp), jnp.float32).at[:, :hidden_size].set(
        h0.reshape(2, hidden_size).astype(jnp.float32))
    c_init = jnp.zeros((2, hp), jnp.float32).at[:, :hidden_size].set(
        c0.reshape(2, hidden_size).astype(jnp.float32))
    out_p, hn_p, cn_p = _run_kernel(x_seq, h_init, c_init, packed, hp, op)
    out = out_p[:, :output_size]
    h_n = hn_p[:, :hidden_size].reshape(2, 1, hidden_size)
    c_n = cn_p[:, :hidden_size].reshape(2, 1, hidden_size)
    return out, (h_n, c_n)


def init_hidden(hidden_size):
    return (jnp.zeros((2, 1, hidden_size), jnp.float32),
            jnp.zeros((2, 1, hidden_size), jnp.float32))


# ------------------------ Pure-JAX reference ------------------------------

def _reference_forward(x, hidden, raw, hidden_size, matmul_dtype=jnp.float32):
    """Reference of the same math; matmul_dtype=bf16 matches kernel precision
    (bf16 operands, f32 accumulation, f32 gate math)."""
    H = hidden_size
    md = matmul_dtype

    def mm(a, b):
        return jnp.dot(a.astype(md), b.astype(md),
                       preferred_element_type=jnp.float32)

    h_all, c_all = hidden
    n = x.shape[0]
    x_seq = x.reshape(1, -1, n)[0]

    def cell(x_row, h, c, w_ih, w_hh, b):
        g = mm(x_row, w_ih.T) + mm(h, w_hh.T) + b
        i = jax.nn.sigmoid(g[:, 0 * H:1 * H])
        f = jax.nn.sigmoid(g[:, 1 * H:2 * H])
        gg = jnp.tanh(g[:, 2 * H:3 * H])
        o = jax.nn.sigmoid(g[:, 3 * H:4 * H])
        c = f * c + i * gg
        h = o * jnp.tanh(c)
        return h, c

    b0 = (raw["b_ih0"] + raw["b_hh0"]).reshape(1, -1)
    b1 = (raw["b_ih1"] + raw["b_hh1"]).reshape(1, -1)
    h0, c0 = h_all[0], c_all[0]
    h1, c1 = h_all[1], c_all[1]
    outs = []
    for t in range(x_seq.shape[0]):
        xr = x_seq[t:t + 1]
        h0, c0 = cell(xr, h0, c0, raw["w_ih0"], raw["w_hh0"], b0)
        h1, c1 = cell(h0, h1, c1, raw["w_ih1"], raw["w_hh1"], b1)
        outs.append(mm(h1, raw["fc_w"].T) + raw["fc_b"].reshape(1, -1))
    out = jnp.concatenate(outs, axis=0)
    hn = jnp.stack([h0, h1], axis=0)
    cn = jnp.stack([c0, c1], axis=0)
    return out, (hn, cn)


# -------------------------------- main -------------------------------------

if __name__ == "__main__":
    # Small synthetic sizes: n_locations = 8 (time matrix 8x8), hidden = 32.
    n_locations = 8
    hidden_size = 32
    input_size = n_locations
    output_size = n_locations

    raw = make_params(input_size, hidden_size, output_size, seed=0)
    packed = pack_params(raw, input_size, hidden_size, output_size)

    key = jax.random.PRNGKey(0)
    # x plays the role of the (scaled) time matrix fed to the optimizer:
    # shape (n_locations, n_locations) -> view(1, -1, len(x)) = (1, 8, 8).
    x = jax.random.uniform(key, (n_locations, n_locations), jnp.float32)

    hidden = init_hidden(hidden_size)

    out, (h_n, c_n) = route_optimizer_forward(x, hidden, packed,
                                              hidden_size, output_size)
    jax.block_until_ready((out, h_n, c_n))

    assert out.shape == (n_locations, output_size)
    assert h_n.shape == (2, 1, hidden_size) and c_n.shape == (2, 1, hidden_size)

    # Precision-matched reference (bf16 matmul operands, f32 everywhere else).
    ref_out, (ref_hn, ref_cn) = _reference_forward(
        x, hidden, raw, hidden_size, matmul_dtype=jnp.bfloat16)
    assert jnp.allclose(out, ref_out, atol=1e-3, rtol=1e-3)
    assert jnp.allclose(h_n, ref_hn.reshape(2, 1, hidden_size), atol=1e-3, rtol=1e-3)
    assert jnp.allclose(c_n, ref_cn.reshape(2, 1, hidden_size), atol=1e-3, rtol=1e-3)

    # Loose sanity check against the pure-f32 reference (bf16 rounding only).
    f32_out, (f32_hn, f32_cn) = _reference_forward(
        x, hidden, raw, hidden_size, matmul_dtype=jnp.float32)
    assert jnp.allclose(out, f32_out, atol=5e-2, rtol=5e-2)
    assert jnp.allclose(h_n, f32_hn.reshape(2, 1, hidden_size), atol=5e-2, rtol=5e-2)
    assert jnp.allclose(c_n, f32_cn.reshape(2, 1, hidden_size), atol=5e-2, rtol=5e-2)

    print("KERNEL_OK")
</pallas_src>

<mosaic_0001>
module attributes {stable_mosaic.version = 11 : i64} {
  func.func @_lstm_fc_kernel(%arg0: memref<8x8xbf16, #tpu.memory_space<vmem>>, %arg1: memref<2x128xf32, #tpu.memory_space<vmem>>, %arg2: memref<2x128xf32, #tpu.memory_space<vmem>>, %arg3: memref<8x512xbf16, #tpu.memory_space<vmem>>, %arg4: memref<128x512xbf16, #tpu.memory_space<vmem>>, %arg5: memref<1x512xf32, #tpu.memory_space<vmem>>, %arg6: memref<128x512xbf16, #tpu.memory_space<vmem>>, %arg7: memref<128x512xbf16, #tpu.memory_space<vmem>>, %arg8: memref<1x512xf32, #tpu.memory_space<vmem>>, %arg9: memref<128x128xbf16, #tpu.memory_space<vmem>>, %arg10: memref<1x128xf32, #tpu.memory_space<vmem>>, %arg11: memref<8x128xf32, #tpu.memory_space<vmem>>, %arg12: memref<2x128xf32, #tpu.memory_space<vmem>>, %arg13: memref<2x128xf32, #tpu.memory_space<vmem>>, %arg14: memref<8x512xf32, #tpu.memory_space<vmem>>, %arg15: memref<8x128xf32, #tpu.memory_space<vmem>>) attributes {dimension_semantics = [], scalar_prefetch = 0 : i64, scratch_operands = 2 : i64, tpu.core_type = #tpu.core_type<tc>} {
    %c0 = arith.constant 0 : index
    %c0_0 = arith.constant 0 : index
    %0 = vector.load %arg0[%c0, %c0_0] : memref<8x8xbf16, #tpu.memory_space<vmem>>, vector<8x8xbf16>
    %c0_1 = arith.constant 0 : index
    %c0_2 = arith.constant 0 : index
    %1 = vector.load %arg3[%c0_1, %c0_2] : memref<8x512xbf16, #tpu.memory_space<vmem>>, vector<8x512xbf16>
    %cst = arith.constant dense<0.000000e+00> : vector<8x512xf32>
    %2 = tpu.matmul %0, %1, %cst {dimension_numbers = #tpu.dot_dimension_numbers<[1], [0], [0], [1], [0, 0, 1, 1], [], []>} : vector<8x8xbf16>, vector<8x512xbf16>, vector<8x512xf32> -> vector<8x512xf32>
    %c0_3 = arith.constant 0 : index
    %c0_4 = arith.constant 0 : index
    %3 = vector.load %arg5[%c0_3, %c0_4] : memref<1x512xf32, #tpu.memory_space<vmem>>, vector<1x512xf32>
    %4 = vector.broadcast %3 : vector<1x512xf32> to vector<8x512xf32>
    %5 = arith.addf %2, %4 : vector<8x512xf32>
    %c0_5 = arith.constant 0 : index
    %c0_6 = arith.constant 0 : index
    %6 = vector.load %arg14[%c0_5, %c0_6] : memref<8x512xf32, #tpu.memory_space<vmem>>, vector<8x512xf32>
    tpu.vector_store %arg14[%c0_5, %c0_6], %5 {strides = array<i32>} : memref<8x512xf32, #tpu.memory_space<vmem>>, vector<8x512xf32>,
    %c0_7 = arith.constant 0 : index
    %c0_8 = arith.constant 0 : index
    %7 = vector.load %arg4[%c0_7, %c0_8] : memref<128x512xbf16, #tpu.memory_space<vmem>>, vector<128x512xbf16>
    %c0_9 = arith.constant 0 : index
    %c0_10 = arith.constant 0 : index
    %8 = vector.load %arg6[%c0_9, %c0_10] : memref<128x512xbf16, #tpu.memory_space<vmem>>, vector<128x512xbf16>
    %c0_11 = arith.constant 0 : index
    %c0_12 = arith.constant 0 : index
    %9 = vector.load %arg7[%c0_11, %c0_12] : memref<128x512xbf16, #tpu.memory_space<vmem>>, vector<128x512xbf16>
    %c0_13 = arith.constant 0 : index
    %c0_14 = arith.constant 0 : index
    %10 = vector.load %arg8[%c0_13, %c0_14] : memref<1x512xf32, #tpu.memory_space<vmem>>, vector<1x512xf32>
    %c0_15 = arith.constant 0 : index
    %c0_16 = arith.constant 0 : index
    %11 = vector.load %arg1[%c0_15, %c0_16] : memref<2x128xf32, #tpu.memory_space<vmem>>, vector<1x128xf32>
    %c0_17 = arith.constant 0 : index
    %c0_18 = arith.constant 0 : index
    %12 = vector.load %arg2[%c0_17, %c0_18] : memref<2x128xf32, #tpu.memory_space<vmem>>, vector<1x128xf32>
    %c1 = arith.constant 1 : index
    %c0_19 = arith.constant 0 : index
    %13 = vector.load %arg1[%c1, %c0_19] : memref<2x128xf32, #tpu.memory_space<vmem>>, vector<1x128xf32>
    %c1_20 = arith.constant 1 : index
    %c0_21 = arith.constant 0 : index
    %14 = vector.load %arg2[%c1_20, %c0_21] : memref<2x128xf32, #tpu.memory_space<vmem>>, vector<1x128xf32>
    %c0_22 = arith.constant 0 : index
    %c0_23 = arith.constant 0 : index
    %15 = vector.load %arg14[%c0_22, %c0_23] : memref<8x512xf32, #tpu.memory_space<vmem>>, vector<1x512xf32>
    %16 = arith.truncf %11 : vector<1x128xf32> to vector<1x128xbf16>
    %cst_24 = arith.constant dense<0.000000e+00> : vector<1x512xf32>
    %17 = tpu.matmul %16, %7, %cst_24 {dimension_numbers = #tpu.dot_dimension_numbers<[1], [0], [0], [1], [0, 0, 1, 1], [], []>} : vector<1x128xbf16>, vector<128x512xbf16>, vector<1x512xf32> -> vector<1x512xf32>
    %18 = arith.addf %15, %17 : vector<1x512xf32>
    %19 = vector.extract_strided_slice %18 {offsets = [0, 0], sizes = [1, 384], strides = [1, 1]} : vector<1x512xf32> to vector<1x384xf32>
    %20 = arith.negf %19 : vector<1x384xf32>
    %21 = math.exp %20 : vector<1x384xf32>
    %cst_25 = arith.constant 1.000000e+00 : f32
    %22 = vector.broadcast %cst_25 : f32 to vector<1x384xf32>
    %23 = arith.addf %22, %21 : vector<1x384xf32>
    %24 = arith.divf %22, %23 : vector<1x384xf32>
    %25 = vector.extract_strided_slice %24 {offsets = [0, 0], sizes = [1, 128], strides = [1, 1]} : vector<1x384xf32> to vector<1x128xf32>
    %26 = vector.extract_strided_slice %24 {offsets = [0, 128], sizes = [1, 128], strides = [1, 1]} : vector<1x384xf32> to vector<1x128xf32>
    %27 = vector.extract_strided_slice %24 {offsets = [0, 256], sizes = [1, 128], strides = [1, 1]} : vector<1x384xf32> to vector<1x128xf32>
    %28 = vector.extract_strided_slice %18 {offsets = [0, 384], sizes = [1, 128], strides = [1, 1]} : vector<1x512xf32> to vector<1x128xf32>
    %29 = math.tanh %28 : vector<1x128xf32>
    %30 = arith.mulf %26, %12 : vector<1x128xf32>
    %31 = arith.mulf %25, %29 : vector<1x128xf32>
    %32 = arith.addf %30, %31 : vector<1x128xf32>
    %33 = math.tanh %32 : vector<1x128xf32>
    %34 = arith.mulf %27, %33 : vector<1x128xf32>
    %35 = arith.truncf %34 : vector<1x128xf32> to vector<1x128xbf16>
    %cst_26 = arith.constant dense<0.000000e+00> : vector<1x512xf32>
    %36 = tpu.matmul %35, %8, %cst_26 {dimension_numbers = #tpu.dot_dimension_numbers<[1], [0], [0], [1], [0, 0, 1, 1], [], []>} : vector<1x128xbf16>, vector<128x512xbf16>, vector<1x512xf32> -> vector<1x512xf32>
    %37 = arith.truncf %13 : vector<1x128xf32> to vector<1x128xbf16>
    %cst_27 = arith.constant dense<0.000000e+00> : vector<1x512xf32>
    %38 = tpu.matmul %37, %9, %cst_27 {dimension_numbers = #tpu.dot_dimension_numbers<[1], [0], [0], [1], [0, 0, 1, 1], [], []>} : vector<1x128xbf16>, vector<128x512xbf16>, vector<1x512xf32> -> vector<1x512xf32>
    %39 = arith.addf %36, %38 : vector<1x512xf32>
    %40 = arith.addf %39, %10 : vector<1x512xf32>
    %41 = vector.extract_strided_slice %40 {offsets = [0, 0], sizes = [1, 384], strides = [1, 1]} : vector<1x512xf32> to vector<1x384xf32>
    %42 = arith.negf %41 : vector<1x384xf32>
    %43 = math.exp %42 : vector<1x384xf32>
    %cst_28 = arith.constant 1.000000e+00 : f32
    %44 = vector.broadcast %cst_28 : f32 to vector<1x384xf32>
    %45 = arith.addf %44, %43 : vector<1x384xf32>
    %46 = arith.divf %44, %45 : vector<1x384xf32>
    %47 = vector.extract_strided_slice %46 {offsets = [0, 0], sizes = [1, 128], strides = [1, 1]} : vector<1x384xf32> to vector<1x128xf32>
    %48 = vector.extract_strided_slice %46 {offsets = [0, 128], sizes = [1, 128], strides = [1, 1]} : vector<1x384xf32> to vector<1x128xf32>
    %49 = vector.extract_strided_slice %46 {offsets = [0, 256], sizes = [1, 128], strides = [1, 1]} : vector<1x384xf32> to vector<1x128xf32>
    %50 = vector.extract_strided_slice %40 {offsets = [0, 384], sizes = [1, 128], strides = [1, 1]} : vector<1x512xf32> to vector<1x128xf32>
    %51 = math.tanh %50 : vector<1x128xf32>
    %52 = arith.mulf %48, %14 : vector<1x128xf32>
    %53 = arith.mulf %47, %51 : vector<1x128xf32>
    %54 = arith.addf %52, %53 : vector<1x128xf32>
    %55 = math.tanh %54 : vector<1x128xf32>
    %56 = arith.mulf %49, %55 : vector<1x128xf32>
    %c0_29 = arith.constant 0 : index
    %c0_30 = arith.constant 0 : index
    %57 = vector.load %arg15[%c0_29, %c0_30] : memref<8x128xf32, #tpu.memory_space<vmem>>, vector<1x128xf32>
    tpu.vector_store %arg15[%c0_29, %c0_30], %56 {strides = array<i32>} : memref<8x128xf32, #tpu.memory_space<vmem>>, vector<1x128xf32>,
    %c1_31 = arith.constant 1 : index
    %c0_32 = arith.constant 0 : index
    %58 = vector.load %arg14[%c1_31, %c0_32] : memref<8x512xf32, #tpu.memory_space<vmem>>, vector<1x512xf32>
    %59 = arith.truncf %34 : vector<1x128xf32> to vector<1x128xbf16>
    %cst_33 = arith.constant dense<0.000000e+00> : vector<1x512xf32>
    %60 = tpu.matmul %59, %7, %cst_33 {dimension_numbers = #tpu.dot_dimension_numbers<[1], [0], [0], [1], [0, 0, 1, 1], [], []>} : vector<1x128xbf16>, vector<128x512xbf16>, vector<1x512xf32> -> vector<1x512xf32>
    %61 = arith.addf %58, %60 : vector<1x512xf32>
    %62 = vector.extract_strided_slice %61 {offsets = [0, 0], sizes = [1, 384], strides = [1, 1]} : vector<1x512xf32> to vector<1x384xf32>
    %63 = arith.negf %62 : vector<1x384xf32>
    %64 = math.exp %63 : vector<1x384xf32>
    %cst_34 = arith.constant 1.000000e+00 : f32
    %65 = vector.broadcast %cst_34 : f32 to vector<1x384xf32>
    %66 = arith.addf %65, %64 : vector<1x384xf32>
    %67 = arith.divf %65, %66 : vector<1x384xf32>
    %68 = vector.extract_strided_slice %67 {offsets = [0, 0], sizes = [1, 128], strides = [1, 1]} : vector<1x384xf32> to vector<1x128xf32>
    %69 = vector.extract_strided_slice %67 {offsets = [0, 128], sizes = [1, 128], strides = [1, 1]} : vector<1x384xf32> to vector<1x128xf32>
    %70 = vector.extract_strided_slice %67 {offsets = [0, 256], sizes = [1, 128], strides = [1, 1]} : vector<1x384xf32> to vector<1x128xf32>
    %71 = vector.extract_strided_slice %61 {offsets = [0, 384], sizes = [1, 128], strides = [1, 1]} : vector<1x512xf32> to vector<1x128xf32>
    %72 = math.tanh %71 : vector<1x128xf32>
    %73 = arith.mulf %69, %32 : vector<1x128xf32>
    %74 = arith.mulf %68, %72 : vector<1x128xf32>
    %75 = arith.addf %73, %74 : vector<1x128xf32>
    %76 = math.tanh %75 : vector<1x128xf32>
    %77 = arith.mulf %70, %76 : vector<1x128xf32>
    %78 = arith.truncf %77 : vector<1x128xf32> to vector<1x128xbf16>
    %cst_35 = arith.constant dense<0.000000e+00> : vector<1x512xf32>
    %79 = tpu.matmul %78, %8, %cst_35 {dimension_numbers = #tpu.dot_dimension_numbers<[1], [0], [0], [1], [0, 0, 1, 1], [], []>} : vector<1x128xbf16>, vector<128x512xbf16>, vector<1x512xf32> -> vector<1x512xf32>
    %80 = arith.truncf %56 : vector<1x128xf32> to vector<1x128xbf16>
    %cst_36 = arith.constant dense<0.000000e+00> : vector<1x512xf32>
    %81 = tpu.matmul %80, %9, %cst_36 {dimension_numbers = #tpu.dot_dimension_numbers<[1], [0], [0], [1], [0, 0, 1, 1], [], []>} : vector<1x128xbf16>, vector<128x512xbf16>, vector<1x512xf32> -> vector<1x512xf32>
    %82 = arith.addf %79, %81 : vector<1x512xf32>
    %83 = arith.addf %82, %10 : vector<1x512xf32>
    %84 = vector.extract_strided_slice %83 {offsets = [0, 0], sizes = [1, 384], strides = [1, 1]} : vector<1x512xf32> to vector<1x384xf32>
    %85 = arith.negf %84 : vector<1x384xf32>
    %86 = math.exp %85 : vector<1x384xf32>
    %cst_37 = arith.constant 1.000000e+00 : f32
    %87 = vector.broadcast %cst_37 : f32 to vector<1x384xf32>
    %88 = arith.addf %87, %86 : vector<1x384xf32>
    %89 = arith.divf %87, %88 : vector<1x384xf32>
    %90 = vector.extract_strided_slice %89 {offsets = [0, 0], sizes = [1, 128], strides = [1, 1]} : vector<1x384xf32> to vector<1x128xf32>
    %91 = vector.extract_strided_slice %89 {offsets = [0, 128], sizes = [1, 128], strides = [1, 1]} : vector<1x384xf32> to vector<1x128xf32>
    %92 = vector.extract_strided_slice %89 {offsets = [0, 256], sizes = [1, 128], strides = [1, 1]} : vector<1x384xf32> to vector<1x128xf32>
    %93 = vector.extract_strided_slice %83 {offsets = [0, 384], sizes = [1, 128], strides = [1, 1]} : vector<1x512xf32> to vector<1x128xf32>
    %94 = math.tanh %93 : vector<1x128xf32>
    %95 = arith.mulf %91, %54 : vector<1x128xf32>
    %96 = arith.mulf %90, %94 : vector<1x128xf32>
    %97 = arith.addf %95, %96 : vector<1x128xf32>
    %98 = math.tanh %97 : vector<1x128xf32>
    %99 = arith.mulf %92, %98 : vector<1x128xf32>
    %c1_38 = arith.constant 1 : index
    %c0_39 = arith.constant 0 : index
    %100 = vector.load %arg15[%c1_38, %c0_39] : memref<8x128xf32, #tpu.memory_space<vmem>>, vector<1x128xf32>
    tpu.vector_store %arg15[%c1_38, %c0_39], %99 {strides = array<i32>} : memref<8x128xf32, #tpu.memory_space<vmem>>, vector<1x128xf32>,
    %c2 = arith.constant 2 : index
    %c0_40 = arith.constant 0 : index
    %101 = vector.load %arg14[%c2, %c0_40] : memref<8x512xf32, #tpu.memory_space<vmem>>, vector<1x512xf32>
    %102 = arith.truncf %77 : vector<1x128xf32> to vector<1x128xbf16>
    %cst_41 = arith.constant dense<0.000000e+00> : vector<1x512xf32>
    %103 = tpu.matmul %102, %7, %cst_41 {dimension_numbers = #tpu.dot_dimension_numbers<[1], [0], [0], [1], [0, 0, 1, 1], [], []>} : vector<1x128xbf16>, vector<128x512xbf16>, vector<1x512xf32> -> vector<1x512xf32>
    %104 = arith.addf %101, %103 : vector<1x512xf32>
    %105 = vector.extract_strided_slice %104 {offsets = [0, 0], sizes = [1, 384], strides = [1, 1]} : vector<1x512xf32> to vector<1x384xf32>
    %106 = arith.negf %105 : vector<1x384xf32>
    %107 = math.exp %106 : vector<1x384xf32>
    %cst_42 = arith.constant 1.000000e+00 : f32
    %108 = vector.broadcast %cst_42 : f32 to vector<1x384xf32>
    %109 = arith.addf %108, %107 : vector<1x384xf32>
    %110 = arith.divf %108, %109 : vector<1x384xf32>
    %111 = vector.extract_strided_slice %110 {offsets = [0, 0], sizes = [1, 128], strides = [1, 1]} : vector<1x384xf32> to vector<1x128xf32>
    %112 = vector.extract_strided_slice %110 {offsets = [0, 128], sizes = [1, 128], strides = [1, 1]} : vector<1x384xf32> to vector<1x128xf32>
    %113 = vector.extract_strided_slice %110 {offsets = [0, 256], sizes = [1, 128], strides = [1, 1]} : vector<1x384xf32> to vector<1x128xf32>
    %114 = vector.extract_strided_slice %104 {offsets = [0, 384], sizes = [1, 128], strides = [1, 1]} : vector<1x512xf32> to vector<1x128xf32>
    %115 = math.tanh %114 : vector<1x128xf32>
    %116 = arith.mulf %112, %75 : vector<1x128xf32>
    %117 = arith.mulf %111, %115 : vector<1x128xf32>
    %118 = arith.addf %116, %117 : vector<1x128xf32>
    %119 = math.tanh %118 : vector<1x128xf32>
    %120 = arith.mulf %113, %119 : vector<1x128xf32>
    %121 = arith.truncf %120 : vector<1x128xf32> to vector<1x128xbf16>
    %cst_43 = arith.constant dense<0.000000e+00> : vector<1x512xf32>
    %122 = tpu.matmul %121, %8, %cst_43 {dimension_numbers = #tpu.dot_dimension_numbers<[1], [0], [0], [1], [0, 0, 1, 1], [], []>} : vector<1x128xbf16>, vector<128x512xbf16>, vector<1x512xf32> -> vector<1x512xf32>
    %123 = arith.truncf %99 : vector<1x128xf32> to vector<1x128xbf16>
    %cst_44 = arith.constant dense<0.000000e+00> : vector<1x512xf32>
    %124 = tpu.matmul %123, %9, %cst_44 {dimension_numbers = #tpu.dot_dimension_numbers<[1], [0], [0], [1], [0, 0, 1, 1], [], []>} : vector<1x128xbf16>, vector<128x512xbf16>, vector<1x512xf32> -> vector<1x512xf32>
    %125 = arith.addf %122, %124 : vector<1x512xf32>
    %126 = arith.addf %125, %10 : vector<1x512xf32>
    %127 = vector.extract_strided_slice %126 {offsets = [0, 0], sizes = [1, 384], strides = [1, 1]} : vector<1x512xf32> to vector<1x384xf32>
    %128 = arith.negf %127 : vector<1x384xf32>
    %129 = math.exp %128 : vector<1x384xf32>
    %cst_45 = arith.constant 1.000000e+00 : f32
    %130 = vector.broadcast %cst_45 : f32 to vector<1x384xf32>
    %131 = arith.addf %130, %129 : vector<1x384xf32>
    %132 = arith.divf %130, %131 : vector<1x384xf32>
    %133 = vector.extract_strided_slice %132 {offsets = [0, 0], sizes = [1, 128], strides = [1, 1]} : vector<1x384xf32> to vector<1x128xf32>
    %134 = vector.extract_strided_slice %132 {offsets = [0, 128], sizes = [1, 128], strides = [1, 1]} : vector<1x384xf32> to vector<1x128xf32>
    %135 = vector.extract_strided_slice %132 {offsets = [0, 256], sizes = [1, 128], strides = [1, 1]} : vector<1x384xf32> to vector<1x128xf32>
    %136 = vector.extract_strided_slice %126 {offsets = [0, 384], sizes = [1, 128], strides = [1, 1]} : vector<1x512xf32> to vector<1x128xf32>
    %137 = math.tanh %136 : vector<1x128xf32>
    %138 = arith.mulf %134, %97 : vector<1x128xf32>
    %139 = arith.mulf %133, %137 : vector<1x128xf32>
    %140 = arith.addf %138, %139 : vector<1x128xf32>
    %141 = math.tanh %140 : vector<1x128xf32>
    %142 = arith.mulf %135, %141 : vector<1x128xf32>
    %c2_46 = arith.constant 2 : index
    %c0_47 = arith.constant 0 : index
    %143 = vector.load %arg15[%c2_46, %c0_47] : memref<8x128xf32, #tpu.memory_space<vmem>>, vector<1x128xf32>
    tpu.vector_store %arg15[%c2_46, %c0_47], %142 {strides = array<i32>} : memref<8x128xf32, #tpu.memory_space<vmem>>, vector<1x128xf32>,
    %c3 = arith.constant 3 : index
    %c0_48 = arith.constant 0 : index
    %144 = vector.load %arg14[%c3, %c0_48] : memref<8x512xf32, #tpu.memory_space<vmem>>, vector<1x512xf32>
    %145 = arith.truncf %120 : vector<1x128xf32> to vector<1x128xbf16>
    %cst_49 = arith.constant dense<0.000000e+00> : vector<1x512xf32>
    %146 = tpu.matmul %145, %7, %cst_49 {dimension_numbers = #tpu.dot_dimension_numbers<[1], [0], [0], [1], [0, 0, 1, 1], [], []>} : vector<1x128xbf16>, vector<128x512xbf16>, vector<1x512xf32> -> vector<1x512xf32>
    %147 = arith.addf %144, %146 : vector<1x512xf32>
    %148 = vector.extract_strided_slice %147 {offsets = [0, 0], sizes = [1, 384], strides = [1, 1]} : vector<1x512xf32> to vector<1x384xf32>
    %149 = arith.negf %148 : vector<1x384xf32>
    %150 = math.exp %149 : vector<1x384xf32>
    %cst_50 = arith.constant 1.000000e+00 : f32
    %151 = vector.broadcast %cst_50 : f32 to vector<1x384xf32>
    %152 = arith.addf %151, %150 : vector<1x384xf32>
    %153 = arith.divf %151, %152 : vector<1x384xf32>
    %154 = vector.extract_strided_slice %153 {offsets = [0, 0], sizes = [1, 128], strides = [1, 1]} : vector<1x384xf32> to vector<1x128xf32>
    %155 = vector.extract_strided_slice %153 {offsets = [0, 128], sizes = [1, 128], strides = [1, 1]} : vector<1x384xf32> to vector<1x128xf32>
    %156 = vector.extract_strided_slice %153 {offsets = [0, 256], sizes = [1, 128], strides = [1, 1]} : vector<1x384xf32> to vector<1x128xf32>
    %157 = vector.extract_strided_slice %147 {offsets = [0, 384], sizes = [1, 128], strides = [1, 1]} : vector<1x512xf32> to vector<1x128xf32>
    %158 = math.tanh %157 : vector<1x128xf32>
    %159 = arith.mulf %155, %118 : vector<1x128xf32>
    %160 = arith.mulf %154, %158 : vector<1x128xf32>
    %161 = arith.addf %159, %160 : vector<1x128xf32>
    %162 = math.tanh %161 : vector<1x128xf32>
    %163 = arith.mulf %156, %162 : vector<1x128xf32>
    %164 = arith.truncf %163 : vector<1x128xf32> to vector<1x128xbf16>
    %cst_51 = arith.constant dense<0.000000e+00> : vector<1x512xf32>
    %165 = tpu.matmul %164, %8, %cst_51 {dimension_numbers = #tpu.dot_dimension_numbers<[1], [0], [0], [1], [0, 0, 1, 1], [], []>} : vector<1x128xbf16>, vector<128x512xbf16>, vector<1x512xf32> -> vector<1x512xf32>
    %166 = arith.truncf %142 : vector<1x128xf32> to vector<1x128xbf16>
    %cst_52 = arith.constant dense<0.000000e+00> : vector<1x512xf32>
    %167 = tpu.matmul %166, %9, %cst_52 {dimension_numbers = #tpu.dot_dimension_numbers<[1], [0], [0], [1], [0, 0, 1, 1], [], []>} : vector<1x128xbf16>, vector<128x512xbf16>, vector<1x512xf32> -> vector<1x512xf32>
    %168 = arith.addf %165, %167 : vector<1x512xf32>
    %169 = arith.addf %168, %10 : vector<1x512xf32>
    %170 = vector.extract_strided_slice %169 {offsets = [0, 0], sizes = [1, 384], strides = [1, 1]} : vector<1x512xf32> to vector<1x384xf32>
    %171 = arith.negf %170 : vector<1x384xf32>
    %172 = math.exp %171 : vector<1x384xf32>
    %cst_53 = arith.constant 1.000000e+00 : f32
    %173 = vector.broadcast %cst_53 : f32 to vector<1x384xf32>
    %174 = arith.addf %173, %172 : vector<1x384xf32>
    %175 = arith.divf %173, %174 : vector<1x384xf32>
    %176 = vector.extract_strided_slice %175 {offsets = [0, 0], sizes = [1, 128], strides = [1, 1]} : vector<1x384xf32> to vector<1x128xf32>
    %177 = vector.extract_strided_slice %175 {offsets = [0, 128], sizes = [1, 128], strides = [1, 1]} : vector<1x384xf32> to vector<1x128xf32>
    %178 = vector.extract_strided_slice %175 {offsets = [0, 256], sizes = [1, 128], strides = [1, 1]} : vector<1x384xf32> to vector<1x128xf32>
    %179 = vector.extract_strided_slice %169 {offsets = [0, 384], sizes = [1, 128], strides = [1, 1]} : vector<1x512xf32> to vector<1x128xf32>
    %180 = math.tanh %179 : vector<1x128xf32>
    %181 = arith.mulf %177, %140 : vector<1x128xf32>
    %182 = arith.mulf %176, %180 : vector<1x128xf32>
    %183 = arith.addf %181, %182 : vector<1x128xf32>
    %184 = math.tanh %183 : vector<1x128xf32>
    %185 = arith.mulf %178, %184 : vector<1x128xf32>
    %c3_54 = arith.constant 3 : index
    %c0_55 = arith.constant 0 : index
    %186 = vector.load %arg15[%c3_54, %c0_55] : memref<8x128xf32, #tpu.memory_space<vmem>>, vector<1x128xf32>
    tpu.vector_store %arg15[%c3_54, %c0_55], %185 {strides = array<i32>} : memref<8x128xf32, #tpu.memory_space<vmem>>, vector<1x128xf32>,
    %c4 = arith.constant 4 : index
    %c0_56 = arith.constant 0 : index
    %187 = vector.load %arg14[%c4, %c0_56] : memref<8x512xf32, #tpu.memory_space<vmem>>, vector<1x512xf32>
    %188 = arith.truncf %163 : vector<1x128xf32> to vector<1x128xbf16>
    %cst_57 = arith.constant dense<0.000000e+00> : vector<1x512xf32>
    %189 = tpu.matmul %188, %7, %cst_57 {dimension_numbers = #tpu.dot_dimension_numbers<[1], [0], [0], [1], [0, 0, 1, 1], [], []>} : vector<1x128xbf16>, vector<128x512xbf16>, vector<1x512xf32> -> vector<1x512xf32>
    %190 = arith.addf %187, %189 : vector<1x512xf32>
    %191 = vector.extract_strided_slice %190 {offsets = [0, 0], sizes = [1, 384], strides = [1, 1]} : vector<1x512xf32> to vector<1x384xf32>
    %192 = arith.negf %191 : vector<1x384xf32>
    %193 = math.exp %192 : vector<1x384xf32>
    %cst_58 = arith.constant 1.000000e+00 : f32
    %194 = vector.broadcast %cst_58 : f32 to vector<1x384xf32>
    %195 = arith.addf %194, %193 : vector<1x384xf32>
    %196 = arith.divf %194, %195 : vector<1x384xf32>
    %197 = vector.extract_strided_slice %196 {offsets = [0, 0], sizes = [1, 128], strides = [1, 1]} : vector<1x384xf32> to vector<1x128xf32>
    %198 = vector.extract_strided_slice %196 {offsets = [0, 128], sizes = [1, 128], strides = [1, 1]} : vector<1x384xf32> to vector<1x128xf32>
    %199 = vector.extract_strided_slice %196 {offsets = [0, 256], sizes = [1, 128], strides = [1, 1]} : vector<1x384xf32> to vector<1x128xf32>
    %200 = vector.extract_strided_slice %190 {offsets = [0, 384], sizes = [1, 128], strides = [1, 1]} : vector<1x512xf32> to vector<1x128xf32>
    %201 = math.tanh %200 : vector<1x128xf32>
    %202 = arith.mulf %198, %161 : vector<1x128xf32>
    %203 = arith.mulf %197, %201 : vector<1x128xf32>
    %204 = arith.addf %202, %203 : vector<1x128xf32>
    %205 = math.tanh %204 : vector<1x128xf32>
    %206 = arith.mulf %199, %205 : vector<1x128xf32>
    %207 = arith.truncf %206 : vector<1x128xf32> to vector<1x128xbf16>
    %cst_59 = arith.constant dense<0.000000e+00> : vector<1x512xf32>
    %208 = tpu.matmul %207, %8, %cst_59 {dimension_numbers = #tpu.dot_dimension_numbers<[1], [0], [0], [1], [0, 0, 1, 1], [], []>} : vector<1x128xbf16>, vector<128x512xbf16>, vector<1x512xf32> -> vector<1x512xf32>
    %209 = arith.truncf %185 : vector<1x128xf32> to vector<1x128xbf16>
    %cst_60 = arith.constant dense<0.000000e+00> : vector<1x512xf32>
    %210 = tpu.matmul %209, %9, %cst_60 {dimension_numbers = #tpu.dot_dimension_numbers<[1], [0], [0], [1], [0, 0, 1, 1], [], []>} : vector<1x128xbf16>, vector<128x512xbf16>, vector<1x512xf32> -> vector<1x512xf32>
    %211 = arith.addf %208, %210 : vector<1x512xf32>
    %212 = arith.addf %211, %10 : vector<1x512xf32>
    %213 = vector.extract_strided_slice %212 {offsets = [0, 0], sizes = [1, 384], strides = [1, 1]} : vector<1x512xf32> to vector<1x384xf32>
    %214 = arith.negf %213 : vector<1x384xf32>
    %215 = math.exp %214 : vector<1x384xf32>
    %cst_61 = arith.constant 1.000000e+00 : f32
    %216 = vector.broadcast %cst_61 : f32 to vector<1x384xf32>
    %217 = arith.addf %216, %215 : vector<1x384xf32>
    %218 = arith.divf %216, %217 : vector<1x384xf32>
    %219 = vector.extract_strided_slice %218 {offsets = [0, 0], sizes = [1, 128], strides = [1, 1]} : vector<1x384xf32> to vector<1x128xf32>
    %220 = vector.extract_strided_slice %218 {offsets = [0, 128], sizes = [1, 128], strides = [1, 1]} : vector<1x384xf32> to vector<1x128xf32>
    %221 = vector.extract_strided_slice %218 {offsets = [0, 256], sizes = [1, 128], strides = [1, 1]} : vector<1x384xf32> to vector<1x128xf32>
    %222 = vector.extract_strided_slice %212 {offsets = [0, 384], sizes = [1, 128], strides = [1, 1]} : vector<1x512xf32> to vector<1x128xf32>
    %223 = math.tanh %222 : vector<1x128xf32>
    %224 = arith.mulf %220, %183 : vector<1x128xf32>
    %225 = arith.mulf %219, %223 : vector<1x128xf32>
    %226 = arith.addf %224, %225 : vector<1x128xf32>
    %227 = math.tanh %226 : vector<1x128xf32>
    %228 = arith.mulf %221, %227 : vector<1x128xf32>
    %c4_62 = arith.constant 4 : index
    %c0_63 = arith.constant 0 : index
    %229 = vector.load %arg15[%c4_62, %c0_63] : memref<8x128xf32, #tpu.memory_space<vmem>>, vector<1x128xf32>
    tpu.vector_store %arg15[%c4_62, %c0_63], %228 {strides = array<i32>} : memref<8x128xf32, #tpu.memory_space<vmem>>, vector<1x128xf32>,
    %c5 = arith.constant 5 : index
    %c0_64 = arith.constant 0 : index
    %230 = vector.load %arg14[%c5, %c0_64] : memref<8x512xf32, #tpu.memory_space<vmem>>, vector<1x512xf32>
    %231 = arith.truncf %206 : vector<1x128xf32> to vector<1x128xbf16>
    %cst_65 = arith.constant dense<0.000000e+00> : vector<1x512xf32>
    %232 = tpu.matmul %231, %7, %cst_65 {dimension_numbers = #tpu.dot_dimension_numbers<[1], [0], [0], [1], [0, 0, 1, 1], [], []>} : vector<1x128xbf16>, vector<128x512xbf16>, vector<1x512xf32> -> vector<1x512xf32>
    %233 = arith.addf %230, %232 : vector<1x512xf32>
    %234 = vector.extract_strided_slice %233 {offsets = [0, 0], sizes = [1, 384], strides = [1, 1]} : vector<1x512xf32> to vector<1x384xf32>
    %235 = arith.negf %234 : vector<1x384xf32>
    %236 = math.exp %235 : vector<1x384xf32>
    %cst_66 = arith.constant 1.000000e+00 : f32
    %237 = vector.broadcast %cst_66 : f32 to vector<1x384xf32>
    %238 = arith.addf %237, %236 : vector<1x384xf32>
    %239 = arith.divf %237, %238 : vector<1x384xf32>
    %240 = vector.extract_strided_slice %239 {offsets = [0, 0], sizes = [1, 128], strides = [1, 1]} : vector<1x384xf32> to vector<1x128xf32>
    %241 = vector.extract_strided_slice %239 {offsets = [0, 128], sizes = [1, 128], strides = [1, 1]} : vector<1x384xf32> to vector<1x128xf32>
    %242 = vector.extract_strided_slice %239 {offsets = [0, 256], sizes = [1, 128], strides = [1, 1]} : vector<1x384xf32> to vector<1x128xf32>
    %243 = vector.extract_strided_slice %233 {offsets = [0, 384], sizes = [1, 128], strides = [1, 1]} : vector<1x512xf32> to vector<1x128xf32>
    %244 = math.tanh %243 : vector<1x128xf32>
    %245 = arith.mulf %241, %204 : vector<1x128xf32>
    %246 = arith.mulf %240, %244 : vector<1x128xf32>
    %247 = arith.addf %245, %246 : vector<1x128xf32>
    %248 = math.tanh %247 : vector<1x128xf32>
    %249 = arith.mulf %242, %248 : vector<1x128xf32>
    %250 = arith.truncf %249 : vector<1x128xf32> to vector<1x128xbf16>
    %cst_67 = arith.constant dense<0.000000e+00> : vector<1x512xf32>
    %251 = tpu.matmul %250, %8, %cst_67 {dimension_numbers = #tpu.dot_dimension_numbers<[1], [0], [0], [1], [0, 0, 1, 1], [], []>} : vector<1x128xbf16>, vector<128x512xbf16>, vector<1x512xf32> -> vector<1x512xf32>
    %252 = arith.truncf %228 : vector<1x128xf32> to vector<1x128xbf16>
    %cst_68 = arith.constant dense<0.000000e+00> : vector<1x512xf32>
    %253 = tpu.matmul %252, %9, %cst_68 {dimension_numbers = #tpu.dot_dimension_numbers<[1], [0], [0], [1], [0, 0, 1, 1], [], []>} : vector<1x128xbf16>, vector<128x512xbf16>, vector<1x512xf32> -> vector<1x512xf32>
    %254 = arith.addf %251, %253 : vector<1x512xf32>
    %255 = arith.addf %254, %10 : vector<1x512xf32>
    %256 = vector.extract_strided_slice %255 {offsets = [0, 0], sizes = [1, 384], strides = [1, 1]} : vector<1x512xf32> to vector<1x384xf32>
    %257 = arith.negf %256 : vector<1x384xf32>
    %258 = math.exp %257 : vector<1x384xf32>
    %cst_69 = arith.constant 1.000000e+00 : f32
    %259 = vector.broadcast %cst_69 : f32 to vector<1x384xf32>
    %260 = arith.addf %259, %258 : vector<1x384xf32>
    %261 = arith.divf %259, %260 : vector<1x384xf32>
    %262 = vector.extract_strided_slice %261 {offsets = [0, 0], sizes = [1, 128], strides = [1, 1]} : vector<1x384xf32> to vector<1x128xf32>
    %263 = vector.extract_strided_slice %261 {offsets = [0, 128], sizes = [1, 128], strides = [1, 1]} : vector<1x384xf32> to vector<1x128xf32>
    %264 = vector.extract_strided_slice %261 {offsets = [0, 256], sizes = [1, 128], strides = [1, 1]} : vector<1x384xf32> to vector<1x128xf32>
    %265 = vector.extract_strided_slice %255 {offsets = [0, 384], sizes = [1, 128], strides = [1, 1]} : vector<1x512xf32> to vector<1x128xf32>
    %266 = math.tanh %265 : vector<1x128xf32>
    %267 = arith.mulf %263, %226 : vector<1x128xf32>
    %268 = arith.mulf %262, %266 : vector<1x128xf32>
    %269 = arith.addf %267, %268 : vector<1x128xf32>
    %270 = math.tanh %269 : vector<1x128xf32>
    %271 = arith.mulf %264, %270 : vector<1x128xf32>
    %c5_70 = arith.constant 5 : index
    %c0_71 = arith.constant 0 : index
    %272 = vector.load %arg15[%c5_70, %c0_71] : memref<8x128xf32, #tpu.memory_space<vmem>>, vector<1x128xf32>
    tpu.vector_store %arg15[%c5_70, %c0_71], %271 {strides = array<i32>} : memref<8x128xf32, #tpu.memory_space<vmem>>, vector<1x128xf32>,
    %c6 = arith.constant 6 : index
    %c0_72 = arith.constant 0 : index
    %273 = vector.load %arg14[%c6, %c0_72] : memref<8x512xf32, #tpu.memory_space<vmem>>, vector<1x512xf32>
    %274 = arith.truncf %249 : vector<1x128xf32> to vector<1x128xbf16>
    %cst_73 = arith.constant dense<0.000000e+00> : vector<1x512xf32>
    %275 = tpu.matmul %274, %7, %cst_73 {dimension_numbers = #tpu.dot_dimension_numbers<[1], [0], [0], [1], [0, 0, 1, 1], [], []>} : vector<1x128xbf16>, vector<128x512xbf16>, vector<1x512xf32> -> vector<1x512xf32>
    %276 = arith.addf %273, %275 : vector<1x512xf32>
    %277 = vector.extract_strided_slice %276 {offsets = [0, 0], sizes = [1, 384], strides = [1, 1]} : vector<1x512xf32> to vector<1x384xf32>
    %278 = arith.negf %277 : vector<1x384xf32>
    %279 = math.exp %278 : vector<1x384xf32>
    %cst_74 = arith.constant 1.000000e+00 : f32
    %280 = vector.broadcast %cst_74 : f32 to vector<1x384xf32>
    %281 = arith.addf %280, %279 : vector<1x384xf32>
    %282 = arith.divf %280, %281 : vector<1x384xf32>
    %283 = vector.extract_strided_slice %282 {offsets = [0, 0], sizes = [1, 128], strides = [1, 1]} : vector<1x384xf32> to vector<1x128xf32>
    %284 = vector.extract_strided_slice %282 {offsets = [0, 128], sizes = [1, 128], strides = [1, 1]} : vector<1x384xf32> to vector<1x128xf32>
    %285 = vector.extract_strided_slice %282 {offsets = [0, 256], sizes = [1, 128], strides = [1, 1]} : vector<1x384xf32> to vector<1x128xf32>
    %286 = vector.extract_strided_slice %276 {offsets = [0, 384], sizes = [1, 128], strides = [1, 1]} : vector<1x512xf32> to vector<1x128xf32>
    %287 = math.tanh %286 : vector<1x128xf32>
    %288 = arith.mulf %284, %247 : vector<1x128xf32>
    %289 = arith.mulf %283, %287 : vector<1x128xf32>
    %290 = arith.addf %288, %289 : vector<1x128xf32>
    %291 = math.tanh %290 : vector<1x128xf32>
    %292 = arith.mulf %285, %291 : vector<1x128xf32>
    %293 = arith.truncf %292 : vector<1x128xf32> to vector<1x128xbf16>
    %cst_75 = arith.constant dense<0.000000e+00> : vector<1x512xf32>
    %294 = tpu.matmul %293, %8, %cst_75 {dimension_numbers = #tpu.dot_dimension_numbers<[1], [0], [0], [1], [0, 0, 1, 1], [], []>} : vector<1x128xbf16>, vector<128x512xbf16>, vector<1x512xf32> -> vector<1x512xf32>
    %295 = arith.truncf %271 : vector<1x128xf32> to vector<1x128xbf16>
    %cst_76 = arith.constant dense<0.000000e+00> : vector<1x512xf32>
    %296 = tpu.matmul %295, %9, %cst_76 {dimension_numbers = #tpu.dot_dimension_numbers<[1], [0], [0], [1], [0, 0, 1, 1], [], []>} : vector<1x128xbf16>, vector<128x512xbf16>, vector<1x512xf32> -> vector<1x512xf32>
    %297 = arith.addf %294, %296 : vector<1x512xf32>
    %298 = arith.addf %297, %10 : vector<1x512xf32>
    %299 = vector.extract_strided_slice %298 {offsets = [0, 0], sizes = [1, 384], strides = [1, 1]} : vector<1x512xf32> to vector<1x384xf32>
    %300 = arith.negf %299 : vector<1x384xf32>
    %301 = math.exp %300 : vector<1x384xf32>
    %cst_77 = arith.constant 1.000000e+00 : f32
    %302 = vector.broadcast %cst_77 : f32 to vector<1x384xf32>
    %303 = arith.addf %302, %301 : vector<1x384xf32>
    %304 = arith.divf %302, %303 : vector<1x384xf32>
    %305 = vector.extract_strided_slice %304 {offsets = [0, 0], sizes = [1, 128], strides = [1, 1]} : vector<1x384xf32> to vector<1x128xf32>
    %306 = vector.extract_strided_slice %304 {offsets = [0, 128], sizes = [1, 128], strides = [1, 1]} : vector<1x384xf32> to vector<1x128xf32>
    %307 = vector.extract_strided_slice %304 {offsets = [0, 256], sizes = [1, 128], strides = [1, 1]} : vector<1x384xf32> to vector<1x128xf32>
    %308 = vector.extract_strided_slice %298 {offsets = [0, 384], sizes = [1, 128], strides = [1, 1]} : vector<1x512xf32> to vector<1x128xf32>
    %309 = math.tanh %308 : vector<1x128xf32>
    %310 = arith.mulf %306, %269 : vector<1x128xf32>
    %311 = arith.mulf %305, %309 : vector<1x128xf32>
    %312 = arith.addf %310, %311 : vector<1x128xf32>
    %313 = math.tanh %312 : vector<1x128xf32>
    %314 = arith.mulf %307, %313 : vector<1x128xf32>
    %c6_78 = arith.constant 6 : index
    %c0_79 = arith.constant 0 : index
    %315 = vector.load %arg15[%c6_78, %c0_79] : memref<8x128xf32, #tpu.memory_space<vmem>>, vector<1x128xf32>
    tpu.vector_store %arg15[%c6_78, %c0_79], %314 {strides = array<i32>} : memref<8x128xf32, #tpu.memory_space<vmem>>, vector<1x128xf32>,
    %c7 = arith.constant 7 : index
    %c0_80 = arith.constant 0 : index
    %316 = vector.load %arg14[%c7, %c0_80] : memref<8x512xf32, #tpu.memory_space<vmem>>, vector<1x512xf32>
    %317 = arith.truncf %292 : vector<1x128xf32> to vector<1x128xbf16>
    %cst_81 = arith.constant dense<0.000000e+00> : vector<1x512xf32>
    %318 = tpu.matmul %317, %7, %cst_81 {dimension_numbers = #tpu.dot_dimension_numbers<[1], [0], [0], [1], [0, 0, 1, 1], [], []>} : vector<1x128xbf16>, vector<128x512xbf16>, vector<1x512xf32> -> vector<1x512xf32>
    %319 = arith.addf %316, %318 : vector<1x512xf32>
    %320 = vector.extract_strided_slice %319 {offsets = [0, 0], sizes = [1, 384], strides = [1, 1]} : vector<1x512xf32> to vector<1x384xf32>
    %321 = arith.negf %320 : vector<1x384xf32>
    %322 = math.exp %321 : vector<1x384xf32>
    %cst_82 = arith.constant 1.000000e+00 : f32
    %323 = vector.broadcast %cst_82 : f32 to vector<1x384xf32>
    %324 = arith.addf %323, %322 : vector<1x384xf32>
    %325 = arith.divf %323, %324 : vector<1x384xf32>
    %326 = vector.extract_strided_slice %325 {offsets = [0, 0], sizes = [1, 128], strides = [1, 1]} : vector<1x384xf32> to vector<1x128xf32>
    %327 = vector.extract_strided_slice %325 {offsets = [0, 128], sizes = [1, 128], strides = [1, 1]} : vector<1x384xf32> to vector<1x128xf32>
    %328 = vector.extract_strided_slice %325 {offsets = [0, 256], sizes = [1, 128], strides = [1, 1]} : vector<1x384xf32> to vector<1x128xf32>
    %329 = vector.extract_strided_slice %319 {offsets = [0, 384], sizes = [1, 128], strides = [1, 1]} : vector<1x512xf32> to vector<1x128xf32>
    %330 = math.tanh %329 : vector<1x128xf32>
    %331 = arith.mulf %327, %290 : vector<1x128xf32>
    %332 = arith.mulf %326, %330 : vector<1x128xf32>
    %333 = arith.addf %331, %332 : vector<1x128xf32>
    %334 = math.tanh %333 : vector<1x128xf32>
    %335 = arith.mulf %328, %334 : vector<1x128xf32>
    %336 = arith.truncf %335 : vector<1x128xf32> to vector<1x128xbf16>
    %cst_83 = arith.constant dense<0.000000e+00> : vector<1x512xf32>
    %337 = tpu.matmul %336, %8, %cst_83 {dimension_numbers = #tpu.dot_dimension_numbers<[1], [0], [0], [1], [0, 0, 1, 1], [], []>} : vector<1x128xbf16>, vector<128x512xbf16>, vector<1x512xf32> -> vector<1x512xf32>
    %338 = arith.truncf %314 : vector<1x128xf32> to vector<1x128xbf16>
    %cst_84 = arith.constant dense<0.000000e+00> : vector<1x512xf32>
    %339 = tpu.matmul %338, %9, %cst_84 {dimension_numbers = #tpu.dot_dimension_numbers<[1], [0], [0], [1], [0, 0, 1, 1], [], []>} : vector<1x128xbf16>, vector<128x512xbf16>, vector<1x512xf32> -> vector<1x512xf32>
    %340 = arith.addf %337, %339 : vector<1x512xf32>
    %341 = arith.addf %340, %10 : vector<1x512xf32>
    %342 = vector.extract_strided_slice %341 {offsets = [0, 0], sizes = [1, 384], strides = [1, 1]} : vector<1x512xf32> to vector<1x384xf32>
    %343 = arith.negf %342 : vector<1x384xf32>
    %344 = math.exp %343 : vector<1x384xf32>
    %cst_85 = arith.constant 1.000000e+00 : f32
    %345 = vector.broadcast %cst_85 : f32 to vector<1x384xf32>
    %346 = arith.addf %345, %344 : vector<1x384xf32>
    %347 = arith.divf %345, %346 : vector<1x384xf32>
    %348 = vector.extract_strided_slice %347 {offsets = [0, 0], sizes = [1, 128], strides = [1, 1]} : vector<1x384xf32> to vector<1x128xf32>
    %349 = vector.extract_strided_slice %347 {offsets = [0, 128], sizes = [1, 128], strides = [1, 1]} : vector<1x384xf32> to vector<1x128xf32>
    %350 = vector.extract_strided_slice %347 {offsets = [0, 256], sizes = [1, 128], strides = [1, 1]} : vector<1x384xf32> to vector<1x128xf32>
    %351 = vector.extract_strided_slice %341 {offsets = [0, 384], sizes = [1, 128], strides = [1, 1]} : vector<1x512xf32> to vector<1x128xf32>
    %352 = math.tanh %351 : vector<1x128xf32>
    %353 = arith.mulf %349, %312 : vector<1x128xf32>
    %354 = arith.mulf %348, %352 : vector<1x128xf32>
    %355 = arith.addf %353, %354 : vector<1x128xf32>
    %356 = math.tanh %355 : vector<1x128xf32>
    %357 = arith.mulf %350, %356 : vector<1x128xf32>
    %c7_86 = arith.constant 7 : index
    %c0_87 = arith.constant 0 : index
    %358 = vector.load %arg15[%c7_86, %c0_87] : memref<8x128xf32, #tpu.memory_space<vmem>>, vector<1x128xf32>
    tpu.vector_store %arg15[%c7_86, %c0_87], %357 {strides = array<i32>} : memref<8x128xf32, #tpu.memory_space<vmem>>, vector<1x128xf32>,
    %c0_88 = arith.constant 0 : index
    %c0_89 = arith.constant 0 : index
    %359 = vector.load %arg15[%c0_88, %c0_89] : memref<8x128xf32, #tpu.memory_space<vmem>>, vector<8x128xf32>
    %360 = arith.truncf %359 : vector<8x128xf32> to vector<8x128xbf16>
    %c0_90 = arith.constant 0 : index
    %c0_91 = arith.constant 0 : index
    %361 = vector.load %arg9[%c0_90, %c0_91] : memref<128x128xbf16, #tpu.memory_space<vmem>>, vector<128x128xbf16>
    %cst_92 = arith.constant dense<0.000000e+00> : vector<8x128xf32>
    %362 = tpu.matmul %360, %361, %cst_92 {dimension_numbers = #tpu.dot_dimension_numbers<[1], [0], [0], [1], [0, 0, 1, 1], [], []>} : vector<8x128xbf16>, vector<128x128xbf16>, vector<8x128xf32> -> vector<8x128xf32>
    %c0_93 = arith.constant 0 : index
    %c0_94 = arith.constant 0 : index
    %363 = vector.load %arg10[%c0_93, %c0_94] : memref<1x128xf32, #tpu.memory_space<vmem>>, vector<1x128xf32>
    %364 = vector.broadcast %363 : vector<1x128xf32> to vector<8x128xf32>
    %365 = arith.addf %362, %364 : vector<8x128xf32>
    %c0_95 = arith.constant 0 : index
    %c0_96 = arith.constant 0 : index
    %366 = vector.load %arg11[%c0_95, %c0_96] : memref<8x128xf32, #tpu.memory_space<vmem>>, vector<8x128xf32>
    tpu.vector_store %arg11[%c0_95, %c0_96], %365 {strides = array<i32>} : memref<8x128xf32, #tpu.memory_space<vmem>>, vector<8x128xf32>,
    %c0_97 = arith.constant 0 : index
    %c0_98 = arith.constant 0 : index
    %367 = vector.load %arg12[%c0_97, %c0_98] : memref<2x128xf32, #tpu.memory_space<vmem>>, vector<1x128xf32>
    tpu.vector_store %arg12[%c0_97, %c0_98], %335 {strides = array<i32>} : memref<2x128xf32, #tpu.memory_space<vmem>>, vector<1x128xf32>,
    %c1_99 = arith.constant 1 : index
    %c0_100 = arith.constant 0 : index
    %368 = vector.load %arg12[%c1_99, %c0_100] : memref<2x128xf32, #tpu.memory_space<vmem>>, vector<1x128xf32>
    tpu.vector_store %arg12[%c1_99, %c0_100], %357 {strides = array<i32>} : memref<2x128xf32, #tpu.memory_space<vmem>>, vector<1x128xf32>,
    %c0_101 = arith.constant 0 : index
    %c0_102 = arith.constant 0 : index
    %369 = vector.load %arg13[%c0_101, %c0_102] : memref<2x128xf32, #tpu.memory_space<vmem>>, vector<1x128xf32>
    tpu.vector_store %arg13[%c0_101, %c0_102], %333 {strides = array<i32>} : memref<2x128xf32, #tpu.memory_space<vmem>>, vector<1x128xf32>,
    %c1_103 = arith.constant 1 : index
    %c0_104 = arith.constant 0 : index
    %370 = vector.load %arg13[%c1_103, %c0_104] : memref<2x128xf32, #tpu.memory_space<vmem>>, vector<1x128xf32>
    tpu.vector_store %arg13[%c1_103, %c0_104], %355 {strides = array<i32>} : memref<2x128xf32, #tpu.memory_space<vmem>>, vector<1x128xf32>,
    return
  }
}

</mosaic_0001>

<llo_original>
// kernel: tpu_custom_call.1
$region0: #{tpu_custom_call.1}
  #allocation0 [shape = 'u32[]', space=smem, size = 0x4, offset = 0x4, fixed_abs, tag = 'smem constant byte address 0x4 - core index']
  #allocation1 [shape = 'u32[144,128]{1,0:T(1,128)}', space=vmem, size = 0x12000, scoped, tag = 'internal scratch']
  #allocation2 [shape = 'f32[8,512]{1,0:T(8,128)}', space=vmem, size = 0x4000, scoped, tag = 'scratch operand']
  #allocation3 [shape = 'f32[8,128]{1,0:T(8,128)}', space=vmem, size = 0x1000, scoped, tag = 'scratch operand']
  %s0 = inlined_call_operand.hbm [shape: bf16[8,8], index: 0, kind: input, shape index: {}]
  %s1 = inlined_call_operand.vmem [shape: f32[2,128], index: 1, kind: input, shape index: {}]
  %s2 = inlined_call_operand.hbm [shape: f32[2,128], index: 2, kind: input, shape index: {}]
  %s3 = inlined_call_operand.hbm [shape: bf16[8,512], index: 3, kind: input, shape index: {}]
  %s4 = inlined_call_operand.hbm [shape: bf16[128,512], index: 4, kind: input, shape index: {}]
  %s5 = inlined_call_operand.vmem [shape: f32[1,512], index: 5, kind: input, shape index: {}]
  %s6 = inlined_call_operand.hbm [shape: bf16[128,512], index: 6, kind: input, shape index: {}]
  %s7 = inlined_call_operand.hbm [shape: bf16[128,512], index: 7, kind: input, shape index: {}]
  %s8 = inlined_call_operand.vmem [shape: f32[1,512], index: 8, kind: input, shape index: {}]
  %s9 = inlined_call_operand.hbm [shape: bf16[128,128], index: 9, kind: input, shape index: {}]
  %s10 = inlined_call_operand.vmem [shape: f32[1,128], index: 10, kind: input, shape index: {}]
  %s11 = inlined_call_operand.hbm [shape: f32[8,128], index: 11, kind: output, shape index: {0}]
  %s12 = inlined_call_operand.hbm [shape: f32[2,128], index: 12, kind: output, shape index: {1}]
  %s13 = inlined_call_operand.hbm [shape: f32[2,128], index: 13, kind: output, shape index: {2}]
  %14 = xla_tuple %s11, %s12, %s13
  %s15 = sld [smem:[#allocation0]]
  $region98: #{tpu_custom_call.1} parent=0
    _
  %s17 = ssub.s32 1, %s15
  %s18 = scalar_select 0, %s17, %s15
  $region1: #{tpu_custom_call.1} parent=0
    #allocation4 [shape = 'u8[2048]{0}', space=vmem, size = 0x800, scoped, tag = 'input window, operand 0, single buffered']
    #allocation5 [shape = 's32[1]{0}', space=sflag, size = 0x4, scoped, tag = 'scoped memory for tpu_custom_call.1']
    #allocation6 [shape = 's32[1]{0}', space=sflag, size = 0x4, scoped, tag = 'scoped memory for tpu_custom_call.1']
    #allocation7 [shape = 'u8[1024]{0}', space=vmem, size = 0x400, scoped, tag = 'input window, operand 2, single buffered']
    #allocation8 [shape = 's32[1]{0}', space=sflag, size = 0x4, scoped, tag = 'scoped memory for tpu_custom_call.1']
    #allocation9 [shape = 'u8[8192]{0}', space=vmem, size = 0x2000, scoped, tag = 'input window, operand 3, single buffered']
    #allocation10 [shape = 'u8[131072]{0}', space=vmem, size = 0x20000, scoped, tag = 'input window, operand 4, single buffered']
    #allocation11 [shape = 's32[1]{0}', space=sflag, size = 0x4, scoped, tag = 'scoped memory for tpu_custom_call.1']
    #allocation12 [shape = 'u8[131072]{0}', space=vmem, size = 0x20000, scoped, tag = 'input window, operand 6, single buffered']
    #allocation13 [shape = 'u8[131072]{0}', space=vmem, size = 0x20000, scoped, tag = 'input window, operand 7, single buffered']
    #allocation14 [shape = 's32[1]{0}', space=sflag, size = 0x4, scoped, tag = 'scoped memory for tpu_custom_call.1']
    #allocation15 [shape = 'u8[32768]{0}', space=vmem, size = 0x8000, scoped, tag = 'input window, operand 9, single buffered']
    #allocation16 [shape = 'u8[4096]{0}', space=vmem, size = 0x1000, scoped, tag = 'output window, operand 0, single buffered']
    #allocation17 [shape = 'u8[1024]{0}', space=vmem, size = 0x400, scoped, tag = 'output window, operand 1, single buffered']
    #allocation18 [shape = 's32[1]{0}', space=sflag, size = 0x4, scoped, tag = 'scoped memory for tpu_custom_call.1']
    #allocation19 [shape = 'u8[1024]{0}', space=vmem, size = 0x400, scoped, tag = 'output window, operand 2, single buffered']
    %19 = vsyncpa [#allocation5], 0
    %20 = vsyncpa [#allocation8], 0
    %21 = vsyncpa [#allocation11], 0
    %22 = vsyncpa [#allocation14], 0
    %23 = vsyncpa [#allocation6], 0
    %24 = vsyncpa [#allocation18], 0
    // Predicated region
    $region2: #{tpu_custom_call.1} parent=1 // pred_check
      _
    $region3: #{tpu_custom_call.1} parent=1 // pred_check_branch
      %26 = sbr.rel (0) target = $region5
    $region4: #{tpu_custom_call.1} parent=1 // pred_region
      %s28 = ssub.s32 64, 64
      %29 = vsyncadd [#allocation5], %s28
      %s31 = sshll.u32 [#allocation4], 4
      %s32 = int_to_ptr.vmem [resolvable:$true] %s31
      %34 = dma.hbm_to_vmem [thread:$0]  %s0, 64, %s32, [#allocation5]
    $region5: #{tpu_custom_call.1} parent=1 // pred_fallthru
      _
    // Predicated region
    $region6: #{tpu_custom_call.1} parent=1 // pred_check
      _
    $region7: #{tpu_custom_call.1} parent=1 // pred_check_branch
      %36 = sbr.rel (0) target = $region9
    $region8: #{tpu_custom_call.1} parent=1 // pred_region
      _
    $region9: #{tpu_custom_call.1} parent=1 // pred_fallthru
      _
    // Predicated region
    $region10: #{tpu_custom_call.1} parent=1 // pred_check
      _
    $region11: #{tpu_custom_call.1} parent=1 // pred_check_branch
      %38 = sbr.rel (0) target = $region13
    $region12: #{tpu_custom_call.1} parent=1 // pred_region
      %s40 = ssub.s32 32, 32
      %41 = vsyncadd [#allocation8], %s40
      %s43 = sshll.u32 [#allocation7], 4
      %s44 = int_to_ptr.vmem [resolvable:$true] %s43
      %46 = dma.hbm_to_vmem [thread:$0]  %s2, 32, %s44, [#allocation8]
    $region13: #{tpu_custom_call.1} parent=1 // pred_fallthru
      _
    // Predicated region
    $region14: #{tpu_custom_call.1} parent=1 // pred_check
      _
    $region15: #{tpu_custom_call.1} parent=1 // pred_check_branch
      %48 = sbr.rel (0) target = $region17
    $region16: #{tpu_custom_call.1} parent=1 // pred_region
      %s50 = ssub.s32 256, 256
      %51 = vsyncadd [#allocation8], %s50
      %s53 = sshll.u32 [#allocation9], 4
      %s54 = int_to_ptr.vmem [resolvable:$true] %s53
      %56 = dma.hbm_to_vmem [thread:$0]  %s3, 256, %s54, [#allocation8]
    $region17: #{tpu_custom_call.1} parent=1 // pred_fallthru
      _
    // Predicated region
    $region18: #{tpu_custom_call.1} parent=1 // pred_check
      _
    $region19: #{tpu_custom_call.1} parent=1 // pred_check_branch
      %58 = sbr.rel (0) target = $region21
    $region20: #{tpu_custom_call.1} parent=1 // pred_region
      %s60 = ssub.s32 4096, 4096
      %61 = vsyncadd [#allocation11], %s60
      %s62 = sshll.u32 [#allocation10], 4
      %s63 = int_to_ptr.vmem [resolvable:$true] %s62
      %68 = dma.hbm_to_vmem [thread:$0]  %s4, 4096, %s63, [#allocation11], 256, 256, 16
    $region21: #{tpu_custom_call.1} parent=1 // pred_fallthru
      _
    // Predicated region
    $region22: #{tpu_custom_call.1} parent=1 // pred_check
      _
    $region23: #{tpu_custom_call.1} parent=1 // pred_check_branch
      %70 = sbr.rel (0) target = $region25
    $region24: #{tpu_custom_call.1} parent=1 // pred_region
      _
    $region25: #{tpu_custom_call.1} parent=1 // pred_fallthru
      _
    // Predicated region
    $region26: #{tpu_custom_call.1} parent=1 // pred_check
      _
    $region27: #{tpu_custom_call.1} parent=1 // pred_check_branch
      %72 = sbr.rel (0) target = $region29
    $region28: #{tpu_custom_call.1} parent=1 // pred_region
      %s74 = ssub.s32 4096, 4096
      %75 = vsyncadd [#allocation11], %s74
      %s76 = sshll.u32 [#allocation12], 4
      %s77 = int_to_ptr.vmem [resolvable:$true] %s76
      %82 = dma.hbm_to_vmem [thread:$0]  %s6, 4096, %s77, [#allocation11], 256, 256, 16
    $region29: #{tpu_custom_call.1} parent=1 // pred_fallthru
      _
    // Predicated region
    $region30: #{tpu_custom_call.1} parent=1 // pred_check
      _
    $region31: #{tpu_custom_call.1} parent=1 // pred_check_branch
      %84 = sbr.rel (0) target = $region33
    $region32: #{tpu_custom_call.1} parent=1 // pred_region
      %s86 = ssub.s32 4096, 4096
      %87 = vsyncadd [#allocation14], %s86
      %s88 = sshll.u32 [#allocation13], 4
      %s89 = int_to_ptr.vmem [resolvable:$true] %s88
      %94 = dma.hbm_to_vmem [thread:$0]  %s7, 4096, %s89, [#allocation14], 256, 256, 16
    $region33: #{tpu_custom_call.1} parent=1 // pred_fallthru
      _
    // Predicated region
    $region34: #{tpu_custom_call.1} parent=1 // pred_check
      _
    $region35: #{tpu_custom_call.1} parent=1 // pred_check_branch
      %96 = sbr.rel (0) target = $region37
    $region36: #{tpu_custom_call.1} parent=1 // pred_region
      _
    $region37: #{tpu_custom_call.1} parent=1 // pred_fallthru
      _
    // Predicated region
    $region38: #{tpu_custom_call.1} parent=1 // pred_check
      _
    $region39: #{tpu_custom_call.1} parent=1 // pred_check_branch
      %98 = sbr.rel (0) target = $region41
    $region40: #{tpu_custom_call.1} parent=1 // pred_region
      %s100 = ssub.s32 1024, 1024
      %101 = vsyncadd [#allocation14], %s100
      %s102 = sshll.u32 [#allocation15], 4
      %s103 = int_to_ptr.vmem [resolvable:$true] %s102
      %108 = dma.hbm_to_vmem [thread:$0]  %s9, 1024, %s103, [#allocation14], 64, 64, 4
    $region41: #{tpu_custom_call.1} parent=1 // pred_fallthru
      _
    // Predicated region
    $region42: #{tpu_custom_call.1} parent=1 // pred_check
      _
    $region43: #{tpu_custom_call.1} parent=1 // pred_check_branch
      %110 = sbr.rel (0) target = $region45
    $region44: #{tpu_custom_call.1} parent=1 // pred_region
      _
    $region45: #{tpu_custom_call.1} parent=1 // pred_fallthru
      _
    // Predicated region
    $region46: #{tpu_custom_call.1} parent=1 // pred_check
      _
    $region47: #{tpu_custom_call.1} parent=1 // pred_check_branch
      %112 = sbr.rel (0) target = $region49
    $region48: #{tpu_custom_call.1} parent=1 // pred_region
      %113 = dma.done [#allocation5], 64
    $region49: #{tpu_custom_call.1} parent=1 // pred_fallthru
      _
    // Predicated region
    $region50: #{tpu_custom_call.1} parent=1 // pred_check
      _
    $region51: #{tpu_custom_call.1} parent=1 // pred_check_branch
      %115 = sbr.rel (0) target = $region53
    $region52: #{tpu_custom_call.1} parent=1 // pred_region
      %116 = dma.done [#allocation8], 32
    $region53: #{tpu_custom_call.1} parent=1 // pred_fallthru
      _
    // Predicated region
    $region54: #{tpu_custom_call.1} parent=1 // pred_check
      _
    $region55: #{tpu_custom_call.1} parent=1 // pred_check_branch
      %118 = sbr.rel (0) target = $region57
    $region56: #{tpu_custom_call.1} parent=1 // pred_region
      %119 = dma.done [#allocation8], 256
    $region57: #{tpu_custom_call.1} parent=1 // pred_fallthru
      _
    // Predicated region
    $region58: #{tpu_custom_call.1} parent=1 // pred_check
      _
    $region59: #{tpu_custom_call.1} parent=1 // pred_check_branch
      %121 = sbr.rel (0) target = $region61
    $region60: #{tpu_custom_call.1} parent=1 // pred_region
      %122 = dma.done [#allocation11], 4096
    $region61: #{tpu_custom_call.1} parent=1 // pred_fallthru
      _
    // Predicated region
    $region62: #{tpu_custom_call.1} parent=1 // pred_check
      _
    $region63: #{tpu_custom_call.1} parent=1 // pred_check_branch
      %124 = sbr.rel (0) target = $region65
    $region64: #{tpu_custom_call.1} parent=1 // pred_region
      %125 = dma.done [#allocation11], 4096
    $region65: #{tpu_custom_call.1} parent=1 // pred_fallthru
      _
    // Predicated region
    $region66: #{tpu_custom_call.1} parent=1 // pred_check
      _
    $region67: #{tpu_custom_call.1} parent=1 // pred_check_branch
      %127 = sbr.rel (0) target = $region69
    $region68: #{tpu_custom_call.1} parent=1 // pred_region
      %128 = dma.done [#allocation14], 4096
    $region69: #{tpu_custom_call.1} parent=1 // pred_fallthru
      _
    // Predicated region
    $region70: #{tpu_custom_call.1} parent=1 // pred_check
      _
    $region71: #{tpu_custom_call.1} parent=1 // pred_check_branch
      %130 = sbr.rel (0) target = $region73
    $region72: #{tpu_custom_call.1} parent=1 // pred_region
      %131 = dma.done [#allocation14], 1024
    $region73: #{tpu_custom_call.1} parent=1 // pred_fallthru
      _
    %v133 = vld [vmem:[#allocation4] sm:$0xf]
    %v134 = vld [vmem:[#allocation9] sm:$0xff]
    %v135 = vld [vmem:[#allocation9 + $0x8] sm:$0xff]
    %v136 = vld [vmem:[%s5] sm:$0xf]
    %v138 = vlaneseq
    %v139 = vshrl.u32 %v138, 7
    %v140 = vsub.s32 0, %v139
    %v141 = vrot.slane %v136, %v140
    %v142 = vlaneseq
    %v143 = vshrl.u32 %v142, 7
    %v144 = vsub.s32 1, %v143
    %v145 = vrot.slane %v136, %v144
    %v146 = vlaneseq
    %v147 = vshrl.u32 %v146, 7
    %v148 = vsub.s32 2, %v147
    %v149 = vrot.slane %v136, %v148
    %v150 = vlaneseq
    %v151 = vshrl.u32 %v150, 7
    %v152 = vsub.s32 3, %v151
    %v153 = vrot.slane %v136, %v152
    %v160 = vunpack.c.l.b16 %v134
    %v161 = vunpack.c.h.b16 %v134
    %v162 = vunpack.c.l.b16 %v135
    %v163 = vunpack.c.h.b16 %v135
    %v164 = vpack.c.b16 %v160, %v160
    %v165 = vpack.c.b16 %v161, %v161
    %v166 = vpack.c.b16 %v162, %v162
    %v167 = vpack.c.b16 %v163, %v163
    %vm168 = vcmask 64512
    %v170 = vsel %vm168, %v133, 0
    %vm172 = vcmask 1043456
    %v174 = vsel %vm172, %v164, 0
    %v177 = vsel %vm172, %v165, 0
    %v180 = vsel %vm172, %v166, 0
    %v183 = vsel %vm172, %v167, 0
    %185 = vmatprep.subr.bf16.mxu0 %v177
    %186 = vmatpush1.bf16.msra.mxu0 %v174
    %187 = vmatprep.subr.bf16.mxu0 0
    %188 = vmatpush1.bf16.msra.mxu0 0
    %189 = vmatprep.subr.bf16.mxu0 0
    %190 = vmatpush1.bf16.msra.mxu0 0
    %191 = vmatprep.subr.bf16.mxu0 0
    %192 = vmatpush1.bf16.msra.mxu0 0
    %193 = vmatprep.subr.bf16.mxu0 0
    %194 = vmatpush1.bf16.msra.mxu0 0
    %195 = vmatprep.subr.bf16.mxu0 0
    %196 = vmatpush1.bf16.msra.mxu0 0
    %197 = vmatprep.subr.bf16.mxu0 0
    %198 = vmatpush1.bf16.msra.mxu0 0
    %199 = vmatprep.subr.bf16.mxu0 0
    %200 = vmatpush1.bf16.msra.mxu0 0
    %201 = vmatprep.subr.bf16.mxu0 0
    %202 = vmatpush1.bf16.msra.mxu0 0
    %203 = vmatprep.subr.bf16.mxu0 0
    %204 = vmatpush1.bf16.msra.mxu0 0
    %205 = vmatprep.subr.bf16.mxu0 0
    %206 = vmatpush1.bf16.msra.mxu0 0
    %207 = vmatprep.subr.bf16.mxu0 0
    %208 = vmatpush1.bf16.msra.mxu0 0
    %209 = vmatprep.subr.bf16.mxu0 0
    %210 = vmatpush1.bf16.msra.mxu0 0
    %211 = vmatprep.subr.bf16.mxu0 0
    %212 = vmatpush1.bf16.msra.mxu0 0
    %213 = vmatprep.subr.bf16.mxu0 0
    %214 = vmatpush1.bf16.msra.mxu0 0
    %215 = vmatprep.subr.bf16.mxu0 0
    %216 = vmatpush1.bf16.msra.mxu0 0
    %217 = vmatprep.mubr.bf16.mxu0 0
    %218 = vmatmul.mubr.bf16.gmra.mrb[0].mxu0 %v170
    %v219 = vpop.f32.mrb[0].mxu0
    %v220 = vadd.f32 %v141, %v219
    %v221 = vpop.f32.mrb[0].mxu0
    %v222 = vadd.f32 %v145, %v221
    %v223 = vpop.f32.mrb[0].mxu0
    %v224 = vpop.f32.mrb[0].mxu0
    %225 = vdwg.mxu0
    %226 = vmatprep.subr.bf16.mxu0 %v183
    %227 = vmatpush1.bf16.msra.mxu0 %v180
    %228 = vmatprep.subr.bf16.mxu0 0
    %229 = vmatpush1.bf16.msra.mxu0 0
    %230 = vmatprep.subr.bf16.mxu0 0
    %231 = vmatpush1.bf16.msra.mxu0 0
    %232 = vmatprep.subr.bf16.mxu0 0
    %233 = vmatpush1.bf16.msra.mxu0 0
    %234 = vmatprep.subr.bf16.mxu0 0
    %235 = vmatpush1.bf16.msra.mxu0 0
    %236 = vmatprep.subr.bf16.mxu0 0
    %237 = vmatpush1.bf16.msra.mxu0 0
    %238 = vmatprep.subr.bf16.mxu0 0
    %239 = vmatpush1.bf16.msra.mxu0 0
    %240 = vmatprep.subr.bf16.mxu0 0
    %241 = vmatpush1.bf16.msra.mxu0 0
    %242 = vmatprep.subr.bf16.mxu0 0
    %243 = vmatpush1.bf16.msra.mxu0 0
    %244 = vmatprep.subr.bf16.mxu0 0
    %245 = vmatpush1.bf16.msra.mxu0 0
    %246 = vmatprep.subr.bf16.mxu0 0
    %247 = vmatpush1.bf16.msra.mxu0 0
    %248 = vmatprep.subr.bf16.mxu0 0
    %249 = vmatpush1.bf16.msra.mxu0 0
    %250 = vmatprep.subr.bf16.mxu0 0
    %251 = vmatpush1.bf16.msra.mxu0 0
    %252 = vmatprep.subr.bf16.mxu0 0
    %253 = vmatpush1.bf16.msra.mxu0 0
    %254 = vmatprep.subr.bf16.mxu0 0
    %255 = vmatpush1.bf16.msra.mxu0 0
    %256 = vmatprep.subr.bf16.mxu0 0
    %257 = vmatpush1.bf16.msra.mxu0 0
    %258 = vmatprep.mubr.bf16.mxu0 0
    %259 = vmatmul.mubr.bf16.gmra.mrb[0].mxu0 %v170
    %v260 = vpop.f32.mrb[0].mxu0
    %v261 = vadd.f32 %v149, %v260
    %v262 = vpop.f32.mrb[0].mxu0
    %v263 = vadd.f32 %v153, %v262
    %v264 = vpop.f32.mrb[0].mxu0
    %v265 = vpop.f32.mrb[0].mxu0
    %266 = vdwg.mxu0
    %267 = vst [vmem:[#allocation2] sm:$0xff] %v220
    %268 = vst [vmem:[#allocation2 + $0x8] sm:$0xff] %v222
    %269 = vst [vmem:[#allocation2 + $0x10] sm:$0xff] %v261
    %270 = vst [vmem:[#allocation2 + $0x18] sm:$0xff] %v263
    %v271 = vld [vmem:[#allocation10] sm:$0xff]
    %v272 = vld [vmem:[#allocation10 + $0x8] sm:$0xff]
    %v273 = vld [vmem:[#allocation10 + $0x10] sm:$0xff]
    %v274 = vld [vmem:[#allocation10 + $0x18] sm:$0xff]
    %v275 = vld [vmem:[#allocation10 + $0x20] sm:$0xff]
    %v276 = vld [vmem:[#allocation10 + $0x28] sm:$0xff]
    %v277 = vld [vmem:[#allocation10 + $0x30] sm:$0xff]
    %v278 = vld [vmem:[#allocation10 + $0x38] sm:$0xff]
    %v279 = vld [vmem:[#allocation10 + $0x40] sm:$0xff]
    %v280 = vld [vmem:[#allocation10 + $0x48] sm:$0xff]
    %v281 = vld [vmem:[#allocation10 + $0x50] sm:$0xff]
    %v282 = vld [vmem:[#allocation10 + $0x58] sm:$0xff]
    %v283 = vld [vmem:[#allocation10 + $0x60] sm:$0xff]
    %v284 = vld [vmem:[#allocation10 + $0x68] sm:$0xff]
    %v285 = vld [vmem:[#allocation10 + $0x70] sm:$0xff]
    %v286 = vld [vmem:[#allocation10 + $0x78] sm:$0xff]
    %v287 = vld [vmem:[#allocation10 + $0x80] sm:$0xff]
    %v288 = vld [vmem:[#allocation10 + $0x88] sm:$0xff]
    %v289 = vld [vmem:[#allocation10 + $0x90] sm:$0xff]
    %v290 = vld [vmem:[#allocation10 + $0x98] sm:$0xff]
    %v291 = vld [vmem:[#allocation10 + $0xa0] sm:$0xff]
    %v292 = vld [vmem:[#allocation10 + $0xa8] sm:$0xff]
    %v293 = vld [vmem:[#allocation10 + $0xb0] sm:$0xff]
    %v294 = vld [vmem:[#allocation10 + $0xb8] sm:$0xff]
    %v295 = vld [vmem:[#allocation10 + $0xc0] sm:$0xff]
    %v296 = vld [vmem:[#allocation10 + $0xc8] sm:$0xff]
    %v297 = vld [vmem:[#allocation10 + $0xd0] sm:$0xff]
    %v298 = vld [vmem:[#allocation10 + $0xd8] sm:$0xff]
    %v299 = vld [vmem:[#allocation10 + $0xe0] sm:$0xff]
    %v300 = vld [vmem:[#allocation10 + $0xe8] sm:$0xff]
    %v301 = vld [vmem:[#allocation10 + $0xf0] sm:$0xff]
    %v302 = vld [vmem:[#allocation10 + $0xf8] sm:$0xff]
    %v303 = vld [vmem:[#allocation12] sm:$0xff]
    %v304 = vld [vmem:[#allocation12 + $0x8] sm:$0xff]
    %v305 = vld [vmem:[#allocation12 + $0x10] sm:$0xff]
    %v306 = vld [vmem:[#allocation12 + $0x18] sm:$0xff]
    %v307 = vld [vmem:[#allocation12 + $0x20] sm:$0xff]
    %v308 = vld [vmem:[#allocation12 + $0x28] sm:$0xff]
    %v309 = vld [vmem:[#allocation12 + $0x30] sm:$0xff]
    %v310 = vld [vmem:[#allocation12 + $0x38] sm:$0xff]
    %v311 = vld [vmem:[#allocation12 + $0x40] sm:$0xff]
    %v312 = vld [vmem:[#allocation12 + $0x48] sm:$0xff]
    %v313 = vld [vmem:[#allocation12 + $0x50] sm:$0xff]
    %v314 = vld [vmem:[#allocation12 + $0x58] sm:$0xff]
    %v315 = vld [vmem:[#allocation12 + $0x60] sm:$0xff]
    %v316 = vld [vmem:[#allocation12 + $0x68] sm:$0xff]
    %v317 = vld [vmem:[#allocation12 + $0x70] sm:$0xff]
    %v318 = vld [vmem:[#allocation12 + $0x78] sm:$0xff]
    %v319 = vld [vmem:[#allocation12 + $0x80] sm:$0xff]
    %v320 = vld [vmem:[#allocation12 + $0x88] sm:$0xff]
    %v321 = vld [vmem:[#allocation12 + $0x90] sm:$0xff]
    %v322 = vld [vmem:[#allocation12 + $0x98] sm:$0xff]
    %v323 = vld [vmem:[#allocation12 + $0xa0] sm:$0xff]
    %v324 = vld [vmem:[#allocation12 + $0xa8] sm:$0xff]
    %v325 = vld [vmem:[#allocation12 + $0xb0] sm:$0xff]
    %v326 = vld [vmem:[#allocation12 + $0xb8] sm:$0xff]
    %v327 = vld [vmem:[#allocation12 + $0xc0] sm:$0xff]
    %v328 = vld [vmem:[#allocation12 + $0xc8] sm:$0xff]
    %v329 = vld [vmem:[#allocation12 + $0xd0] sm:$0xff]
    %v330 = vld [vmem:[#allocation12 + $0xd8] sm:$0xff]
    %v331 = vld [vmem:[#allocation12 + $0xe0] sm:$0xff]
    %v332 = vld [vmem:[#allocation12 + $0xe8] sm:$0xff]
    %v333 = vld [vmem:[#allocation12 + $0xf0] sm:$0xff]
    %v334 = vld [vmem:[#allocation12 + $0xf8] sm:$0xff]
    %v335 = vld [vmem:[#allocation13] sm:$0xff]
    %v336 = vld [vmem:[#allocation13 + $0x8] sm:$0xff]
    %v337 = vld [vmem:[#allocation13 + $0x10] sm:$0xff]
    %v338 = vld [vmem:[#allocation13 + $0x18] sm:$0xff]
    %v339 = vld [vmem:[#allocation13 + $0x20] sm:$0xff]
    %v340 = vld [vmem:[#allocation13 + $0x28] sm:$0xff]
    %v341 = vld [vmem:[#allocation13 + $0x30] sm:$0xff]
    %v342 = vld [vmem:[#allocation13 + $0x38] sm:$0xff]
    %v343 = vld [vmem:[#allocation13 + $0x40] sm:$0xff]
    %v344 = vld [vmem:[#allocation13 + $0x48] sm:$0xff]
    %v345 = vld [vmem:[#allocation13 + $0x50] sm:$0xff]
    %v346 = vld [vmem:[#allocation13 + $0x58] sm:$0xff]
    %v347 = vld [vmem:[#allocation13 + $0x60] sm:$0xff]
    %v348 = vld [vmem:[#allocation13 + $0x68] sm:$0xff]
    %v349 = vld [vmem:[#allocation13 + $0x70] sm:$0xff]
    %v350 = vld [vmem:[#allocation13 + $0x78] sm:$0xff]
    %v351 = vld [vmem:[#allocation13 + $0x80] sm:$0xff]
    %v352 = vld [vmem:[#allocation13 + $0x88] sm:$0xff]
    %v353 = vld [vmem:[#allocation13 + $0x90] sm:$0xff]
    %v354 = vld [vmem:[#allocation13 + $0x98] sm:$0xff]
    %v355 = vld [vmem:[#allocation13 + $0xa0] sm:$0xff]
    %v356 = vld [vmem:[#allocation13 + $0xa8] sm:$0xff]
    %v357 = vld [vmem:[#allocation13 + $0xb0] sm:$0xff]
    %v358 = vld [vmem:[#allocation13 + $0xb8] sm:$0xff]
    %v359 = vld [vmem:[#allocation13 + $0xc0] sm:$0xff]
    %v360 = vld [vmem:[#allocation13 + $0xc8] sm:$0xff]
    %v361 = vld [vmem:[#allocation13 + $0xd0] sm:$0xff]
    %v362 = vld [vmem:[#allocation13 + $0xd8] sm:$0xff]
    %v363 = vld [vmem:[#allocation13 + $0xe0] sm:$0xff]
    %v364 = vld [vmem:[#allocation13 + $0xe8] sm:$0xff]
    %v365 = vld [vmem:[#allocation13 + $0xf0] sm:$0xff]
    %v366 = vld [vmem:[#allocation13 + $0xf8] sm:$0xff]
    %v367 = vld [vmem:[%s8] sm:$0xf]
    %v368 = vld [vmem:[%s1] sm:$0x1]
    %v369 = vld [vmem:[#allocation7] sm:$0x1]
    %v370 = vld [vmem:[%s1 + $0x1] sm:$0x1]
    %v371 = vld [vmem:[#allocation7 + $0x1] sm:$0x1]
    %v372 = vld [vmem:[#allocation2] ss:$8 sm:$0xf]
    %v373 = vpack.c.bf16 %v368, %v368
    %v406 = vunpack.c.l.b16 %v271
    %v407 = vunpack.c.h.b16 %v271
    %v408 = vunpack.c.l.b16 %v272
    %v409 = vunpack.c.h.b16 %v272
    %v410 = vunpack.c.l.b16 %v273
    %v411 = vunpack.c.h.b16 %v273
    %v412 = vunpack.c.l.b16 %v274
    %v413 = vunpack.c.h.b16 %v274
    %v414 = vunpack.c.l.b16 %v275
    %v415 = vunpack.c.h.b16 %v275
    %v416 = vunpack.c.l.b16 %v276
    %v417 = vunpack.c.h.b16 %v276
    %v418 = vunpack.c.l.b16 %v277
    %v419 = vunpack.c.h.b16 %v277
    %v420 = vunpack.c.l.b16 %v278
    %v421 = vunpack.c.h.b16 %v278
    %v422 = vunpack.c.l.b16 %v279
    %v423 = vunpack.c.h.b16 %v279
    %v424 = vunpack.c.l.b16 %v280
    %v425 = vunpack.c.h.b16 %v280
    %v426 = vunpack.c.l.b16 %v281
    %v427 = vunpack.c.h.b16 %v281
    %v428 = vunpack.c.l.b16 %v282
    %v429 = vunpack.c.h.b16 %v282
    %v430 = vunpack.c.l.b16 %v283
    %v431 = vunpack.c.h.b16 %v283
    %v432 = vunpack.c.l.b16 %v284
    %v433 = vunpack.c.h.b16 %v284
    %v434 = vunpack.c.l.b16 %v285
    %v435 = vunpack.c.h.b16 %v285
    %v436 = vunpack.c.l.b16 %v286
    %v437 = vunpack.c.h.b16 %v286
    %v438 = vunpack.c.l.b16 %v287
    %v439 = vunpack.c.h.b16 %v287
    %v440 = vunpack.c.l.b16 %v288
    %v441 = vunpack.c.h.b16 %v288
    %v442 = vunpack.c.l.b16 %v289
    %v443 = vunpack.c.h.b16 %v289
    %v444 = vunpack.c.l.b16 %v290
    %v445 = vunpack.c.h.b16 %v290
    %v446 = vunpack.c.l.b16 %v291
    %v447 = vunpack.c.h.b16 %v291
    %v448 = vunpack.c.l.b16 %v292
    %v449 = vunpack.c.h.b16 %v292
    %v450 = vunpack.c.l.b16 %v293
    %v451 = vunpack.c.h.b16 %v293
    %v452 = vunpack.c.l.b16 %v294
    %v453 = vunpack.c.h.b16 %v294
    %v454 = vunpack.c.l.b16 %v295
    %v455 = vunpack.c.h.b16 %v295
    %v456 = vunpack.c.l.b16 %v296
    %v457 = vunpack.c.h.b16 %v296
    %v458 = vunpack.c.l.b16 %v297
    %v459 = vunpack.c.h.b16 %v297
    %v460 = vunpack.c.l.b16 %v298
    %v461 = vunpack.c.h.b16 %v298
    %v462 = vunpack.c.l.b16 %v299
    %v463 = vunpack.c.h.b16 %v299
    %v464 = vunpack.c.l.b16 %v300
    %v465 = vunpack.c.h.b16 %v300
    %v466 = vunpack.c.l.b16 %v301
    %v467 = vunpack.c.h.b16 %v301
    %v468 = vunpack.c.l.b16 %v302
    %v469 = vunpack.c.h.b16 %v302
    %v470 = vpack.c.b16 %v410, %v406
    %v471 = vpack.c.b16 %v411, %v407
    %v472 = vpack.c.b16 %v412, %v408
    %v473 = vpack.c.b16 %v413, %v409
    %v474 = vpack.c.b16 %v418, %v414
    %v475 = vpack.c.b16 %v419, %v415
    %v476 = vpack.c.b16 %v420, %v416
    %v477 = vpack.c.b16 %v421, %v417
    %v478 = vpack.c.b16 %v426, %v422
    %v479 = vpack.c.b16 %v427, %v423
    %v480 = vpack.c.b16 %v428, %v424
    %v481 = vpack.c.b16 %v429, %v425
    %v482 = vpack.c.b16 %v434, %v430
    %v483 = vpack.c.b16 %v435, %v431
    %v484 = vpack.c.b16 %v436, %v432
    %v485 = vpack.c.b16 %v437, %v433
    %v486 = vpack.c.b16 %v442, %v438
    %v487 = vpack.c.b16 %v443, %v439
    %v488 = vpack.c.b16 %v444, %v440
    %v489 = vpack.c.b16 %v445, %v441
    %v490 = vpack.c.b16 %v450, %v446
    %v491 = vpack.c.b16 %v451, %v447
    %v492 = vpack.c.b16 %v452, %v448
    %v493 = vpack.c.b16 %v453, %v449
    %v494 = vpack.c.b16 %v458, %v454
    %v495 = vpack.c.b16 %v459, %v455
    %v496 = vpack.c.b16 %v460, %v456
    %v497 = vpack.c.b16 %v461, %v457
    %v498 = vpack.c.b16 %v466, %v462
    %v499 = vpack.c.b16 %v467, %v463
    %v500 = vpack.c.b16 %v468, %v464
    %v501 = vpack.c.b16 %v469, %v465
    %534 = vmatprep.subr.bf16.mxu0 %v471
    %535 = vmatpush1.bf16.msra.mxu0 %v470
    %536 = vmatprep.subr.bf16.mxu0 %v475
    %537 = vmatpush1.bf16.msra.mxu0 %v474
    %538 = vmatprep.subr.bf16.mxu0 %v479
    %539 = vmatpush1.bf16.msra.mxu0 %v478
    %540 = vmatprep.subr.bf16.mxu0 %v483
    %541 = vmatpush1.bf16.msra.mxu0 %v482
    %542 = vmatprep.subr.bf16.mxu0 %v487
    %543 = vmatpush1.bf16.msra.mxu0 %v486
    %544 = vmatprep.subr.bf16.mxu0 %v491
    %545 = vmatpush1.bf16.msra.mxu0 %v490
    %546 = vmatprep.subr.bf16.mxu0 %v495
    %547 = vmatpush1.bf16.msra.mxu0 %v494
    %548 = vmatprep.subr.bf16.mxu0 %v499
    %549 = vmatpush1.bf16.msra.mxu0 %v498
    %550 = vmatprep.subr.bf16.mxu0 0
    %551 = vmatpush1.bf16.msra.mxu0 0
    %552 = vmatprep.subr.bf16.mxu0 0
    %553 = vmatpush1.bf16.msra.mxu0 0
    %554 = vmatprep.subr.bf16.mxu0 0
    %555 = vmatpush1.bf16.msra.mxu0 0
    %556 = vmatprep.subr.bf16.mxu0 0
    %557 = vmatpush1.bf16.msra.mxu0 0
    %558 = vmatprep.subr.bf16.mxu0 0
    %559 = vmatpush1.bf16.msra.mxu0 0
    %560 = vmatprep.subr.bf16.mxu0 0
    %561 = vmatpush1.bf16.msra.mxu0 0
    %562 = vmatprep.subr.bf16.mxu0 0
    %563 = vmatpush1.bf16.msra.mxu0 0
    %564 = vmatprep.subr.bf16.mxu0 0
    %565 = vmatpush1.bf16.msra.mxu0 0
    %566 = vmatprep.mubr.bf16.mxu0 0
    %567 = vmatmul.mubr.bf16.gmra.mrb[0].mxu0 %v373
    %v568 = vpop.f32.mrb[0].mxu0
    %v569 = vadd.f32 0.0, %v568
    %v570 = vpop.f32.mrb[0].mxu0
    %v571 = vadd.f32 0.0, %v570
    %v572 = vpop.f32.mrb[0].mxu0
    %v573 = vpop.f32.mrb[0].mxu0
    %574 = vdwg.mxu0
    %575 = vmatprep.subr.bf16.mxu0 %v473
    %576 = vmatpush1.bf16.msra.mxu0 %v472
    %577 = vmatprep.subr.bf16.mxu0 %v477
    %578 = vmatpush1.bf16.msra.mxu0 %v476
    %579 = vmatprep.subr.bf16.mxu0 %v481
    %580 = vmatpush1.bf16.msra.mxu0 %v480
    %581 = vmatprep.subr.bf16.mxu0 %v485
    %582 = vmatpush1.bf16.msra.mxu0 %v484
    %583 = vmatprep.subr.bf16.mxu0 %v489
    %584 = vmatpush1.bf16.msra.mxu0 %v488
    %585 = vmatprep.subr.bf16.mxu0 %v493
    %586 = vmatpush1.bf16.msra.mxu0 %v492
    %587 = vmatprep.subr.bf16.mxu0 %v497
    %588 = vmatpush1.bf16.msra.mxu0 %v496
    %589 = vmatprep.subr.bf16.mxu0 %v501
    %590 = vmatpush1.bf16.msra.mxu0 %v500
    %591 = vmatprep.subr.bf16.mxu0 0
    %592 = vmatpush1.bf16.msra.mxu0 0
    %593 = vmatprep.subr.bf16.mxu0 0
    %594 = vmatpush1.bf16.msra.mxu0 0
    %595 = vmatprep.subr.bf16.mxu0 0
    %596 = vmatpush1.bf16.msra.mxu0 0
    %597 = vmatprep.subr.bf16.mxu0 0
    %598 = vmatpush1.bf16.msra.mxu0 0
    %599 = vmatprep.subr.bf16.mxu0 0
    %600 = vmatpush1.bf16.msra.mxu0 0
    %601 = vmatprep.subr.bf16.mxu0 0
    %602 = vmatpush1.bf16.msra.mxu0 0
    %603 = vmatprep.subr.bf16.mxu0 0
    %604 = vmatpush1.bf16.msra.mxu0 0
    %605 = vmatprep.subr.bf16.mxu0 0
    %606 = vmatpush1.bf16.msra.mxu0 0
    %607 = vmatprep.mubr.bf16.mxu0 0
    %608 = vmatmul.mubr.bf16.gmra.mrb[0].mxu0 %v373
    %v609 = vpop.f32.mrb[0].mxu0
    %v610 = vadd.f32 0.0, %v609
    %v611 = vpop.f32.mrb[0].mxu0
    %v612 = vadd.f32 0.0, %v611
    %v613 = vpop.f32.mrb[0].mxu0
    %v614 = vpop.f32.mrb[0].mxu0
    %615 = vdwg.mxu0
    %v620 = vcombine.low %v569, %v571
    %v621 = vcombine.low %v610, %v612
    %v623 = vunpack.c.l.s4 1966171168
    %v624 = vunpack.c.0.s8 %v623
    %v625 = vlaneseq
    %v626 = vshrl.u32 %v625, 7
    %v627 = vsub.s32 %v624, %v626
    %v628 = vrot.slane %v620, %v627
    %v630 = vunpack.c.l.s4 1966171168
    %v631 = vunpack.c.0.s8 %v630
    %v632 = vlaneseq
    %v633 = vshrl.u32 %v632, 7
    %v634 = vsub.s32 %v631, %v633
    %v635 = vrot.slane %v621, %v634
    %v636 = vcombine.low %v628, %v635
    %v638 = vunpack.c.l.s4 1966171168
    %v639 = vunpack.c.0.s8 %v638
    %v640 = vlaneseq
    %v641 = vshrl.u32 %v640, 7
    %v642 = vsub.s32 %v639, %v641
    %v643 = vrot.slane %v636, %v642
    %v645 = vadd.f32 %v372, %v643
    %v646 = vxor.u32 %v645, 2147483648
    %v647 = vmul.f32 %v646, 1.442695
    %v648 = vpow.pop %v647
    %v649 = vadd.f32 %v648, 1.0
    %v650 = vrcp.pop %v649
    %v651 = vmul.f32 1.0, %v650
    %v653 = vrot.slane %v645, 3
    %v655 = vtanh.pop %v653
    %v657 = vrot.slane %v651, 1
    %v659 = vmul.f32 %v657, %v369
    %v660 = vmul.f32 %v651, %v655
    %v661 = vadd.f32 %v659, %v660
    %v662 = vtanh.pop %v661
    %v663 = vrot.slane %v651, 2
    %v665 = vmul.f32 %v663, %v662
    %v666 = vpack.c.bf16 %v665, %v665
    %v667 = vpack.c.bf16 %v370, %v370
    %v700 = vunpack.c.l.b16 %v335
    %v701 = vunpack.c.h.b16 %v335
    %v702 = vunpack.c.l.b16 %v336
    %v703 = vunpack.c.h.b16 %v336
    %v704 = vunpack.c.l.b16 %v337
    %v705 = vunpack.c.h.b16 %v337
    %v706 = vunpack.c.l.b16 %v338
    %v707 = vunpack.c.h.b16 %v338
    %v708 = vunpack.c.l.b16 %v339
    %v709 = vunpack.c.h.b16 %v339
    %v710 = vunpack.c.l.b16 %v340
    %v711 = vunpack.c.h.b16 %v340
    %v712 = vunpack.c.l.b16 %v341
    %v713 = vunpack.c.h.b16 %v341
    %v714 = vunpack.c.l.b16 %v342
    %v715 = vunpack.c.h.b16 %v342
    %v716 = vunpack.c.l.b16 %v343
    %v717 = vunpack.c.h.b16 %v343
    %v718 = vunpack.c.l.b16 %v344
    %v719 = vunpack.c.h.b16 %v344
    %v720 = vunpack.c.l.b16 %v345
    %v721 = vunpack.c.h.b16 %v345
    %v722 = vunpack.c.l.b16 %v346
    %v723 = vunpack.c.h.b16 %v346
    %v724 = vunpack.c.l.b16 %v347
    %v725 = vunpack.c.h.b16 %v347
    %v726 = vunpack.c.l.b16 %v348
    %v727 = vunpack.c.h.b16 %v348
    %v728 = vunpack.c.l.b16 %v349
    %v729 = vunpack.c.h.b16 %v349
    %v730 = vunpack.c.l.b16 %v350
    %v731 = vunpack.c.h.b16 %v350
    %v732 = vunpack.c.l.b16 %v351
    %v733 = vunpack.c.h.b16 %v351
    %v734 = vunpack.c.l.b16 %v352
    %v735 = vunpack.c.h.b16 %v352
    %v736 = vunpack.c.l.b16 %v353
    %v737 = vunpack.c.h.b16 %v353
    %v738 = vunpack.c.l.b16 %v354
    %v739 = vunpack.c.h.b16 %v354
    %v740 = vunpack.c.l.b16 %v355
    %v741 = vunpack.c.h.b16 %v355
    %v742 = vunpack.c.l.b16 %v356
    %v743 = vunpack.c.h.b16 %v356
    %v744 = vunpack.c.l.b16 %v357
    %v745 = vunpack.c.h.b16 %v357
    %v746 = vunpack.c.l.b16 %v358
    %v747 = vunpack.c.h.b16 %v358
    %v748 = vunpack.c.l.b16 %v359
    %v749 = vunpack.c.h.b16 %v359
    %v750 = vunpack.c.l.b16 %v360
    %v751 = vunpack.c.h.b16 %v360
    %v752 = vunpack.c.l.b16 %v361
    %v753 = vunpack.c.h.b16 %v361
    %v754 = vunpack.c.l.b16 %v362
    %v755 = vunpack.c.h.b16 %v362
    %v756 = vunpack.c.l.b16 %v363
    %v757 = vunpack.c.h.b16 %v363
    %v758 = vunpack.c.l.b16 %v364
    %v759 = vunpack.c.h.b16 %v364
    %v760 = vunpack.c.l.b16 %v365
    %v761 = vunpack.c.h.b16 %v365
    %v762 = vunpack.c.l.b16 %v366
    %v763 = vunpack.c.h.b16 %v366
    %v764 = vpack.c.b16 %v704, %v700
    %v765 = vpack.c.b16 %v705, %v701
    %v766 = vpack.c.b16 %v706, %v702
    %v767 = vpack.c.b16 %v707, %v703
    %v768 = vpack.c.b16 %v712, %v708
    %v769 = vpack.c.b16 %v713, %v709
    %v770 = vpack.c.b16 %v714, %v710
    %v771 = vpack.c.b16 %v715, %v711
    %v772 = vpack.c.b16 %v720, %v716
    %v773 = vpack.c.b16 %v721, %v717
    %v774 = vpack.c.b16 %v722, %v718
    %v775 = vpack.c.b16 %v723, %v719
    %v776 = vpack.c.b16 %v728, %v724
    %v777 = vpack.c.b16 %v729, %v725
    %v778 = vpack.c.b16 %v730, %v726
    %v779 = vpack.c.b16 %v731, %v727
    %v780 = vpack.c.b16 %v736, %v732
    %v781 = vpack.c.b16 %v737, %v733
    %v782 = vpack.c.b16 %v738, %v734
    %v783 = vpack.c.b16 %v739, %v735
    %v784 = vpack.c.b16 %v744, %v740
    %v785 = vpack.c.b16 %v745, %v741
    %v786 = vpack.c.b16 %v746, %v742
    %v787 = vpack.c.b16 %v747, %v743
    %v788 = vpack.c.b16 %v752, %v748
    %v789 = vpack.c.b16 %v753, %v749
    %v790 = vpack.c.b16 %v754, %v750
    %v791 = vpack.c.b16 %v755, %v751
    %v792 = vpack.c.b16 %v760, %v756
    %v793 = vpack.c.b16 %v761, %v757
    %v794 = vpack.c.b16 %v762, %v758
    %v795 = vpack.c.b16 %v763, %v759
    %828 = vmatprep.subr.bf16.mxu0 %v765
    %829 = vmatpush1.bf16.msra.mxu0 %v764
    %830 = vmatprep.subr.bf16.mxu0 %v769
    %831 = vmatpush1.bf16.msra.mxu0 %v768
    %832 = vmatprep.subr.bf16.mxu0 %v773
    %833 = vmatpush1.bf16.msra.mxu0 %v772
    %834 = vmatprep.subr.bf16.mxu0 %v777
    %835 = vmatpush1.bf16.msra.mxu0 %v776
    %836 = vmatprep.subr.bf16.mxu0 %v781
    %837 = vmatpush1.bf16.msra.mxu0 %v780
    %838 = vmatprep.subr.bf16.mxu0 %v785
    %839 = vmatpush1.bf16.msra.mxu0 %v784
    %840 = vmatprep.subr.bf16.mxu0 %v789
    %841 = vmatpush1.bf16.msra.mxu0 %v788
    %842 = vmatprep.subr.bf16.mxu0 %v793
    %843 = vmatpush1.bf16.msra.mxu0 %v792
    %844 = vmatprep.subr.bf16.mxu0 0
    %845 = vmatpush1.bf16.msra.mxu0 0
    %846 = vmatprep.subr.bf16.mxu0 0
    %847 = vmatpush1.bf16.msra.mxu0 0
    %848 = vmatprep.subr.bf16.mxu0 0
    %849 = vmatpush1.bf16.msra.mxu0 0
    %850 = vmatprep.subr.bf16.mxu0 0
    %851 = vmatpush1.bf16.msra.mxu0 0
    %852 = vmatprep.subr.bf16.mxu0 0
    %853 = vmatpush1.bf16.msra.mxu0 0
    %854 = vmatprep.subr.bf16.mxu0 0
    %855 = vmatpush1.bf16.msra.mxu0 0
    %856 = vmatprep.subr.bf16.mxu0 0
    %857 = vmatpush1.bf16.msra.mxu0 0
    %858 = vmatprep.subr.bf16.mxu0 0
    %859 = vmatpush1.bf16.msra.mxu0 0
    %860 = vmatprep.mubr.bf16.mxu0 0
    %861 = vmatmul.mubr.bf16.gmra.mrb[0].mxu0 %v667
    %v862 = vpop.f32.mrb[0].mxu0
    %v863 = vadd.f32 0.0, %v862
    %v864 = vpop.f32.mrb[0].mxu0
    %v865 = vadd.f32 0.0, %v864
    %v866 = vpop.f32.mrb[0].mxu0
    %v867 = vpop.f32.mrb[0].mxu0
    %868 = vdwg.mxu0
    %869 = vmatprep.subr.bf16.mxu0 %v767
    %870 = vmatpush1.bf16.msra.mxu0 %v766
    %871 = vmatprep.subr.bf16.mxu0 %v771
    %872 = vmatpush1.bf16.msra.mxu0 %v770
    %873 = vmatprep.subr.bf16.mxu0 %v775
    %874 = vmatpush1.bf16.msra.mxu0 %v774
    %875 = vmatprep.subr.bf16.mxu0 %v779
    %876 = vmatpush1.bf16.msra.mxu0 %v778
    %877 = vmatprep.subr.bf16.mxu0 %v783
    %878 = vmatpush1.bf16.msra.mxu0 %v782
    %879 = vmatprep.subr.bf16.mxu0 %v787
    %880 = vmatpush1.bf16.msra.mxu0 %v786
    %881 = vmatprep.subr.bf16.mxu0 %v791
    %882 = vmatpush1.bf16.msra.mxu0 %v790
    %883 = vmatprep.subr.bf16.mxu0 %v795
    %884 = vmatpush1.bf16.msra.mxu0 %v794
    %885 = vmatprep.subr.bf16.mxu0 0
    %886 = vmatpush1.bf16.msra.mxu0 0
    %887 = vmatprep.subr.bf16.mxu0 0
    %888 = vmatpush1.bf16.msra.mxu0 0
    %889 = vmatprep.subr.bf16.mxu0 0
    %890 = vmatpush1.bf16.msra.mxu0 0
    %891 = vmatprep.subr.bf16.mxu0 0
    %892 = vmatpush1.bf16.msra.mxu0 0
    %893 = vmatprep.subr.bf16.mxu0 0
    %894 = vmatpush1.bf16.msra.mxu0 0
    %895 = vmatprep.subr.bf16.mxu0 0
    %896 = vmatpush1.bf16.msra.mxu0 0
    %897 = vmatprep.subr.bf16.mxu0 0
    %898 = vmatpush1.bf16.msra.mxu0 0
    %899 = vmatprep.subr.bf16.mxu0 0
    %900 = vmatpush1.bf16.msra.mxu0 0
    %901 = vmatprep.mubr.bf16.mxu0 0
    %902 = vmatmul.mubr.bf16.gmra.mrb[0].mxu0 %v667
    %v903 = vpop.f32.mrb[0].mxu0
    %v904 = vadd.f32 0.0, %v903
    %v905 = vpop.f32.mrb[0].mxu0
    %v906 = vadd.f32 0.0, %v905
    %v907 = vpop.f32.mrb[0].mxu0
    %v908 = vpop.f32.mrb[0].mxu0
    %909 = vdwg.mxu0
    %v942 = vunpack.c.l.b16 %v303
    %v943 = vunpack.c.h.b16 %v303
    %v944 = vunpack.c.l.b16 %v304
    %v945 = vunpack.c.h.b16 %v304
    %v946 = vunpack.c.l.b16 %v305
    %v947 = vunpack.c.h.b16 %v305
    %v948 = vunpack.c.l.b16 %v306
    %v949 = vunpack.c.h.b16 %v306
    %v950 = vunpack.c.l.b16 %v307
    %v951 = vunpack.c.h.b16 %v307
    %v952 = vunpack.c.l.b16 %v308
    %v953 = vunpack.c.h.b16 %v308
    %v954 = vunpack.c.l.b16 %v309
    %v955 = vunpack.c.h.b16 %v309
    %v956 = vunpack.c.l.b16 %v310
    %v957 = vunpack.c.h.b16 %v310
    %v958 = vunpack.c.l.b16 %v311
    %v959 = vunpack.c.h.b16 %v311
    %v960 = vunpack.c.l.b16 %v312
    %v961 = vunpack.c.h.b16 %v312
    %v962 = vunpack.c.l.b16 %v313
    %v963 = vunpack.c.h.b16 %v313
    %v964 = vunpack.c.l.b16 %v314
    %v965 = vunpack.c.h.b16 %v314
    %v966 = vunpack.c.l.b16 %v315
    %v967 = vunpack.c.h.b16 %v315
    %v968 = vunpack.c.l.b16 %v316
    %v969 = vunpack.c.h.b16 %v316
    %v970 = vunpack.c.l.b16 %v317
    %v971 = vunpack.c.h.b16 %v317
    %v972 = vunpack.c.l.b16 %v318
    %v973 = vunpack.c.h.b16 %v318
    %v974 = vunpack.c.l.b16 %v319
    %v975 = vunpack.c.h.b16 %v319
    %v976 = vunpack.c.l.b16 %v320
    %v977 = vunpack.c.h.b16 %v320
    %v978 = vunpack.c.l.b16 %v321
    %v979 = vunpack.c.h.b16 %v321
    %v980 = vunpack.c.l.b16 %v322
    %v981 = vunpack.c.h.b16 %v322
    %v982 = vunpack.c.l.b16 %v323
    %v983 = vunpack.c.h.b16 %v323
    %v984 = vunpack.c.l.b16 %v324
    %v985 = vunpack.c.h.b16 %v324
    %v986 = vunpack.c.l.b16 %v325
    %v987 = vunpack.c.h.b16 %v325
    %v988 = vunpack.c.l.b16 %v326
    %v989 = vunpack.c.h.b16 %v326
    %v990 = vunpack.c.l.b16 %v327
    %v991 = vunpack.c.h.b16 %v327
    %v992 = vunpack.c.l.b16 %v328
    %v993 = vunpack.c.h.b16 %v328
    %v994 = vunpack.c.l.b16 %v329
    %v995 = vunpack.c.h.b16 %v329
    %v996 = vunpack.c.l.b16 %v330
    %v997 = vunpack.c.h.b16 %v330
    %v998 = vunpack.c.l.b16 %v331
    %v999 = vunpack.c.h.b16 %v331
    %v1000 = vunpack.c.l.b16 %v332
    %v1001 = vunpack.c.h.b16 %v332
    %v1002 = vunpack.c.l.b16 %v333
    %v1003 = vunpack.c.h.b16 %v333
    %v1004 = vunpack.c.l.b16 %v334
    %v1005 = vunpack.c.h.b16 %v334
    %v1006 = vpack.c.b16 %v946, %v942
    %v1007 = vpack.c.b16 %v947, %v943
    %v1008 = vpack.c.b16 %v948, %v944
    %v1009 = vpack.c.b16 %v949, %v945
    %v1010 = vpack.c.b16 %v954, %v950
    %v1011 = vpack.c.b16 %v955, %v951
    %v1012 = vpack.c.b16 %v956, %v952
    %v1013 = vpack.c.b16 %v957, %v953
    %v1014 = vpack.c.b16 %v962, %v958
    %v1015 = vpack.c.b16 %v963, %v959
    %v1016 = vpack.c.b16 %v964, %v960
    %v1017 = vpack.c.b16 %v965, %v961
    %v1018 = vpack.c.b16 %v970, %v966
    %v1019 = vpack.c.b16 %v971, %v967
    %v1020 = vpack.c.b16 %v972, %v968
    %v1021 = vpack.c.b16 %v973, %v969
    %v1022 = vpack.c.b16 %v978, %v974
    %v1023 = vpack.c.b16 %v979, %v975
    %v1024 = vpack.c.b16 %v980, %v976
    %v1025 = vpack.c.b16 %v981, %v977
    %v1026 = vpack.c.b16 %v986, %v982
    %v1027 = vpack.c.b16 %v987, %v983
    %v1028 = vpack.c.b16 %v988, %v984
    %v1029 = vpack.c.b16 %v989, %v985
    %v1030 = vpack.c.b16 %v994, %v990
    %v1031 = vpack.c.b16 %v995, %v991
    %v1032 = vpack.c.b16 %v996, %v992
    %v1033 = vpack.c.b16 %v997, %v993
    %v1034 = vpack.c.b16 %v1002, %v998
    %v1035 = vpack.c.b16 %v1003, %v999
    %v1036 = vpack.c.b16 %v1004, %v1000
    %v1037 = vpack.c.b16 %v1005, %v1001
    %1070 = vmatprep.subr.bf16.mxu0 %v1007
    %1071 = vmatpush1.bf16.msra.mxu0 %v1006
    %1072 = vmatprep.subr.bf16.mxu0 %v1011
    %1073 = vmatpush1.bf16.msra.mxu0 %v1010
    %1074 = vmatprep.subr.bf16.mxu0 %v1015
    %1075 = vmatpush1.bf16.msra.mxu0 %v1014
    %1076 = vmatprep.subr.bf16.mxu0 %v1019
    %1077 = vmatpush1.bf16.msra.mxu0 %v1018
    %1078 = vmatprep.subr.bf16.mxu0 %v1023
    %1079 = vmatpush1.bf16.msra.mxu0 %v1022
    %1080 = vmatprep.subr.bf16.mxu0 %v1027
    %1081 = vmatpush1.bf16.msra.mxu0 %v1026
    %1082 = vmatprep.subr.bf16.mxu0 %v1031
    %1083 = vmatpush1.bf16.msra.mxu0 %v1030
    %1084 = vmatprep.subr.bf16.mxu0 %v1035
    %1085 = vmatpush1.bf16.msra.mxu0 %v1034
    %1086 = vmatprep.subr.bf16.mxu0 0
    %1087 = vmatpush1.bf16.msra.mxu0 0
    %1088 = vmatprep.subr.bf16.mxu0 0
    %1089 = vmatpush1.bf16.msra.mxu0 0
    %1090 = vmatprep.subr.bf16.mxu0 0
    %1091 = vmatpush1.bf16.msra.mxu0 0
    %1092 = vmatprep.subr.bf16.mxu0 0
    %1093 = vmatpush1.bf16.msra.mxu0 0
    %1094 = vmatprep.subr.bf16.mxu0 0
    %1095 = vmatpush1.bf16.msra.mxu0 0
    %1096 = vmatprep.subr.bf16.mxu0 0
    %1097 = vmatpush1.bf16.msra.mxu0 0
    %1098 = vmatprep.subr.bf16.mxu0 0
    %1099 = vmatpush1.bf16.msra.mxu0 0
    %1100 = vmatprep.subr.bf16.mxu0 0
    %1101 = vmatpush1.bf16.msra.mxu0 0
    %1102 = vmatprep.mubr.bf16.mxu0 0
    %1103 = vmatmul.mubr.bf16.gmra.mrb[0].mxu0 %v666
    %v1104 = vpop.f32.mrb[0].mxu0
    %v1105 = vadd.f32 %v863, %v1104
    %v1106 = vpop.f32.mrb[0].mxu0
    %v1107 = vadd.f32 %v865, %v1106
    %v1108 = vpop.f32.mrb[0].mxu0
    %v1109 = vpop.f32.mrb[0].mxu0
    %1110 = vdwg.mxu0
    %1111 = vmatprep.subr.bf16.mxu0 %v1009
    %1112 = vmatpush1.bf16.msra.mxu0 %v1008
    %1113 = vmatprep.subr.bf16.mxu0 %v1013
    %1114 = vmatpush1.bf16.msra.mxu0 %v1012
    %1115 = vmatprep.subr.bf16.mxu0 %v1017
    %1116 = vmatpush1.bf16.msra.mxu0 %v1016
    %1117 = vmatprep.subr.bf16.mxu0 %v1021
    %1118 = vmatpush1.bf16.msra.mxu0 %v1020
    %1119 = vmatprep.subr.bf16.mxu0 %v1025
    %1120 = vmatpush1.bf16.msra.mxu0 %v1024
    %1121 = vmatprep.subr.bf16.mxu0 %v1029
    %1122 = vmatpush1.bf16.msra.mxu0 %v1028
    %1123 = vmatprep.subr.bf16.mxu0 %v1033
    %1124 = vmatpush1.bf16.msra.mxu0 %v1032
    %1125 = vmatprep.subr.bf16.mxu0 %v1037
    %1126 = vmatpush1.bf16.msra.mxu0 %v1036
    %1127 = vmatprep.subr.bf16.mxu0 0
    %1128 = vmatpush1.bf16.msra.mxu0 0
    %1129 = vmatprep.subr.bf16.mxu0 0
    %1130 = vmatpush1.bf16.msra.mxu0 0
    %1131 = vmatprep.subr.bf16.mxu0 0
    %1132 = vmatpush1.bf16.msra.mxu0 0
    %1133 = vmatprep.subr.bf16.mxu0 0
    %1134 = vmatpush1.bf16.msra.mxu0 0
    %1135 = vmatprep.subr.bf16.mxu0 0
    %1136 = vmatpush1.bf16.msra.mxu0 0
    %1137 = vmatprep.subr.bf16.mxu0 0
    %1138 = vmatpush1.bf16.msra.mxu0 0
    %1139 = vmatprep.subr.bf16.mxu0 0
    %1140 = vmatpush1.bf16.msra.mxu0 0
    %1141 = vmatprep.subr.bf16.mxu0 0
    %1142 = vmatpush1.bf16.msra.mxu0 0
    %1143 = vmatprep.mubr.bf16.mxu0 0
    %1144 = vmatmul.mubr.bf16.gmra.mrb[0].mxu0 %v666
    %v1145 = vpop.f32.mrb[0].mxu0
    %v1146 = vadd.f32 %v904, %v1145
    %v1147 = vpop.f32.mrb[0].mxu0
    %v1148 = vadd.f32 %v906, %v1147
    %v1149 = vpop.f32.mrb[0].mxu0
    %v1150 = vpop.f32.mrb[0].mxu0
    %1151 = vdwg.mxu0
    %v1153 = vlaneseq
    %v1154 = vshrl.u32 %v1153, 7
    %v1155 = vsub.s32 0, %v1154
    %v1156 = vrot.slane %v367, %v1155
    %v1157 = vlaneseq
    %v1158 = vshrl.u32 %v1157, 7
    %v1159 = vsub.s32 1, %v1158
    %v1160 = vrot.slane %v367, %v1159
    %v1161 = vlaneseq
    %v1162 = vshrl.u32 %v1161, 7
    %v1163 = vsub.s32 2, %v1162
    %v1164 = vrot.slane %v367, %v1163
    %v1165 = vlaneseq
    %v1166 = vshrl.u32 %v1165, 7
    %v1167 = vsub.s32 3, %v1166
    %v1168 = vrot.slane %v367, %v1167
    %v1173 = vadd.f32 %v1105, %v1156
    %v1174 = vadd.f32 %v1107, %v1160
    %v1175 = vadd.f32 %v1146, %v1164
    %v1176 = vadd.f32 %v1148, %v1168
    %v1177 = vxor.u32 %v1173, 2147483648
    %v1178 = vxor.u32 %v1174, 2147483648
    %v1179 = vxor.u32 %v1175, 2147483648
    %v1180 = vmul.f32 %v1177, 1.442695
    %v1181 = vpow.pop %v1180
    %v1182 = vmul.f32 %v1178, 1.442695
    %v1183 = vpow.pop %v1182
    %v1184 = vmul.f32 %v1179, 1.442695
    %v1185 = vpow.pop %v1184
    %v1186 = vadd.f32 %v1181, 1.0
    %v1187 = vadd.f32 %v1183, 1.0
    %v1188 = vadd.f32 %v1185, 1.0
    %v1189 = vrcp.pop %v1186
    %v1190 = vmul.f32 1.0, %v1189
    %v1191 = vrcp.pop %v1187
    %v1192 = vmul.f32 1.0, %v1191
    %v1193 = vrcp.pop %v1188
    %v1194 = vmul.f32 1.0, %v1193
    %v1195 = vtanh.pop %v1176
    %v1196 = vmul.f32 %v1192, %v371
    %v1197 = vmul.f32 %v1190, %v1195
    %v1198 = vadd.f32 %v1196, %v1197
    %v1199 = vtanh.pop %v1198
    %v1200 = vmul.f32 %v1194, %v1199
    %1201 = vst [vmem:[#allocation3] sm:$0x1] %v1200
    %s1202 = scalar_lea.vmem [#allocation2], 1
    %v1203 = vld [vmem:[%s1202] ss:$8 sm:$0xf]
    %1204 = vmatprep.subr.bf16.mxu0 %v471
    %1205 = vmatpush1.bf16.msra.mxu0 %v470
    %1206 = vmatprep.subr.bf16.mxu0 %v475
    %1207 = vmatpush1.bf16.msra.mxu0 %v474
    %1208 = vmatprep.subr.bf16.mxu0 %v479
    %1209 = vmatpush1.bf16.msra.mxu0 %v478
    %1210 = vmatprep.subr.bf16.mxu0 %v483
    %1211 = vmatpush1.bf16.msra.mxu0 %v482
    %1212 = vmatprep.subr.bf16.mxu0 %v487
    %1213 = vmatpush1.bf16.msra.mxu0 %v486
    %1214 = vmatprep.subr.bf16.mxu0 %v491
    %1215 = vmatpush1.bf16.msra.mxu0 %v490
    %1216 = vmatprep.subr.bf16.mxu0 %v495
    %1217 = vmatpush1.bf16.msra.mxu0 %v494
    %1218 = vmatprep.subr.bf16.mxu0 %v499
    %1219 = vmatpush1.bf16.msra.mxu0 %v498
    %1220 = vmatprep.subr.bf16.mxu0 0
    %1221 = vmatpush1.bf16.msra.mxu0 0
    %1222 = vmatprep.subr.bf16.mxu0 0
    %1223 = vmatpush1.bf16.msra.mxu0 0
    %1224 = vmatprep.subr.bf16.mxu0 0
    %1225 = vmatpush1.bf16.msra.mxu0 0
    %1226 = vmatprep.subr.bf16.mxu0 0
    %1227 = vmatpush1.bf16.msra.mxu0 0
    %1228 = vmatprep.subr.bf16.mxu0 0
    %1229 = vmatpush1.bf16.msra.mxu0 0
    %1230 = vmatprep.subr.bf16.mxu0 0
    %1231 = vmatpush1.bf16.msra.mxu0 0
    %1232 = vmatprep.subr.bf16.mxu0 0
    %1233 = vmatpush1.bf16.msra.mxu0 0
    %1234 = vmatprep.subr.bf16.mxu0 0
    %1235 = vmatpush1.bf16.msra.mxu0 0
    %1236 = vmatprep.mubr.bf16.mxu0 0
    %1237 = vmatmul.mubr.bf16.gmra.mrb[0].mxu0 %v666
    %v1238 = vpop.f32.mrb[0].mxu0
    %v1239 = vadd.f32 0.0, %v1238
    %v1240 = vpop.f32.mrb[0].mxu0
    %v1241 = vadd.f32 0.0, %v1240
    %v1242 = vpop.f32.mrb[0].mxu0
    %v1243 = vpop.f32.mrb[0].mxu0
    %1244 = vdwg.mxu0
    %1245 = vmatprep.subr.bf16.mxu0 %v473
    %1246 = vmatpush1.bf16.msra.mxu0 %v472
    %1247 = vmatprep.subr.bf16.mxu0 %v477
    %1248 = vmatpush1.bf16.msra.mxu0 %v476
    %1249 = vmatprep.subr.bf16.mxu0 %v481
    %1250 = vmatpush1.bf16.msra.mxu0 %v480
    %1251 = vmatprep.subr.bf16.mxu0 %v485
    %1252 = vmatpush1.bf16.msra.mxu0 %v484
    %1253 = vmatprep.subr.bf16.mxu0 %v489
    %1254 = vmatpush1.bf16.msra.mxu0 %v488
    %1255 = vmatprep.subr.bf16.mxu0 %v493
    %1256 = vmatpush1.bf16.msra.mxu0 %v492
    %1257 = vmatprep.subr.bf16.mxu0 %v497
    %1258 = vmatpush1.bf16.msra.mxu0 %v496
    %1259 = vmatprep.subr.bf16.mxu0 %v501
    %1260 = vmatpush1.bf16.msra.mxu0 %v500
    %1261 = vmatprep.subr.bf16.mxu0 0
    %1262 = vmatpush1.bf16.msra.mxu0 0
    %1263 = vmatprep.subr.bf16.mxu0 0
    %1264 = vmatpush1.bf16.msra.mxu0 0
    %1265 = vmatprep.subr.bf16.mxu0 0
    %1266 = vmatpush1.bf16.msra.mxu0 0
    %1267 = vmatprep.subr.bf16.mxu0 0
    %1268 = vmatpush1.bf16.msra.mxu0 0
    %1269 = vmatprep.subr.bf16.mxu0 0
    %1270 = vmatpush1.bf16.msra.mxu0 0
    %1271 = vmatprep.subr.bf16.mxu0 0
    %1272 = vmatpush1.bf16.msra.mxu0 0
    %1273 = vmatprep.subr.bf16.mxu0 0
    %1274 = vmatpush1.bf16.msra.mxu0 0
    %1275 = vmatprep.subr.bf16.mxu0 0
    %1276 = vmatpush1.bf16.msra.mxu0 0
    %1277 = vmatprep.mubr.bf16.mxu0 0
    %1278 = vmatmul.mubr.bf16.gmra.mrb[0].mxu0 %v666
    %v1279 = vpop.f32.mrb[0].mxu0
    %v1280 = vadd.f32 0.0, %v1279
    %v1281 = vpop.f32.mrb[0].mxu0
    %v1282 = vadd.f32 0.0, %v1281
    %v1283 = vpop.f32.mrb[0].mxu0
    %v1284 = vpop.f32.mrb[0].mxu0
    %1285 = vdwg.mxu0
    %v1290 = vcombine.low %v1239, %v1241
    %v1291 = vcombine.low %v1280, %v1282
    %v1293 = vunpack.c.l.s4 1966171168
    %v1294 = vunpack.c.0.s8 %v1293
    %v1295 = vlaneseq
    %v1296 = vshrl.u32 %v1295, 7
    %v1297 = vsub.s32 %v1294, %v1296
    %v1298 = vrot.slane %v1290, %v1297
    %v1300 = vunpack.c.l.s4 1966171168
    %v1301 = vunpack.c.0.s8 %v1300
    %v1302 = vlaneseq
    %v1303 = vshrl.u32 %v1302, 7
    %v1304 = vsub.s32 %v1301, %v1303
    %v1305 = vrot.slane %v1291, %v1304
    %v1306 = vcombine.low %v1298, %v1305
    %v1308 = vunpack.c.l.s4 1966171168
    %v1309 = vunpack.c.0.s8 %v1308
    %v1310 = vlaneseq
    %v1311 = vshrl.u32 %v1310, 7
    %v1312 = vsub.s32 %v1309, %v1311
    %v1313 = vrot.slane %v1306, %v1312
    %v1315 = vadd.f32 %v1203, %v1313
    %v1316 = vxor.u32 %v1315, 2147483648
    %v1317 = vmul.f32 %v1316, 1.442695
    %v1318 = vpow.pop %v1317
    %v1319 = vadd.f32 %v1318, 1.0
    %v1320 = vrcp.pop %v1319
    %v1321 = vmul.f32 1.0, %v1320
    %v1323 = vrot.slane %v1315, 3
    %v1325 = vtanh.pop %v1323
    %v1327 = vrot.slane %v1321, 1
    %v1329 = vmul.f32 %v1327, %v661
    %v1330 = vmul.f32 %v1321, %v1325
    %v1331 = vadd.f32 %v1329, %v1330
    %v1332 = vtanh.pop %v1331
    %v1333 = vrot.slane %v1321, 2
    %v1335 = vmul.f32 %v1333, %v1332
    %v1336 = vpack.c.bf16 %v1335, %v1335
    %v1337 = vpack.c.bf16 %v1200, %v1200
    %1338 = vmatprep.subr.bf16.mxu0 %v765
    %1339 = vmatpush1.bf16.msra.mxu0 %v764
    %1340 = vmatprep.subr.bf16.mxu0 %v769
    %1341 = vmatpush1.bf16.msra.mxu0 %v768
    %1342 = vmatprep.subr.bf16.mxu0 %v773
    %1343 = vmatpush1.bf16.msra.mxu0 %v772
    %1344 = vmatprep.subr.bf16.mxu0 %v777
    %1345 = vmatpush1.bf16.msra.mxu0 %v776
    %1346 = vmatprep.subr.bf16.mxu0 %v781
    %1347 = vmatpush1.bf16.msra.mxu0 %v780
    %1348 = vmatprep.subr.bf16.mxu0 %v785
    %1349 = vmatpush1.bf16.msra.mxu0 %v784
    %1350 = vmatprep.subr.bf16.mxu0 %v789
    %1351 = vmatpush1.bf16.msra.mxu0 %v788
    %1352 = vmatprep.subr.bf16.mxu0 %v793
    %1353 = vmatpush1.bf16.msra.mxu0 %v792
    %1354 = vmatprep.subr.bf16.mxu0 0
    %1355 = vmatpush1.bf16.msra.mxu0 0
    %1356 = vmatprep.subr.bf16.mxu0 0
    %1357 = vmatpush1.bf16.msra.mxu0 0
    %1358 = vmatprep.subr.bf16.mxu0 0
    %1359 = vmatpush1.bf16.msra.mxu0 0
    %1360 = vmatprep.subr.bf16.mxu0 0
    %1361 = vmatpush1.bf16.msra.mxu0 0
    %1362 = vmatprep.subr.bf16.mxu0 0
    %1363 = vmatpush1.bf16.msra.mxu0 0
    %1364 = vmatprep.subr.bf16.mxu0 0
    %1365 = vmatpush1.bf16.msra.mxu0 0
    %1366 = vmatprep.subr.bf16.mxu0 0
    %1367 = vmatpush1.bf16.msra.mxu0 0
    %1368 = vmatprep.subr.bf16.mxu0 0
    %1369 = vmatpush1.bf16.msra.mxu0 0
    %1370 = vmatprep.mubr.bf16.mxu0 0
    %1371 = vmatmul.mubr.bf16.gmra.mrb[0].mxu0 %v1337
    %v1372 = vpop.f32.mrb[0].mxu0
    %v1373 = vadd.f32 0.0, %v1372
    %v1374 = vpop.f32.mrb[0].mxu0
    %v1375 = vadd.f32 0.0, %v1374
    %v1376 = vpop.f32.mrb[0].mxu0
    %v1377 = vpop.f32.mrb[0].mxu0
    %1378 = vdwg.mxu0
    %1379 = vmatprep.subr.bf16.mxu0 %v767
    %1380 = vmatpush1.bf16.msra.mxu0 %v766
    %1381 = vmatprep.subr.bf16.mxu0 %v771
    %1382 = vmatpush1.bf16.msra.mxu0 %v770
    %1383 = vmatprep.subr.bf16.mxu0 %v775
    %1384 = vmatpush1.bf16.msra.mxu0 %v774
    %1385 = vmatprep.subr.bf16.mxu0 %v779
    %1386 = vmatpush1.bf16.msra.mxu0 %v778
    %1387 = vmatprep.subr.bf16.mxu0 %v783
    %1388 = vmatpush1.bf16.msra.mxu0 %v782
    %1389 = vmatprep.subr.bf16.mxu0 %v787
    %1390 = vmatpush1.bf16.msra.mxu0 %v786
    %1391 = vmatprep.subr.bf16.mxu0 %v791
    %1392 = vmatpush1.bf16.msra.mxu0 %v790
    %1393 = vmatprep.subr.bf16.mxu0 %v795
    %1394 = vmatpush1.bf16.msra.mxu0 %v794
    %1395 = vmatprep.subr.bf16.mxu0 0
    %1396 = vmatpush1.bf16.msra.mxu0 0
    %1397 = vmatprep.subr.bf16.mxu0 0
    %1398 = vmatpush1.bf16.msra.mxu0 0
    %1399 = vmatprep.subr.bf16.mxu0 0
    %1400 = vmatpush1.bf16.msra.mxu0 0
    %1401 = vmatprep.subr.bf16.mxu0 0
    %1402 = vmatpush1.bf16.msra.mxu0 0
    %1403 = vmatprep.subr.bf16.mxu0 0
    %1404 = vmatpush1.bf16.msra.mxu0 0
    %1405 = vmatprep.subr.bf16.mxu0 0
    %1406 = vmatpush1.bf16.msra.mxu0 0
    %1407 = vmatprep.subr.bf16.mxu0 0
    %1408 = vmatpush1.bf16.msra.mxu0 0
    %1409 = vmatprep.subr.bf16.mxu0 0
    %1410 = vmatpush1.bf16.msra.mxu0 0
    %1411 = vmatprep.mubr.bf16.mxu0 0
    %1412 = vmatmul.mubr.bf16.gmra.mrb[0].mxu0 %v1337
    %v1413 = vpop.f32.mrb[0].mxu0
    %v1414 = vadd.f32 0.0, %v1413
    %v1415 = vpop.f32.mrb[0].mxu0
    %v1416 = vadd.f32 0.0, %v1415
    %v1417 = vpop.f32.mrb[0].mxu0
    %v1418 = vpop.f32.mrb[0].mxu0
    %1419 = vdwg.mxu0
    %1420 = vmatprep.subr.bf16.mxu0 %v1007
    %1421 = vmatpush1.bf16.msra.mxu0 %v1006
    %1422 = vmatprep.subr.bf16.mxu0 %v1011
    %1423 = vmatpush1.bf16.msra.mxu0 %v1010
    %1424 = vmatprep.subr.bf16.mxu0 %v1015
    %1425 = vmatpush1.bf16.msra.mxu0 %v1014
    %1426 = vmatprep.subr.bf16.mxu0 %v1019
    %1427 = vmatpush1.bf16.msra.mxu0 %v1018
    %1428 = vmatprep.subr.bf16.mxu0 %v1023
    %1429 = vmatpush1.bf16.msra.mxu0 %v1022
    %1430 = vmatprep.subr.bf16.mxu0 %v1027
    %1431 = vmatpush1.bf16.msra.mxu0 %v1026
    %1432 = vmatprep.subr.bf16.mxu0 %v1031
    %1433 = vmatpush1.bf16.msra.mxu0 %v1030
    %1434 = vmatprep.subr.bf16.mxu0 %v1035
    %1435 = vmatpush1.bf16.msra.mxu0 %v1034
    %1436 = vmatprep.subr.bf16.mxu0 0
    %1437 = vmatpush1.bf16.msra.mxu0 0
    %1438 = vmatprep.subr.bf16.mxu0 0
    %1439 = vmatpush1.bf16.msra.mxu0 0
    %1440 = vmatprep.subr.bf16.mxu0 0
    %1441 = vmatpush1.bf16.msra.mxu0 0
    %1442 = vmatprep.subr.bf16.mxu0 0
    %1443 = vmatpush1.bf16.msra.mxu0 0
    %1444 = vmatprep.subr.bf16.mxu0 0
    %1445 = vmatpush1.bf16.msra.mxu0 0
    %1446 = vmatprep.subr.bf16.mxu0 0
    %1447 = vmatpush1.bf16.msra.mxu0 0
    %1448 = vmatprep.subr.bf16.mxu0 0
    %1449 = vmatpush1.bf16.msra.mxu0 0
    %1450 = vmatprep.subr.bf16.mxu0 0
    %1451 = vmatpush1.bf16.msra.mxu0 0
    %1452 = vmatprep.mubr.bf16.mxu0 0
    %1453 = vmatmul.mubr.bf16.gmra.mrb[0].mxu0 %v1336
    %v1454 = vpop.f32.mrb[0].mxu0
    %v1455 = vadd.f32 %v1373, %v1454
    %v1456 = vpop.f32.mrb[0].mxu0
    %v1457 = vadd.f32 %v1375, %v1456
    %v1458 = vpop.f32.mrb[0].mxu0
    %v1459 = vpop.f32.mrb[0].mxu0
    %1460 = vdwg.mxu0
    %1461 = vmatprep.subr.bf16.mxu0 %v1009
    %1462 = vmatpush1.bf16.msra.mxu0 %v1008
    %1463 = vmatprep.subr.bf16.mxu0 %v1013
    %1464 = vmatpush1.bf16.msra.mxu0 %v1012
    %1465 = vmatprep.subr.bf16.mxu0 %v1017
    %1466 = vmatpush1.bf16.msra.mxu0 %v1016
    %1467 = vmatprep.subr.bf16.mxu0 %v1021
    %1468 = vmatpush1.bf16.msra.mxu0 %v1020
    %1469 = vmatprep.subr.bf16.mxu0 %v1025
    %1470 = vmatpush1.bf16.msra.mxu0 %v1024
    %1471 = vmatprep.subr.bf16.mxu0 %v1029
    %1472 = vmatpush1.bf16.msra.mxu0 %v1028
    %1473 = vmatprep.subr.bf16.mxu0 %v1033
    %1474 = vmatpush1.bf16.msra.mxu0 %v1032
    %1475 = vmatprep.subr.bf16.mxu0 %v1037
    %1476 = vmatpush1.bf16.msra.mxu0 %v1036
    %1477 = vmatprep.subr.bf16.mxu0 0
    %1478 = vmatpush1.bf16.msra.mxu0 0
    %1479 = vmatprep.subr.bf16.mxu0 0
    %1480 = vmatpush1.bf16.msra.mxu0 0
    %1481 = vmatprep.subr.bf16.mxu0 0
    %1482 = vmatpush1.bf16.msra.mxu0 0
    %1483 = vmatprep.subr.bf16.mxu0 0
    %1484 = vmatpush1.bf16.msra.mxu0 0
    %1485 = vmatprep.subr.bf16.mxu0 0
    %1486 = vmatpush1.bf16.msra.mxu0 0
    %1487 = vmatprep.subr.bf16.mxu0 0
    %1488 = vmatpush1.bf16.msra.mxu0 0
    %1489 = vmatprep.subr.bf16.mxu0 0
    %1490 = vmatpush1.bf16.msra.mxu0 0
    %1491 = vmatprep.subr.bf16.mxu0 0
    %1492 = vmatpush1.bf16.msra.mxu0 0
    %1493 = vmatprep.mubr.bf16.mxu0 0
    %1494 = vmatmul.mubr.bf16.gmra.mrb[0].mxu0 %v1336
    %v1495 = vpop.f32.mrb[0].mxu0
    %v1496 = vadd.f32 %v1414, %v1495
    %v1497 = vpop.f32.mrb[0].mxu0
    %v1498 = vadd.f32 %v1416, %v1497
    %v1499 = vpop.f32.mrb[0].mxu0
    %v1500 = vpop.f32.mrb[0].mxu0
    %1501 = vdwg.mxu0
    %v1502 = vadd.f32 %v1455, %v1156
    %v1503 = vadd.f32 %v1457, %v1160
    %v1504 = vadd.f32 %v1496, %v1164
    %v1505 = vadd.f32 %v1498, %v1168
    %v1506 = vxor.u32 %v1502, 2147483648
    %v1507 = vxor.u32 %v1503, 2147483648
    %v1508 = vxor.u32 %v1504, 2147483648
    %v1509 = vmul.f32 %v1506, 1.442695
    %v1510 = vpow.pop %v1509
    %v1511 = vmul.f32 %v1507, 1.442695
    %v1512 = vpow.pop %v1511
    %v1513 = vmul.f32 %v1508, 1.442695
    %v1514 = vpow.pop %v1513
    %v1515 = vadd.f32 %v1510, 1.0
    %v1516 = vadd.f32 %v1512, 1.0
    %v1517 = vadd.f32 %v1514, 1.0
    %v1518 = vrcp.pop %v1515
    %v1519 = vmul.f32 1.0, %v1518
    %v1520 = vrcp.pop %v1516
    %v1521 = vmul.f32 1.0, %v1520
    %v1522 = vrcp.pop %v1517
    %v1523 = vmul.f32 1.0, %v1522
    %v1524 = vtanh.pop %v1505
    %v1525 = vmul.f32 %v1521, %v1198
    %v1526 = vmul.f32 %v1519, %v1524
    %v1527 = vadd.f32 %v1525, %v1526
    %v1528 = vtanh.pop %v1527
    %v1529 = vmul.f32 %v1523, %v1528
    %1530 = vst [vmem:[#allocation3 + $0x1] sm:$0x1] %v1529
    %s1531 = scalar_lea.vmem [#allocation2], 2
    %v1532 = vld [vmem:[%s1531] ss:$8 sm:$0xf]
    %1533 = vmatprep.subr.bf16.mxu0 %v471
    %1534 = vmatpush1.bf16.msra.mxu0 %v470
    %1535 = vmatprep.subr.bf16.mxu0 %v475
    %1536 = vmatpush1.bf16.msra.mxu0 %v474
    %1537 = vmatprep.subr.bf16.mxu0 %v479
    %1538 = vmatpush1.bf16.msra.mxu0 %v478
    %1539 = vmatprep.subr.bf16.mxu0 %v483
    %1540 = vmatpush1.bf16.msra.mxu0 %v482
    %1541 = vmatprep.subr.bf16.mxu0 %v487
    %1542 = vmatpush1.bf16.msra.mxu0 %v486
    %1543 = vmatprep.subr.bf16.mxu0 %v491
    %1544 = vmatpush1.bf16.msra.mxu0 %v490
    %1545 = vmatprep.subr.bf16.mxu0 %v495
    %1546 = vmatpush1.bf16.msra.mxu0 %v494
    %1547 = vmatprep.subr.bf16.mxu0 %v499
    %1548 = vmatpush1.bf16.msra.mxu0 %v498
    %1549 = vmatprep.subr.bf16.mxu0 0
    %1550 = vmatpush1.bf16.msra.mxu0 0
    %1551 = vmatprep.subr.bf16.mxu0 0
    %1552 = vmatpush1.bf16.msra.mxu0 0
    %1553 = vmatprep.subr.bf16.mxu0 0
    %1554 = vmatpush1.bf16.msra.mxu0 0
    %1555 = vmatprep.subr.bf16.mxu0 0
    %1556 = vmatpush1.bf16.msra.mxu0 0
    %1557 = vmatprep.subr.bf16.mxu0 0
    %1558 = vmatpush1.bf16.msra.mxu0 0
    %1559 = vmatprep.subr.bf16.mxu0 0
    %1560 = vmatpush1.bf16.msra.mxu0 0
    %1561 = vmatprep.subr.bf16.mxu0 0
    %1562 = vmatpush1.bf16.msra.mxu0 0
    %1563 = vmatprep.subr.bf16.mxu0 0
    %1564 = vmatpush1.bf16.msra.mxu0 0
    %1565 = vmatprep.mubr.bf16.mxu0 0
    %1566 = vmatmul.mubr.bf16.gmra.mrb[0].mxu0 %v1336
    %v1567 = vpop.f32.mrb[0].mxu0
    %v1568 = vadd.f32 0.0, %v1567
    %v1569 = vpop.f32.mrb[0].mxu0
    %v1570 = vadd.f32 0.0, %v1569
    %v1571 = vpop.f32.mrb[0].mxu0
    %v1572 = vpop.f32.mrb[0].mxu0
    %1573 = vdwg.mxu0
    %1574 = vmatprep.subr.bf16.mxu0 %v473
    %1575 = vmatpush1.bf16.msra.mxu0 %v472
    %1576 = vmatprep.subr.bf16.mxu0 %v477
    %1577 = vmatpush1.bf16.msra.mxu0 %v476
    %1578 = vmatprep.subr.bf16.mxu0 %v481
    %1579 = vmatpush1.bf16.msra.mxu0 %v480
    %1580 = vmatprep.subr.bf16.mxu0 %v485
    %1581 = vmatpush1.bf16.msra.mxu0 %v484
    %1582 = vmatprep.subr.bf16.mxu0 %v489
    %1583 = vmatpush1.bf16.msra.mxu0 %v488
    %1584 = vmatprep.subr.bf16.mxu0 %v493
    %1585 = vmatpush1.bf16.msra.mxu0 %v492
    %1586 = vmatprep.subr.bf16.mxu0 %v497
    %1587 = vmatpush1.bf16.msra.mxu0 %v496
    %1588 = vmatprep.subr.bf16.mxu0 %v501
    %1589 = vmatpush1.bf16.msra.mxu0 %v500
    %1590 = vmatprep.subr.bf16.mxu0 0
    %1591 = vmatpush1.bf16.msra.mxu0 0
    %1592 = vmatprep.subr.bf16.mxu0 0
    %1593 = vmatpush1.bf16.msra.mxu0 0
    %1594 = vmatprep.subr.bf16.mxu0 0
    %1595 = vmatpush1.bf16.msra.mxu0 0
    %1596 = vmatprep.subr.bf16.mxu0 0
    %1597 = vmatpush1.bf16.msra.mxu0 0
    %1598 = vmatprep.subr.bf16.mxu0 0
    %1599 = vmatpush1.bf16.msra.mxu0 0
    %1600 = vmatprep.subr.bf16.mxu0 0
    %1601 = vmatpush1.bf16.msra.mxu0 0
    %1602 = vmatprep.subr.bf16.mxu0 0
    %1603 = vmatpush1.bf16.msra.mxu0 0
    %1604 = vmatprep.subr.bf16.mxu0 0
    %1605 = vmatpush1.bf16.msra.mxu0 0
    %1606 = vmatprep.mubr.bf16.mxu0 0
    %1607 = vmatmul.mubr.bf16.gmra.mrb[0].mxu0 %v1336
    %v1608 = vpop.f32.mrb[0].mxu0
    %v1609 = vadd.f32 0.0, %v1608
    %v1610 = vpop.f32.mrb[0].mxu0
    %v1611 = vadd.f32 0.0, %v1610
    %v1612 = vpop.f32.mrb[0].mxu0
    %v1613 = vpop.f32.mrb[0].mxu0
    %1614 = vdwg.mxu0
    %v1619 = vcombine.low %v1568, %v1570
    %v1620 = vcombine.low %v1609, %v1611
    %v1622 = vunpack.c.l.s4 1966171168
    %v1623 = vunpack.c.0.s8 %v1622
    %v1624 = vlaneseq
    %v1625 = vshrl.u32 %v1624, 7
    %v1626 = vsub.s32 %v1623, %v1625
    %v1627 = vrot.slane %v1619, %v1626
    %v1629 = vunpack.c.l.s4 1966171168
    %v1630 = vunpack.c.0.s8 %v1629
    %v1631 = vlaneseq
    %v1632 = vshrl.u32 %v1631, 7
    %v1633 = vsub.s32 %v1630, %v1632
    %v1634 = vrot.slane %v1620, %v1633
    %v1635 = vcombine.low %v1627, %v1634
    %v1637 = vunpack.c.l.s4 1966171168
    %v1638 = vunpack.c.0.s8 %v1637
    %v1639 = vlaneseq
    %v1640 = vshrl.u32 %v1639, 7
    %v1641 = vsub.s32 %v1638, %v1640
    %v1642 = vrot.slane %v1635, %v1641
    %v1644 = vadd.f32 %v1532, %v1642
    %v1645 = vxor.u32 %v1644, 2147483648
    %v1646 = vmul.f32 %v1645, 1.442695
    %v1647 = vpow.pop %v1646
    %v1648 = vadd.f32 %v1647, 1.0
    %v1649 = vrcp.pop %v1648
    %v1650 = vmul.f32 1.0, %v1649
    %v1652 = vrot.slane %v1644, 3
    %v1654 = vtanh.pop %v1652
    %v1656 = vrot.slane %v1650, 1
    %v1658 = vmul.f32 %v1656, %v1331
    %v1659 = vmul.f32 %v1650, %v1654
    %v1660 = vadd.f32 %v1658, %v1659
    %v1661 = vtanh.pop %v1660
    %v1662 = vrot.slane %v1650, 2
    %v1664 = vmul.f32 %v1662, %v1661
    %v1665 = vpack.c.bf16 %v1664, %v1664
    %v1666 = vpack.c.bf16 %v1529, %v1529
    %1667 = vmatprep.subr.bf16.mxu0 %v765
    %1668 = vmatpush1.bf16.msra.mxu0 %v764
    %1669 = vmatprep.subr.bf16.mxu0 %v769
    %1670 = vmatpush1.bf16.msra.mxu0 %v768
    %1671 = vmatprep.subr.bf16.mxu0 %v773
    %1672 = vmatpush1.bf16.msra.mxu0 %v772
    %1673 = vmatprep.subr.bf16.mxu0 %v777
    %1674 = vmatpush1.bf16.msra.mxu0 %v776
    %1675 = vmatprep.subr.bf16.mxu0 %v781
    %1676 = vmatpush1.bf16.msra.mxu0 %v780
    %1677 = vmatprep.subr.bf16.mxu0 %v785
    %1678 = vmatpush1.bf16.msra.mxu0 %v784
    %1679 = vmatprep.subr.bf16.mxu0 %v789
    %1680 = vmatpush1.bf16.msra.mxu0 %v788
    %1681 = vmatprep.subr.bf16.mxu0 %v793
    %1682 = vmatpush1.bf16.msra.mxu0 %v792
    %1683 = vmatprep.subr.bf16.mxu0 0
    %1684 = vmatpush1.bf16.msra.mxu0 0
    %1685 = vmatprep.subr.bf16.mxu0 0
    %1686 = vmatpush1.bf16.msra.mxu0 0
    %1687 = vmatprep.subr.bf16.mxu0 0
    %1688 = vmatpush1.bf16.msra.mxu0 0
    %1689 = vmatprep.subr.bf16.mxu0 0
    %1690 = vmatpush1.bf16.msra.mxu0 0
    %1691 = vmatprep.subr.bf16.mxu0 0
    %1692 = vmatpush1.bf16.msra.mxu0 0
    %1693 = vmatprep.subr.bf16.mxu0 0
    %1694 = vmatpush1.bf16.msra.mxu0 0
    %1695 = vmatprep.subr.bf16.mxu0 0
    %1696 = vmatpush1.bf16.msra.mxu0 0
    %1697 = vmatprep.subr.bf16.mxu0 0
    %1698 = vmatpush1.bf16.msra.mxu0 0
    %1699 = vmatprep.mubr.bf16.mxu0 0
    %1700 = vmatmul.mubr.bf16.gmra.mrb[0].mxu0 %v1666
    %v1701 = vpop.f32.mrb[0].mxu0
    %v1702 = vadd.f32 0.0, %v1701
    %v1703 = vpop.f32.mrb[0].mxu0
    %v1704 = vadd.f32 0.0, %v1703
    %v1705 = vpop.f32.mrb[0].mxu0
    %v1706 = vpop.f32.mrb[0].mxu0
    %1707 = vdwg.mxu0
    %1708 = vmatprep.subr.bf16.mxu0 %v767
    %1709 = vmatpush1.bf16.msra.mxu0 %v766
    %1710 = vmatprep.subr.bf16.mxu0 %v771
    %1711 = vmatpush1.bf16.msra.mxu0 %v770
    %1712 = vmatprep.subr.bf16.mxu0 %v775
    %1713 = vmatpush1.bf16.msra.mxu0 %v774
    %1714 = vmatprep.subr.bf16.mxu0 %v779
    %1715 = vmatpush1.bf16.msra.mxu0 %v778
    %1716 = vmatprep.subr.bf16.mxu0 %v783
    %1717 = vmatpush1.bf16.msra.mxu0 %v782
    %1718 = vmatprep.subr.bf16.mxu0 %v787
    %1719 = vmatpush1.bf16.msra.mxu0 %v786
    %1720 = vmatprep.subr.bf16.mxu0 %v791
    %1721 = vmatpush1.bf16.msra.mxu0 %v790
    %1722 = vmatprep.subr.bf16.mxu0 %v795
    %1723 = vmatpush1.bf16.msra.mxu0 %v794
    %1724 = vmatprep.subr.bf16.mxu0 0
    %1725 = vmatpush1.bf16.msra.mxu0 0
    %1726 = vmatprep.subr.bf16.mxu0 0
    %1727 = vmatpush1.bf16.msra.mxu0 0
    %1728 = vmatprep.subr.bf16.mxu0 0
    %1729 = vmatpush1.bf16.msra.mxu0 0
    %1730 = vmatprep.subr.bf16.mxu0 0
    %1731 = vmatpush1.bf16.msra.mxu0 0
    %1732 = vmatprep.subr.bf16.mxu0 0
    %1733 = vmatpush1.bf16.msra.mxu0 0
    %1734 = vmatprep.subr.bf16.mxu0 0
    %1735 = vmatpush1.bf16.msra.mxu0 0
    %1736 = vmatprep.subr.bf16.mxu0 0
    %1737 = vmatpush1.bf16.msra.mxu0 0
    %1738 = vmatprep.subr.bf16.mxu0 0
    %1739 = vmatpush1.bf16.msra.mxu0 0
    %1740 = vmatprep.mubr.bf16.mxu0 0
    %1741 = vmatmul.mubr.bf16.gmra.mrb[0].mxu0 %v1666
    %v1742 = vpop.f32.mrb[0].mxu0
    %v1743 = vadd.f32 0.0, %v1742
    %v1744 = vpop.f32.mrb[0].mxu0
    %v1745 = vadd.f32 0.0, %v1744
    %v1746 = vpop.f32.mrb[0].mxu0
    %v1747 = vpop.f32.mrb[0].mxu0
    %1748 = vdwg.mxu0
    %1749 = vmatprep.subr.bf16.mxu0 %v1007
    %1750 = vmatpush1.bf16.msra.mxu0 %v1006
    %1751 = vmatprep.subr.bf16.mxu0 %v1011
    %1752 = vmatpush1.bf16.msra.mxu0 %v1010
    %1753 = vmatprep.subr.bf16.mxu0 %v1015
    %1754 = vmatpush1.bf16.msra.mxu0 %v1014
    %1755 = vmatprep.subr.bf16.mxu0 %v1019
    %1756 = vmatpush1.bf16.msra.mxu0 %v1018
    %1757 = vmatprep.subr.bf16.mxu0 %v1023
    %1758 = vmatpush1.bf16.msra.mxu0 %v1022
    %1759 = vmatprep.subr.bf16.mxu0 %v1027
    %1760 = vmatpush1.bf16.msra.mxu0 %v1026
    %1761 = vmatprep.subr.bf16.mxu0 %v1031
    %1762 = vmatpush1.bf16.msra.mxu0 %v1030
    %1763 = vmatprep.subr.bf16.mxu0 %v1035
    %1764 = vmatpush1.bf16.msra.mxu0 %v1034
    %1765 = vmatprep.subr.bf16.mxu0 0
    %1766 = vmatpush1.bf16.msra.mxu0 0
    %1767 = vmatprep.subr.bf16.mxu0 0
    %1768 = vmatpush1.bf16.msra.mxu0 0
    %1769 = vmatprep.subr.bf16.mxu0 0
    %1770 = vmatpush1.bf16.msra.mxu0 0
    %1771 = vmatprep.subr.bf16.mxu0 0
    %1772 = vmatpush1.bf16.msra.mxu0 0
    %1773 = vmatprep.subr.bf16.mxu0 0
    %1774 = vmatpush1.bf16.msra.mxu0 0
    %1775 = vmatprep.subr.bf16.mxu0 0
    %1776 = vmatpush1.bf16.msra.mxu0 0
    %1777 = vmatprep.subr.bf16.mxu0 0
    %1778 = vmatpush1.bf16.msra.mxu0 0
    %1779 = vmatprep.subr.bf16.mxu0 0
    %1780 = vmatpush1.bf16.msra.mxu0 0
    %1781 = vmatprep.mubr.bf16.mxu0 0
    %1782 = vmatmul.mubr.bf16.gmra.mrb[0].mxu0 %v1665
    %v1783 = vpop.f32.mrb[0].mxu0
    %v1784 = vadd.f32 %v1702, %v1783
    %v1785 = vpop.f32.mrb[0].mxu0
    %v1786 = vadd.f32 %v1704, %v1785
    %v1787 = vpop.f32.mrb[0].mxu0
    %v1788 = vpop.f32.mrb[0].mxu0
    %1789 = vdwg.mxu0
    %1790 = vmatprep.subr.bf16.mxu0 %v1009
    %1791 = vmatpush1.bf16.msra.mxu0 %v1008
    %1792 = vmatprep.subr.bf16.mxu0 %v1013
    %1793 = vmatpush1.bf16.msra.mxu0 %v1012
    %1794 = vmatprep.subr.bf16.mxu0 %v1017
    %1795 = vmatpush1.bf16.msra.mxu0 %v1016
    %1796 = vmatprep.subr.bf16.mxu0 %v1021
    %1797 = vmatpush1.bf16.msra.mxu0 %v1020
    %1798 = vmatprep.subr.bf16.mxu0 %v1025
    %1799 = vmatpush1.bf16.msra.mxu0 %v1024
    %1800 = vmatprep.subr.bf16.mxu0 %v1029
    %1801 = vmatpush1.bf16.msra.mxu0 %v1028
    %1802 = vmatprep.subr.bf16.mxu0 %v1033
    %1803 = vmatpush1.bf16.msra.mxu0 %v1032
    %1804 = vmatprep.subr.bf16.mxu0 %v1037
    %1805 = vmatpush1.bf16.msra.mxu0 %v1036
    %1806 = vmatprep.subr.bf16.mxu0 0
    %1807 = vmatpush1.bf16.msra.mxu0 0
    %1808 = vmatprep.subr.bf16.mxu0 0
    %1809 = vmatpush1.bf16.msra.mxu0 0
    %1810 = vmatprep.subr.bf16.mxu0 0
    %1811 = vmatpush1.bf16.msra.mxu0 0
    %1812 = vmatprep.subr.bf16.mxu0 0
    %1813 = vmatpush1.bf16.msra.mxu0 0
    %1814 = vmatprep.subr.bf16.mxu0 0
    %1815 = vmatpush1.bf16.msra.mxu0 0
    %1816 = vmatprep.subr.bf16.mxu0 0
    %1817 = vmatpush1.bf16.msra.mxu0 0
    %1818 = vmatprep.subr.bf16.mxu0 0
    %1819 = vmatpush1.bf16.msra.mxu0 0
    %1820 = vmatprep.subr.bf16.mxu0 0
    %1821 = vmatpush1.bf16.msra.mxu0 0
    %1822 = vmatprep.mubr.bf16.mxu0 0
    %1823 = vmatmul.mubr.bf16.gmra.mrb[0].mxu0 %v1665
    %v1824 = vpop.f32.mrb[0].mxu0
    %v1825 = vadd.f32 %v1743, %v1824
    %v1826 = vpop.f32.mrb[0].mxu0
    %v1827 = vadd.f32 %v1745, %v1826
    %v1828 = vpop.f32.mrb[0].mxu0
    %v1829 = vpop.f32.mrb[0].mxu0
    %1830 = vdwg.mxu0
    %v1831 = vadd.f32 %v1784, %v1156
    %v1832 = vadd.f32 %v1786, %v1160
    %v1833 = vadd.f32 %v1825, %v1164
    %v1834 = vadd.f32 %v1827, %v1168
    %v1835 = vxor.u32 %v1831, 2147483648
    %v1836 = vxor.u32 %v1832, 2147483648
    %v1837 = vxor.u32 %v1833, 2147483648
    %v1838 = vmul.f32 %v1835, 1.442695
    %v1839 = vpow.pop %v1838
    %v1840 = vmul.f32 %v1836, 1.442695
    %v1841 = vpow.pop %v1840
    %v1842 = vmul.f32 %v1837, 1.442695
    %v1843 = vpow.pop %v1842
    %v1844 = vadd.f32 %v1839, 1.0
    %v1845 = vadd.f32 %v1841, 1.0
    %v1846 = vadd.f32 %v1843, 1.0
    %v1847 = vrcp.pop %v1844
    %v1848 = vmul.f32 1.0, %v1847
    %v1849 = vrcp.pop %v1845
    %v1850 = vmul.f32 1.0, %v1849
    %v1851 = vrcp.pop %v1846
    %v1852 = vmul.f32 1.0, %v1851
    %v1853 = vtanh.pop %v1834
    %v1854 = vmul.f32 %v1850, %v1527
    %v1855 = vmul.f32 %v1848, %v1853
    %v1856 = vadd.f32 %v1854, %v1855
    %v1857 = vtanh.pop %v1856
    %v1858 = vmul.f32 %v1852, %v1857
    %1859 = vst [vmem:[#allocation3 + $0x2] sm:$0x1] %v1858
    %s1860 = scalar_lea.vmem [#allocation2], 3
    %v1861 = vld [vmem:[%s1860] ss:$8 sm:$0xf]
    %1862 = vmatprep.subr.bf16.mxu0 %v471
    %1863 = vmatpush1.bf16.msra.mxu0 %v470
    %1864 = vmatprep.subr.bf16.mxu0 %v475
    %1865 = vmatpush1.bf16.msra.mxu0 %v474
    %1866 = vmatprep.subr.bf16.mxu0 %v479
    %1867 = vmatpush1.bf16.msra.mxu0 %v478
    %1868 = vmatprep.subr.bf16.mxu0 %v483
    %1869 = vmatpush1.bf16.msra.mxu0 %v482
    %1870 = vmatprep.subr.bf16.mxu0 %v487
    %1871 = vmatpush1.bf16.msra.mxu0 %v486
    %1872 = vmatprep.subr.bf16.mxu0 %v491
    %1873 = vmatpush1.bf16.msra.mxu0 %v490
    %1874 = vmatprep.subr.bf16.mxu0 %v495
    %1875 = vmatpush1.bf16.msra.mxu0 %v494
    %1876 = vmatprep.subr.bf16.mxu0 %v499
    %1877 = vmatpush1.bf16.msra.mxu0 %v498
    %1878 = vmatprep.subr.bf16.mxu0 0
    %1879 = vmatpush1.bf16.msra.mxu0 0
    %1880 = vmatprep.subr.bf16.mxu0 0
    %1881 = vmatpush1.bf16.msra.mxu0 0
    %1882 = vmatprep.subr.bf16.mxu0 0
    %1883 = vmatpush1.bf16.msra.mxu0 0
    %1884 = vmatprep.subr.bf16.mxu0 0
    %1885 = vmatpush1.bf16.msra.mxu0 0
    %1886 = vmatprep.subr.bf16.mxu0 0
    %1887 = vmatpush1.bf16.msra.mxu0 0
    %1888 = vmatprep.subr.bf16.mxu0 0
    %1889 = vmatpush1.bf16.msra.mxu0 0
    %1890 = vmatprep.subr.bf16.mxu0 0
    %1891 = vmatpush1.bf16.msra.mxu0 0
    %1892 = vmatprep.subr.bf16.mxu0 0
    %1893 = vmatpush1.bf16.msra.mxu0 0
    %1894 = vmatprep.mubr.bf16.mxu0 0
    %1895 = vmatmul.mubr.bf16.gmra.mrb[0].mxu0 %v1665
    %v1896 = vpop.f32.mrb[0].mxu0
    %v1897 = vadd.f32 0.0, %v1896
    %v1898 = vpop.f32.mrb[0].mxu0
    %v1899 = vadd.f32 0.0, %v1898
    %v1900 = vpop.f32.mrb[0].mxu0
    %v1901 = vpop.f32.mrb[0].mxu0
    %1902 = vdwg.mxu0
    %1903 = vmatprep.subr.bf16.mxu0 %v473
    %1904 = vmatpush1.bf16.msra.mxu0 %v472
    %1905 = vmatprep.subr.bf16.mxu0 %v477
    %1906 = vmatpush1.bf16.msra.mxu0 %v476
    %1907 = vmatprep.subr.bf16.mxu0 %v481
    %1908 = vmatpush1.bf16.msra.mxu0 %v480
    %1909 = vmatprep.subr.bf16.mxu0 %v485
    %1910 = vmatpush1.bf16.msra.mxu0 %v484
    %1911 = vmatprep.subr.bf16.mxu0 %v489
    %1912 = vmatpush1.bf16.msra.mxu0 %v488
    %1913 = vmatprep.subr.bf16.mxu0 %v493
    %1914 = vmatpush1.bf16.msra.mxu0 %v492
    %1915 = vmatprep.subr.bf16.mxu0 %v497
    %1916 = vmatpush1.bf16.msra.mxu0 %v496
    %1917 = vmatprep.subr.bf16.mxu0 %v501
    %1918 = vmatpush1.bf16.msra.mxu0 %v500
    %1919 = vmatprep.subr.bf16.mxu0 0
    %1920 = vmatpush1.bf16.msra.mxu0 0
    %1921 = vmatprep.subr.bf16.mxu0 0
    %1922 = vmatpush1.bf16.msra.mxu0 0
    %1923 = vmatprep.subr.bf16.mxu0 0
    %1924 = vmatpush1.bf16.msra.mxu0 0
    %1925 = vmatprep.subr.bf16.mxu0 0
    %1926 = vmatpush1.bf16.msra.mxu0 0
    %1927 = vmatprep.subr.bf16.mxu0 0
    %1928 = vmatpush1.bf16.msra.mxu0 0
    %1929 = vmatprep.subr.bf16.mxu0 0
    %1930 = vmatpush1.bf16.msra.mxu0 0
    %1931 = vmatprep.subr.bf16.mxu0 0
    %1932 = vmatpush1.bf16.msra.mxu0 0
    %1933 = vmatprep.subr.bf16.mxu0 0
    %1934 = vmatpush1.bf16.msra.mxu0 0
    %1935 = vmatprep.mubr.bf16.mxu0 0
    %1936 = vmatmul.mubr.bf16.gmra.mrb[0].mxu0 %v1665
    %v1937 = vpop.f32.mrb[0].mxu0
    %v1938 = vadd.f32 0.0, %v1937
    %v1939 = vpop.f32.mrb[0].mxu0
    %v1940 = vadd.f32 0.0, %v1939
    %v1941 = vpop.f32.mrb[0].mxu0
    %v1942 = vpop.f32.mrb[0].mxu0
    %1943 = vdwg.mxu0
    %v1948 = vcombine.low %v1897, %v1899
    %v1949 = vcombine.low %v1938, %v1940
    %v1951 = vunpack.c.l.s4 1966171168
    %v1952 = vunpack.c.0.s8 %v1951
    %v1953 = vlaneseq
    %v1954 = vshrl.u32 %v1953, 7
    %v1955 = vsub.s32 %v1952, %v1954
    %v1956 = vrot.slane %v1948, %v1955
    %v1958 = vunpack.c.l.s4 1966171168
    %v1959 = vunpack.c.0.s8 %v1958
    %v1960 = vlaneseq
    %v1961 = vshrl.u32 %v1960, 7
    %v1962 = vsub.s32 %v1959, %v1961
    %v1963 = vrot.slane %v1949, %v1962
    %v1964 = vcombine.low %v1956, %v1963
    %v1966 = vunpack.c.l.s4 1966171168
    %v1967 = vunpack.c.0.s8 %v1966
    %v1968 = vlaneseq
    %v1969 = vshrl.u32 %v1968, 7
    %v1970 = vsub.s32 %v1967, %v1969
    %v1971 = vrot.slane %v1964, %v1970
    %v1973 = vadd.f32 %v1861, %v1971
    %v1974 = vxor.u32 %v1973, 2147483648
    %v1975 = vmul.f32 %v1974, 1.442695
    %v1976 = vpow.pop %v1975
    %v1977 = vadd.f32 %v1976, 1.0
    %v1978 = vrcp.pop %v1977
    %v1979 = vmul.f32 1.0, %v1978
    %v1981 = vrot.slane %v1973, 3
    %v1983 = vtanh.pop %v1981
    %v1985 = vrot.slane %v1979, 1
    %v1987 = vmul.f32 %v1985, %v1660
    %v1988 = vmul.f32 %v1979, %v1983
    %v1989 = vadd.f32 %v1987, %v1988
    %v1990 = vtanh.pop %v1989
    %v1991 = vrot.slane %v1979, 2
    %v1993 = vmul.f32 %v1991, %v1990
    %v1994 = vpack.c.bf16 %v1993, %v1993
    %v1995 = vpack.c.bf16 %v1858, %v1858
    %1996 = vmatprep.subr.bf16.mxu0 %v765
    %1997 = vmatpush1.bf16.msra.mxu0 %v764
    %1998 = vmatprep.subr.bf16.mxu0 %v769
    %1999 = vmatpush1.bf16.msra.mxu0 %v768
    %2000 = vmatprep.subr.bf16.mxu0 %v773
    %2001 = vmatpush1.bf16.msra.mxu0 %v772
    %2002 = vmatprep.subr.bf16.mxu0 %v777
    %2003 = vmatpush1.bf16.msra.mxu0 %v776
    %2004 = vmatprep.subr.bf16.mxu0 %v781
    %2005 = vmatpush1.bf16.msra.mxu0 %v780
    %2006 = vmatprep.subr.bf16.mxu0 %v785
    %2007 = vmatpush1.bf16.msra.mxu0 %v784
    %2008 = vmatprep.subr.bf16.mxu0 %v789
    %2009 = vmatpush1.bf16.msra.mxu0 %v788
    %2010 = vmatprep.subr.bf16.mxu0 %v793
    %2011 = vmatpush1.bf16.msra.mxu0 %v792
    %2012 = vmatprep.subr.bf16.mxu0 0
    %2013 = vmatpush1.bf16.msra.mxu0 0
    %2014 = vmatprep.subr.bf16.mxu0 0
    %2015 = vmatpush1.bf16.msra.mxu0 0
    %2016 = vmatprep.subr.bf16.mxu0 0
    %2017 = vmatpush1.bf16.msra.mxu0 0
    %2018 = vmatprep.subr.bf16.mxu0 0
    %2019 = vmatpush1.bf16.msra.mxu0 0
    %2020 = vmatprep.subr.bf16.mxu0 0
    %2021 = vmatpush1.bf16.msra.mxu0 0
    %2022 = vmatprep.subr.bf16.mxu0 0
    %2023 = vmatpush1.bf16.msra.mxu0 0
    %2024 = vmatprep.subr.bf16.mxu0 0
    %2025 = vmatpush1.bf16.msra.mxu0 0
    %2026 = vmatprep.subr.bf16.mxu0 0
    %2027 = vmatpush1.bf16.msra.mxu0 0
    %2028 = vmatprep.mubr.bf16.mxu0 0
    %2029 = vmatmul.mubr.bf16.gmra.mrb[0].mxu0 %v1995
    %v2030 = vpop.f32.mrb[0].mxu0
    %v2031 = vadd.f32 0.0, %v2030
    %v2032 = vpop.f32.mrb[0].mxu0
    %v2033 = vadd.f32 0.0, %v2032
    %v2034 = vpop.f32.mrb[0].mxu0
    %v2035 = vpop.f32.mrb[0].mxu0
    %2036 = vdwg.mxu0
    %2037 = vmatprep.subr.bf16.mxu0 %v767
    %2038 = vmatpush1.bf16.msra.mxu0 %v766
    %2039 = vmatprep.subr.bf16.mxu0 %v771
    %2040 = vmatpush1.bf16.msra.mxu0 %v770
    %2041 = vmatprep.subr.bf16.mxu0 %v775
    %2042 = vmatpush1.bf16.msra.mxu0 %v774
    %2043 = vmatprep.subr.bf16.mxu0 %v779
    %2044 = vmatpush1.bf16.msra.mxu0 %v778
    %2045 = vmatprep.subr.bf16.mxu0 %v783
    %2046 = vmatpush1.bf16.msra.mxu0 %v782
    %2047 = vmatprep.subr.bf16.mxu0 %v787
    %2048 = vmatpush1.bf16.msra.mxu0 %v786
    %2049 = vmatprep.subr.bf16.mxu0 %v791
    %2050 = vmatpush1.bf16.msra.mxu0 %v790
    %2051 = vmatprep.subr.bf16.mxu0 %v795
    %2052 = vmatpush1.bf16.msra.mxu0 %v794
    %2053 = vmatprep.subr.bf16.mxu0 0
    %2054 = vmatpush1.bf16.msra.mxu0 0
    %2055 = vmatprep.subr.bf16.mxu0 0
    %2056 = vmatpush1.bf16.msra.mxu0 0
    %2057 = vmatprep.subr.bf16.mxu0 0
    %2058 = vmatpush1.bf16.msra.mxu0 0
    %2059 = vmatprep.subr.bf16.mxu0 0
    %2060 = vmatpush1.bf16.msra.mxu0 0
    %2061 = vmatprep.subr.bf16.mxu0 0
    %2062 = vmatpush1.bf16.msra.mxu0 0
    %2063 = vmatprep.subr.bf16.mxu0 0
    %2064 = vmatpush1.bf16.msra.mxu0 0
    %2065 = vmatprep.subr.bf16.mxu0 0
    %2066 = vmatpush1.bf16.msra.mxu0 0
    %2067 = vmatprep.subr.bf16.mxu0 0
    %2068 = vmatpush1.bf16.msra.mxu0 0
    %2069 = vmatprep.mubr.bf16.mxu0 0
    %2070 = vmatmul.mubr.bf16.gmra.mrb[0].mxu0 %v1995
    %v2071 = vpop.f32.mrb[0].mxu0
    %v2072 = vadd.f32 0.0, %v2071
    %v2073 = vpop.f32.mrb[0].mxu0
    %v2074 = vadd.f32 0.0, %v2073
    %v2075 = vpop.f32.mrb[0].mxu0
    %v2076 = vpop.f32.mrb[0].mxu0
    %2077 = vdwg.mxu0
    %2078 = vmatprep.subr.bf16.mxu0 %v1007
    %2079 = vmatpush1.bf16.msra.mxu0 %v1006
    %2080 = vmatprep.subr.bf16.mxu0 %v1011
    %2081 = vmatpush1.bf16.msra.mxu0 %v1010
    %2082 = vmatprep.subr.bf16.mxu0 %v1015
    %2083 = vmatpush1.bf16.msra.mxu0 %v1014
    %2084 = vmatprep.subr.bf16.mxu0 %v1019
    %2085 = vmatpush1.bf16.msra.mxu0 %v1018
    %2086 = vmatprep.subr.bf16.mxu0 %v1023
    %2087 = vmatpush1.bf16.msra.mxu0 %v1022
    %2088 = vmatprep.subr.bf16.mxu0 %v1027
    %2089 = vmatpush1.bf16.msra.mxu0 %v1026
    %2090 = vmatprep.subr.bf16.mxu0 %v1031
    %2091 = vmatpush1.bf16.msra.mxu0 %v1030
    %2092 = vmatprep.subr.bf16.mxu0 %v1035
    %2093 = vmatpush1.bf16.msra.mxu0 %v1034
    %2094 = vmatprep.subr.bf16.mxu0 0
    %2095 = vmatpush1.bf16.msra.mxu0 0
    %2096 = vmatprep.subr.bf16.mxu0 0
    %2097 = vmatpush1.bf16.msra.mxu0 0
    %2098 = vmatprep.subr.bf16.mxu0 0
    %2099 = vmatpush1.bf16.msra.mxu0 0
    %2100 = vmatprep.subr.bf16.mxu0 0
    %2101 = vmatpush1.bf16.msra.mxu0 0
    %2102 = vmatprep.subr.bf16.mxu0 0
    %2103 = vmatpush1.bf16.msra.mxu0 0
    %2104 = vmatprep.subr.bf16.mxu0 0
    %2105 = vmatpush1.bf16.msra.mxu0 0
    %2106 = vmatprep.subr.bf16.mxu0 0
    %2107 = vmatpush1.bf16.msra.mxu0 0
    %2108 = vmatprep.subr.bf16.mxu0 0
    %2109 = vmatpush1.bf16.msra.mxu0 0
    %2110 = vmatprep.mubr.bf16.mxu0 0
    %2111 = vmatmul.mubr.bf16.gmra.mrb[0].mxu0 %v1994
    %v2112 = vpop.f32.mrb[0].mxu0
    %v2113 = vadd.f32 %v2031, %v2112
    %v2114 = vpop.f32.mrb[0].mxu0
    %v2115 = vadd.f32 %v2033, %v2114
    %v2116 = vpop.f32.mrb[0].mxu0
    %v2117 = vpop.f32.mrb[0].mxu0
    %2118 = vdwg.mxu0
    %2119 = vmatprep.subr.bf16.mxu0 %v1009
    %2120 = vmatpush1.bf16.msra.mxu0 %v1008
    %2121 = vmatprep.subr.bf16.mxu0 %v1013
    %2122 = vmatpush1.bf16.msra.mxu0 %v1012
    %2123 = vmatprep.subr.bf16.mxu0 %v1017
    %2124 = vmatpush1.bf16.msra.mxu0 %v1016
    %2125 = vmatprep.subr.bf16.mxu0 %v1021
    %2126 = vmatpush1.bf16.msra.mxu0 %v1020
    %2127 = vmatprep.subr.bf16.mxu0 %v1025
    %2128 = vmatpush1.bf16.msra.mxu0 %v1024
    %2129 = vmatprep.subr.bf16.mxu0 %v1029
    %2130 = vmatpush1.bf16.msra.mxu0 %v1028
    %2131 = vmatprep.subr.bf16.mxu0 %v1033
    %2132 = vmatpush1.bf16.msra.mxu0 %v1032
    %2133 = vmatprep.subr.bf16.mxu0 %v1037
    %2134 = vmatpush1.bf16.msra.mxu0 %v1036
    %2135 = vmatprep.subr.bf16.mxu0 0
    %2136 = vmatpush1.bf16.msra.mxu0 0
    %2137 = vmatprep.subr.bf16.mxu0 0
    %2138 = vmatpush1.bf16.msra.mxu0 0
    %2139 = vmatprep.subr.bf16.mxu0 0
    %2140 = vmatpush1.bf16.msra.mxu0 0
    %2141 = vmatprep.subr.bf16.mxu0 0
    %2142 = vmatpush1.bf16.msra.mxu0 0
    %2143 = vmatprep.subr.bf16.mxu0 0
    %2144 = vmatpush1.bf16.msra.mxu0 0
    %2145 = vmatprep.subr.bf16.mxu0 0
    %2146 = vmatpush1.bf16.msra.mxu0 0
    %2147 = vmatprep.subr.bf16.mxu0 0
    %2148 = vmatpush1.bf16.msra.mxu0 0
    %2149 = vmatprep.subr.bf16.mxu0 0
    %2150 = vmatpush1.bf16.msra.mxu0 0
    %2151 = vmatprep.mubr.bf16.mxu0 0
    %2152 = vmatmul.mubr.bf16.gmra.mrb[0].mxu0 %v1994
    %v2153 = vpop.f32.mrb[0].mxu0
    %v2154 = vadd.f32 %v2072, %v2153
    %v2155 = vpop.f32.mrb[0].mxu0
    %v2156 = vadd.f32 %v2074, %v2155
    %v2157 = vpop.f32.mrb[0].mxu0
    %v2158 = vpop.f32.mrb[0].mxu0
    %2159 = vdwg.mxu0
    %v2160 = vadd.f32 %v2113, %v1156
    %v2161 = vadd.f32 %v2115, %v1160
    %v2162 = vadd.f32 %v2154, %v1164
    %v2163 = vadd.f32 %v2156, %v1168
    %v2164 = vxor.u32 %v2160, 2147483648
    %v2165 = vxor.u32 %v2161, 2147483648
    %v2166 = vxor.u32 %v2162, 2147483648
    %v2167 = vmul.f32 %v2164, 1.442695
    %v2168 = vpow.pop %v2167
    %v2169 = vmul.f32 %v2165, 1.442695
    %v2170 = vpow.pop %v2169
    %v2171 = vmul.f32 %v2166, 1.442695
    %v2172 = vpow.pop %v2171
    %v2173 = vadd.f32 %v2168, 1.0
    %v2174 = vadd.f32 %v2170, 1.0
    %v2175 = vadd.f32 %v2172, 1.0
    %v2176 = vrcp.pop %v2173
    %v2177 = vmul.f32 1.0, %v2176
    %v2178 = vrcp.pop %v2174
    %v2179 = vmul.f32 1.0, %v2178
    %v2180 = vrcp.pop %v2175
    %v2181 = vmul.f32 1.0, %v2180
    %v2182 = vtanh.pop %v2163
    %v2183 = vmul.f32 %v2179, %v1856
    %v2184 = vmul.f32 %v2177, %v2182
    %v2185 = vadd.f32 %v2183, %v2184
    %v2186 = vtanh.pop %v2185
    %v2187 = vmul.f32 %v2181, %v2186
    %2188 = vst [vmem:[#allocation3 + $0x3] sm:$0x1] %v2187
    %s2189 = scalar_lea.vmem [#allocation2], 4
    %v2190 = vld [vmem:[%s2189] ss:$8 sm:$0xf]
    %2191 = vmatprep.subr.bf16.mxu0 %v471
    %2192 = vmatpush1.bf16.msra.mxu0 %v470
    %2193 = vmatprep.subr.bf16.mxu0 %v475
    %2194 = vmatpush1.bf16.msra.mxu0 %v474
    %2195 = vmatprep.subr.bf16.mxu0 %v479
    %2196 = vmatpush1.bf16.msra.mxu0 %v478
    %2197 = vmatprep.subr.bf16.mxu0 %v483
    %2198 = vmatpush1.bf16.msra.mxu0 %v482
    %2199 = vmatprep.subr.bf16.mxu0 %v487
    %2200 = vmatpush1.bf16.msra.mxu0 %v486
    %2201 = vmatprep.subr.bf16.mxu0 %v491
    %2202 = vmatpush1.bf16.msra.mxu0 %v490
    %2203 = vmatprep.subr.bf16.mxu0 %v495
    %2204 = vmatpush1.bf16.msra.mxu0 %v494
    %2205 = vmatprep.subr.bf16.mxu0 %v499
    %2206 = vmatpush1.bf16.msra.mxu0 %v498
    %2207 = vmatprep.subr.bf16.mxu0 0
    %2208 = vmatpush1.bf16.msra.mxu0 0
    %2209 = vmatprep.subr.bf16.mxu0 0
    %2210 = vmatpush1.bf16.msra.mxu0 0
    %2211 = vmatprep.subr.bf16.mxu0 0
    %2212 = vmatpush1.bf16.msra.mxu0 0
    %2213 = vmatprep.subr.bf16.mxu0 0
    %2214 = vmatpush1.bf16.msra.mxu0 0
    %2215 = vmatprep.subr.bf16.mxu0 0
    %2216 = vmatpush1.bf16.msra.mxu0 0
    %2217 = vmatprep.subr.bf16.mxu0 0
    %2218 = vmatpush1.bf16.msra.mxu0 0
    %2219 = vmatprep.subr.bf16.mxu0 0
    %2220 = vmatpush1.bf16.msra.mxu0 0
    %2221 = vmatprep.subr.bf16.mxu0 0
    %2222 = vmatpush1.bf16.msra.mxu0 0
    %2223 = vmatprep.mubr.bf16.mxu0 0
    %2224 = vmatmul.mubr.bf16.gmra.mrb[0].mxu0 %v1994
    %v2225 = vpop.f32.mrb[0].mxu0
    %v2226 = vadd.f32 0.0, %v2225
    %v2227 = vpop.f32.mrb[0].mxu0
    %v2228 = vadd.f32 0.0, %v2227
    %v2229 = vpop.f32.mrb[0].mxu0
    %v2230 = vpop.f32.mrb[0].mxu0
    %2231 = vdwg.mxu0
    %2232 = vmatprep.subr.bf16.mxu0 %v473
    %2233 = vmatpush1.bf16.msra.mxu0 %v472
    %2234 = vmatprep.subr.bf16.mxu0 %v477
    %2235 = vmatpush1.bf16.msra.mxu0 %v476
    %2236 = vmatprep.subr.bf16.mxu0 %v481
    %2237 = vmatpush1.bf16.msra.mxu0 %v480
    %2238 = vmatprep.subr.bf16.mxu0 %v485
    %2239 = vmatpush1.bf16.msra.mxu0 %v484
    %2240 = vmatprep.subr.bf16.mxu0 %v489
    %2241 = vmatpush1.bf16.msra.mxu0 %v488
    %2242 = vmatprep.subr.bf16.mxu0 %v493
    %2243 = vmatpush1.bf16.msra.mxu0 %v492
    %2244 = vmatprep.subr.bf16.mxu0 %v497
    %2245 = vmatpush1.bf16.msra.mxu0 %v496
    %2246 = vmatprep.subr.bf16.mxu0 %v501
    %2247 = vmatpush1.bf16.msra.mxu0 %v500
    %2248 = vmatprep.subr.bf16.mxu0 0
    %2249 = vmatpush1.bf16.msra.mxu0 0
    %2250 = vmatprep.subr.bf16.mxu0 0
    %2251 = vmatpush1.bf16.msra.mxu0 0
    %2252 = vmatprep.subr.bf16.mxu0 0
    %2253 = vmatpush1.bf16.msra.mxu0 0
    %2254 = vmatprep.subr.bf16.mxu0 0
    %2255 = vmatpush1.bf16.msra.mxu0 0
    %2256 = vmatprep.subr.bf16.mxu0 0
    %2257 = vmatpush1.bf16.msra.mxu0 0
    %2258 = vmatprep.subr.bf16.mxu0 0
    %2259 = vmatpush1.bf16.msra.mxu0 0
    %2260 = vmatprep.subr.bf16.mxu0 0
    %2261 = vmatpush1.bf16.msra.mxu0 0
    %2262 = vmatprep.subr.bf16.mxu0 0
    %2263 = vmatpush1.bf16.msra.mxu0 0
    %2264 = vmatprep.mubr.bf16.mxu0 0
    %2265 = vmatmul.mubr.bf16.gmra.mrb[0].mxu0 %v1994
    %v2266 = vpop.f32.mrb[0].mxu0
    %v2267 = vadd.f32 0.0, %v2266
    %v2268 = vpop.f32.mrb[0].mxu0
    %v2269 = vadd.f32 0.0, %v2268
    %v2270 = vpop.f32.mrb[0].mxu0
    %v2271 = vpop.f32.mrb[0].mxu0
    %2272 = vdwg.mxu0
    %v2277 = vcombine.low %v2226, %v2228
    %v2278 = vcombine.low %v2267, %v2269
    %v2280 = vunpack.c.l.s4 1966171168
    %v2281 = vunpack.c.0.s8 %v2280
    %v2282 = vlaneseq
    %v2283 = vshrl.u32 %v2282, 7
    %v2284 = vsub.s32 %v2281, %v2283
    %v2285 = vrot.slane %v2277, %v2284
    %v2287 = vunpack.c.l.s4 1966171168
    %v2288 = vunpack.c.0.s8 %v2287
    %v2289 = vlaneseq
    %v2290 = vshrl.u32 %v2289, 7
    %v2291 = vsub.s32 %v2288, %v2290
    %v2292 = vrot.slane %v2278, %v2291
    %v2293 = vcombine.low %v2285, %v2292
    %v2295 = vunpack.c.l.s4 1966171168
    %v2296 = vunpack.c.0.s8 %v2295
    %v2297 = vlaneseq
    %v2298 = vshrl.u32 %v2297, 7
    %v2299 = vsub.s32 %v2296, %v2298
    %v2300 = vrot.slane %v2293, %v2299
    %v2302 = vadd.f32 %v2190, %v2300
    %v2303 = vxor.u32 %v2302, 2147483648
    %v2304 = vmul.f32 %v2303, 1.442695
    %v2305 = vpow.pop %v2304
    %v2306 = vadd.f32 %v2305, 1.0
    %v2307 = vrcp.pop %v2306
    %v2308 = vmul.f32 1.0, %v2307
    %v2310 = vrot.slane %v2302, 3
    %v2312 = vtanh.pop %v2310
    %v2314 = vrot.slane %v2308, 1
    %v2316 = vmul.f32 %v2314, %v1989
    %v2317 = vmul.f32 %v2308, %v2312
    %v2318 = vadd.f32 %v2316, %v2317
    %v2319 = vtanh.pop %v2318
    %v2320 = vrot.slane %v2308, 2
    %v2322 = vmul.f32 %v2320, %v2319
    %v2323 = vpack.c.bf16 %v2322, %v2322
    %v2324 = vpack.c.bf16 %v2187, %v2187
    %2325 = vmatprep.subr.bf16.mxu0 %v765
    %2326 = vmatpush1.bf16.msra.mxu0 %v764
    %2327 = vmatprep.subr.bf16.mxu0 %v769
    %2328 = vmatpush1.bf16.msra.mxu0 %v768
    %2329 = vmatprep.subr.bf16.mxu0 %v773
    %2330 = vmatpush1.bf16.msra.mxu0 %v772
    %2331 = vmatprep.subr.bf16.mxu0 %v777
    %2332 = vmatpush1.bf16.msra.mxu0 %v776
    %2333 = vmatprep.subr.bf16.mxu0 %v781
    %2334 = vmatpush1.bf16.msra.mxu0 %v780
    %2335 = vmatprep.subr.bf16.mxu0 %v785
    %2336 = vmatpush1.bf16.msra.mxu0 %v784
    %2337 = vmatprep.subr.bf16.mxu0 %v789
    %2338 = vmatpush1.bf16.msra.mxu0 %v788
    %2339 = vmatprep.subr.bf16.mxu0 %v793
    %2340 = vmatpush1.bf16.msra.mxu0 %v792
    %2341 = vmatprep.subr.bf16.mxu0 0
    %2342 = vmatpush1.bf16.msra.mxu0 0
    %2343 = vmatprep.subr.bf16.mxu0 0
    %2344 = vmatpush1.bf16.msra.mxu0 0
    %2345 = vmatprep.subr.bf16.mxu0 0
    %2346 = vmatpush1.bf16.msra.mxu0 0
    %2347 = vmatprep.subr.bf16.mxu0 0
    %2348 = vmatpush1.bf16.msra.mxu0 0
    %2349 = vmatprep.subr.bf16.mxu0 0
    %2350 = vmatpush1.bf16.msra.mxu0 0
    %2351 = vmatprep.subr.bf16.mxu0 0
    %2352 = vmatpush1.bf16.msra.mxu0 0
    %2353 = vmatprep.subr.bf16.mxu0 0
    %2354 = vmatpush1.bf16.msra.mxu0 0
    %2355 = vmatprep.subr.bf16.mxu0 0
    %2356 = vmatpush1.bf16.msra.mxu0 0
    %2357 = vmatprep.mubr.bf16.mxu0 0
    %2358 = vmatmul.mubr.bf16.gmra.mrb[0].mxu0 %v2324
    %v2359 = vpop.f32.mrb[0].mxu0
    %v2360 = vadd.f32 0.0, %v2359
    %v2361 = vpop.f32.mrb[0].mxu0
    %v2362 = vadd.f32 0.0, %v2361
    %v2363 = vpop.f32.mrb[0].mxu0
    %v2364 = vpop.f32.mrb[0].mxu0
    %2365 = vdwg.mxu0
    %2366 = vmatprep.subr.bf16.mxu0 %v767
    %2367 = vmatpush1.bf16.msra.mxu0 %v766
    %2368 = vmatprep.subr.bf16.mxu0 %v771
    %2369 = vmatpush1.bf16.msra.mxu0 %v770
    %2370 = vmatprep.subr.bf16.mxu0 %v775
    %2371 = vmatpush1.bf16.msra.mxu0 %v774
    %2372 = vmatprep.subr.bf16.mxu0 %v779
    %2373 = vmatpush1.bf16.msra.mxu0 %v778
    %2374 = vmatprep.subr.bf16.mxu0 %v783
    %2375 = vmatpush1.bf16.msra.mxu0 %v782
    %2376 = vmatprep.subr.bf16.mxu0 %v787
    %2377 = vmatpush1.bf16.msra.mxu0 %v786
    %2378 = vmatprep.subr.bf16.mxu0 %v791
    %2379 = vmatpush1.bf16.msra.mxu0 %v790
    %2380 = vmatprep.subr.bf16.mxu0 %v795
    %2381 = vmatpush1.bf16.msra.mxu0 %v794
    %2382 = vmatprep.subr.bf16.mxu0 0
    %2383 = vmatpush1.bf16.msra.mxu0 0
    %2384 = vmatprep.subr.bf16.mxu0 0
    %2385 = vmatpush1.bf16.msra.mxu0 0
    %2386 = vmatprep.subr.bf16.mxu0 0
    %2387 = vmatpush1.bf16.msra.mxu0 0
    %2388 = vmatprep.subr.bf16.mxu0 0
    %2389 = vmatpush1.bf16.msra.mxu0 0
    %2390 = vmatprep.subr.bf16.mxu0 0
    %2391 = vmatpush1.bf16.msra.mxu0 0
    %2392 = vmatprep.subr.bf16.mxu0 0
    %2393 = vmatpush1.bf16.msra.mxu0 0
    %2394 = vmatprep.subr.bf16.mxu0 0
    %2395 = vmatpush1.bf16.msra.mxu0 0
    %2396 = vmatprep.subr.bf16.mxu0 0
    %2397 = vmatpush1.bf16.msra.mxu0 0
    %2398 = vmatprep.mubr.bf16.mxu0 0
    %2399 = vmatmul.mubr.bf16.gmra.mrb[0].mxu0 %v2324
    %v2400 = vpop.f32.mrb[0].mxu0
    %v2401 = vadd.f32 0.0, %v2400
    %v2402 = vpop.f32.mrb[0].mxu0
    %v2403 = vadd.f32 0.0, %v2402
    %v2404 = vpop.f32.mrb[0].mxu0
    %v2405 = vpop.f32.mrb[0].mxu0
    %2406 = vdwg.mxu0
    %2407 = vmatprep.subr.bf16.mxu0 %v1007
    %2408 = vmatpush1.bf16.msra.mxu0 %v1006
    %2409 = vmatprep.subr.bf16.mxu0 %v1011
    %2410 = vmatpush1.bf16.msra.mxu0 %v1010
    %2411 = vmatprep.subr.bf16.mxu0 %v1015
    %2412 = vmatpush1.bf16.msra.mxu0 %v1014
    %2413 = vmatprep.subr.bf16.mxu0 %v1019
    %2414 = vmatpush1.bf16.msra.mxu0 %v1018
    %2415 = vmatprep.subr.bf16.mxu0 %v1023
    %2416 = vmatpush1.bf16.msra.mxu0 %v1022
    %2417 = vmatprep.subr.bf16.mxu0 %v1027
    %2418 = vmatpush1.bf16.msra.mxu0 %v1026
    %2419 = vmatprep.subr.bf16.mxu0 %v1031
    %2420 = vmatpush1.bf16.msra.mxu0 %v1030
    %2421 = vmatprep.subr.bf16.mxu0 %v1035
    %2422 = vmatpush1.bf16.msra.mxu0 %v1034
    %2423 = vmatprep.subr.bf16.mxu0 0
    %2424 = vmatpush1.bf16.msra.mxu0 0
    %2425 = vmatprep.subr.bf16.mxu0 0
    %2426 = vmatpush1.bf16.msra.mxu0 0
    %2427 = vmatprep.subr.bf16.mxu0 0
    %2428 = vmatpush1.bf16.msra.mxu0 0
    %2429 = vmatprep.subr.bf16.mxu0 0
    %2430 = vmatpush1.bf16.msra.mxu0 0
    %2431 = vmatprep.subr.bf16.mxu0 0
    %2432 = vmatpush1.bf16.msra.mxu0 0
    %2433 = vmatprep.subr.bf16.mxu0 0
    %2434 = vmatpush1.bf16.msra.mxu0 0
    %2435 = vmatprep.subr.bf16.mxu0 0
    %2436 = vmatpush1.bf16.msra.mxu0 0
    %2437 = vmatprep.subr.bf16.mxu0 0
    %2438 = vmatpush1.bf16.msra.mxu0 0
    %2439 = vmatprep.mubr.bf16.mxu0 0
    %2440 = vmatmul.mubr.bf16.gmra.mrb[0].mxu0 %v2323
    %v2441 = vpop.f32.mrb[0].mxu0
    %v2442 = vadd.f32 %v2360, %v2441
    %v2443 = vpop.f32.mrb[0].mxu0
    %v2444 = vadd.f32 %v2362, %v2443
    %v2445 = vpop.f32.mrb[0].mxu0
    %v2446 = vpop.f32.mrb[0].mxu0
    %2447 = vdwg.mxu0
    %2448 = vmatprep.subr.bf16.mxu0 %v1009
    %2449 = vmatpush1.bf16.msra.mxu0 %v1008
    %2450 = vmatprep.subr.bf16.mxu0 %v1013
    %2451 = vmatpush1.bf16.msra.mxu0 %v1012
    %2452 = vmatprep.subr.bf16.mxu0 %v1017
    %2453 = vmatpush1.bf16.msra.mxu0 %v1016
    %2454 = vmatprep.subr.bf16.mxu0 %v1021
    %2455 = vmatpush1.bf16.msra.mxu0 %v1020
    %2456 = vmatprep.subr.bf16.mxu0 %v1025
    %2457 = vmatpush1.bf16.msra.mxu0 %v1024
    %2458 = vmatprep.subr.bf16.mxu0 %v1029
    %2459 = vmatpush1.bf16.msra.mxu0 %v1028
    %2460 = vmatprep.subr.bf16.mxu0 %v1033
    %2461 = vmatpush1.bf16.msra.mxu0 %v1032
    %2462 = vmatprep.subr.bf16.mxu0 %v1037
    %2463 = vmatpush1.bf16.msra.mxu0 %v1036
    %2464 = vmatprep.subr.bf16.mxu0 0
    %2465 = vmatpush1.bf16.msra.mxu0 0
    %2466 = vmatprep.subr.bf16.mxu0 0
    %2467 = vmatpush1.bf16.msra.mxu0 0
    %2468 = vmatprep.subr.bf16.mxu0 0
    %2469 = vmatpush1.bf16.msra.mxu0 0
    %2470 = vmatprep.subr.bf16.mxu0 0
    %2471 = vmatpush1.bf16.msra.mxu0 0
    %2472 = vmatprep.subr.bf16.mxu0 0
    %2473 = vmatpush1.bf16.msra.mxu0 0
    %2474 = vmatprep.subr.bf16.mxu0 0
    %2475 = vmatpush1.bf16.msra.mxu0 0
    %2476 = vmatprep.subr.bf16.mxu0 0
    %2477 = vmatpush1.bf16.msra.mxu0 0
    %2478 = vmatprep.subr.bf16.mxu0 0
    %2479 = vmatpush1.bf16.msra.mxu0 0
    %2480 = vmatprep.mubr.bf16.mxu0 0
    %2481 = vmatmul.mubr.bf16.gmra.mrb[0].mxu0 %v2323
    %v2482 = vpop.f32.mrb[0].mxu0
    %v2483 = vadd.f32 %v2401, %v2482
    %v2484 = vpop.f32.mrb[0].mxu0
    %v2485 = vadd.f32 %v2403, %v2484
    %v2486 = vpop.f32.mrb[0].mxu0
    %v2487 = vpop.f32.mrb[0].mxu0
    %2488 = vdwg.mxu0
    %v2489 = vadd.f32 %v2442, %v1156
    %v2490 = vadd.f32 %v2444, %v1160
    %v2491 = vadd.f32 %v2483, %v1164
    %v2492 = vadd.f32 %v2485, %v1168
    %v2493 = vxor.u32 %v2489, 2147483648
    %v2494 = vxor.u32 %v2490, 2147483648
    %v2495 = vxor.u32 %v2491, 2147483648
    %v2496 = vmul.f32 %v2493, 1.442695
    %v2497 = vpow.pop %v2496
    %v2498 = vmul.f32 %v2494, 1.442695
    %v2499 = vpow.pop %v2498
    %v2500 = vmul.f32 %v2495, 1.442695
    %v2501 = vpow.pop %v2500
    %v2502 = vadd.f32 %v2497, 1.0
    %v2503 = vadd.f32 %v2499, 1.0
    %v2504 = vadd.f32 %v2501, 1.0
    %v2505 = vrcp.pop %v2502
    %v2506 = vmul.f32 1.0, %v2505
    %v2507 = vrcp.pop %v2503
    %v2508 = vmul.f32 1.0, %v2507
    %v2509 = vrcp.pop %v2504
    %v2510 = vmul.f32 1.0, %v2509
    %v2511 = vtanh.pop %v2492
    %v2512 = vmul.f32 %v2508, %v2185
    %v2513 = vmul.f32 %v2506, %v2511
    %v2514 = vadd.f32 %v2512, %v2513
    %v2515 = vtanh.pop %v2514
    %v2516 = vmul.f32 %v2510, %v2515
    %2517 = vst [vmem:[#allocation3 + $0x4] sm:$0x1] %v2516
    %s2518 = scalar_lea.vmem [#allocation2], 5
    %v2519 = vld [vmem:[%s2518] ss:$8 sm:$0xf]
    %2520 = vmatprep.subr.bf16.mxu0 %v471
    %2521 = vmatpush1.bf16.msra.mxu0 %v470
    %2522 = vmatprep.subr.bf16.mxu0 %v475
    %2523 = vmatpush1.bf16.msra.mxu0 %v474
    %2524 = vmatprep.subr.bf16.mxu0 %v479
    %2525 = vmatpush1.bf16.msra.mxu0 %v478
    %2526 = vmatprep.subr.bf16.mxu0 %v483
    %2527 = vmatpush1.bf16.msra.mxu0 %v482
    %2528 = vmatprep.subr.bf16.mxu0 %v487
    %2529 = vmatpush1.bf16.msra.mxu0 %v486
    %2530 = vmatprep.subr.bf16.mxu0 %v491
    %2531 = vmatpush1.bf16.msra.mxu0 %v490
    %2532 = vmatprep.subr.bf16.mxu0 %v495
    %2533 = vmatpush1.bf16.msra.mxu0 %v494
    %2534 = vmatprep.subr.bf16.mxu0 %v499
    %2535 = vmatpush1.bf16.msra.mxu0 %v498
    %2536 = vmatprep.subr.bf16.mxu0 0
    %2537 = vmatpush1.bf16.msra.mxu0 0
    %2538 = vmatprep.subr.bf16.mxu0 0
    %2539 = vmatpush1.bf16.msra.mxu0 0
    %2540 = vmatprep.subr.bf16.mxu0 0
    %2541 = vmatpush1.bf16.msra.mxu0 0
    %2542 = vmatprep.subr.bf16.mxu0 0
    %2543 = vmatpush1.bf16.msra.mxu0 0
    %2544 = vmatprep.subr.bf16.mxu0 0
    %2545 = vmatpush1.bf16.msra.mxu0 0
    %2546 = vmatprep.subr.bf16.mxu0 0
    %2547 = vmatpush1.bf16.msra.mxu0 0
    %2548 = vmatprep.subr.bf16.mxu0 0
    %2549 = vmatpush1.bf16.msra.mxu0 0
    %2550 = vmatprep.subr.bf16.mxu0 0
    %2551 = vmatpush1.bf16.msra.mxu0 0
    %2552 = vmatprep.mubr.bf16.mxu0 0
    %2553 = vmatmul.mubr.bf16.gmra.mrb[0].mxu0 %v2323
    %v2554 = vpop.f32.mrb[0].mxu0
    %v2555 = vadd.f32 0.0, %v2554
    %v2556 = vpop.f32.mrb[0].mxu0
    %v2557 = vadd.f32 0.0, %v2556
    %v2558 = vpop.f32.mrb[0].mxu0
    %v2559 = vpop.f32.mrb[0].mxu0
    %2560 = vdwg.mxu0
    %2561 = vmatprep.subr.bf16.mxu0 %v473
    %2562 = vmatpush1.bf16.msra.mxu0 %v472
    %2563 = vmatprep.subr.bf16.mxu0 %v477
    %2564 = vmatpush1.bf16.msra.mxu0 %v476
    %2565 = vmatprep.subr.bf16.mxu0 %v481
    %2566 = vmatpush1.bf16.msra.mxu0 %v480
    %2567 = vmatprep.subr.bf16.mxu0 %v485
    %2568 = vmatpush1.bf16.msra.mxu0 %v484
    %2569 = vmatprep.subr.bf16.mxu0 %v489
    %2570 = vmatpush1.bf16.msra.mxu0 %v488
    %2571 = vmatprep.subr.bf16.mxu0 %v493
    %2572 = vmatpush1.bf16.msra.mxu0 %v492
    %2573 = vmatprep.subr.bf16.mxu0 %v497
    %2574 = vmatpush1.bf16.msra.mxu0 %v496
    %2575 = vmatprep.subr.bf16.mxu0 %v501
    %2576 = vmatpush1.bf16.msra.mxu0 %v500
    %2577 = vmatprep.subr.bf16.mxu0 0
    %2578 = vmatpush1.bf16.msra.mxu0 0
    %2579 = vmatprep.subr.bf16.mxu0 0
    %2580 = vmatpush1.bf16.msra.mxu0 0
    %2581 = vmatprep.subr.bf16.mxu0 0
    %2582 = vmatpush1.bf16.msra.mxu0 0
    %2583 = vmatprep.subr.bf16.mxu0 0
    %2584 = vmatpush1.bf16.msra.mxu0 0
    %2585 = vmatprep.subr.bf16.mxu0 0
    %2586 = vmatpush1.bf16.msra.mxu0 0
    %2587 = vmatprep.subr.bf16.mxu0 0
    %2588 = vmatpush1.bf16.msra.mxu0 0
    %2589 = vmatprep.subr.bf16.mxu0 0
    %2590 = vmatpush1.bf16.msra.mxu0 0
    %2591 = vmatprep.subr.bf16.mxu0 0
    %2592 = vmatpush1.bf16.msra.mxu0 0
    %2593 = vmatprep.mubr.bf16.mxu0 0
    %2594 = vmatmul.mubr.bf16.gmra.mrb[0].mxu0 %v2323
    %v2595 = vpop.f32.mrb[0].mxu0
    %v2596 = vadd.f32 0.0, %v2595
    %v2597 = vpop.f32.mrb[0].mxu0
    %v2598 = vadd.f32 0.0, %v2597
    %v2599 = vpop.f32.mrb[0].mxu0
    %v2600 = vpop.f32.mrb[0].mxu0
    %2601 = vdwg.mxu0
    %v2606 = vcombine.low %v2555, %v2557
    %v2607 = vcombine.low %v2596, %v2598
    %v2609 = vunpack.c.l.s4 1966171168
    %v2610 = vunpack.c.0.s8 %v2609
    %v2611 = vlaneseq
    %v2612 = vshrl.u32 %v2611, 7
    %v2613 = vsub.s32 %v2610, %v2612
    %v2614 = vrot.slane %v2606, %v2613
    %v2616 = vunpack.c.l.s4 1966171168
    %v2617 = vunpack.c.0.s8 %v2616
    %v2618 = vlaneseq
    %v2619 = vshrl.u32 %v2618, 7
    %v2620 = vsub.s32 %v2617, %v2619
    %v2621 = vrot.slane %v2607, %v2620
    %v2622 = vcombine.low %v2614, %v2621
    %v2624 = vunpack.c.l.s4 1966171168
    %v2625 = vunpack.c.0.s8 %v2624
    %v2626 = vlaneseq
    %v2627 = vshrl.u32 %v2626, 7
    %v2628 = vsub.s32 %v2625, %v2627
    %v2629 = vrot.slane %v2622, %v2628
    %v2631 = vadd.f32 %v2519, %v2629
    %v2632 = vxor.u32 %v2631, 2147483648
    %v2633 = vmul.f32 %v2632, 1.442695
    %v2634 = vpow.pop %v2633
    %v2635 = vadd.f32 %v2634, 1.0
    %v2636 = vrcp.pop %v2635
    %v2637 = vmul.f32 1.0, %v2636
    %v2639 = vrot.slane %v2631, 3
    %v2641 = vtanh.pop %v2639
    %v2643 = vrot.slane %v2637, 1
    %v2645 = vmul.f32 %v2643, %v2318
    %v2646 = vmul.f32 %v2637, %v2641
    %v2647 = vadd.f32 %v2645, %v2646
    %v2648 = vtanh.pop %v2647
    %v2649 = vrot.slane %v2637, 2
    %v2651 = vmul.f32 %v2649, %v2648
    %v2652 = vpack.c.bf16 %v2651, %v2651
    %v2653 = vpack.c.bf16 %v2516, %v2516
    %2654 = vmatprep.subr.bf16.mxu0 %v765
    %2655 = vmatpush1.bf16.msra.mxu0 %v764
    %2656 = vmatprep.subr.bf16.mxu0 %v769
    %2657 = vmatpush1.bf16.msra.mxu0 %v768
    %2658 = vmatprep.subr.bf16.mxu0 %v773
    %2659 = vmatpush1.bf16.msra.mxu0 %v772
    %2660 = vmatprep.subr.bf16.mxu0 %v777
    %2661 = vmatpush1.bf16.msra.mxu0 %v776
    %2662 = vmatprep.subr.bf16.mxu0 %v781
    %2663 = vmatpush1.bf16.msra.mxu0 %v780
    %2664 = vmatprep.subr.bf16.mxu0 %v785
    %2665 = vmatpush1.bf16.msra.mxu0 %v784
    %2666 = vmatprep.subr.bf16.mxu0 %v789
    %2667 = vmatpush1.bf16.msra.mxu0 %v788
    %2668 = vmatprep.subr.bf16.mxu0 %v793
    %2669 = vmatpush1.bf16.msra.mxu0 %v792
    %2670 = vmatprep.subr.bf16.mxu0 0
    %2671 = vmatpush1.bf16.msra.mxu0 0
    %2672 = vmatprep.subr.bf16.mxu0 0
    %2673 = vmatpush1.bf16.msra.mxu0 0
    %2674 = vmatprep.subr.bf16.mxu0 0
    %2675 = vmatpush1.bf16.msra.mxu0 0
    %2676 = vmatprep.subr.bf16.mxu0 0
    %2677 = vmatpush1.bf16.msra.mxu0 0
    %2678 = vmatprep.subr.bf16.mxu0 0
    %2679 = vmatpush1.bf16.msra.mxu0 0
    %2680 = vmatprep.subr.bf16.mxu0 0
    %2681 = vmatpush1.bf16.msra.mxu0 0
    %2682 = vmatprep.subr.bf16.mxu0 0
    %2683 = vmatpush1.bf16.msra.mxu0 0
    %2684 = vmatprep.subr.bf16.mxu0 0
    %2685 = vmatpush1.bf16.msra.mxu0 0
    %2686 = vmatprep.mubr.bf16.mxu0 0
    %2687 = vmatmul.mubr.bf16.gmra.mrb[0].mxu0 %v2653
    %v2688 = vpop.f32.mrb[0].mxu0
    %v2689 = vadd.f32 0.0, %v2688
    %v2690 = vpop.f32.mrb[0].mxu0
    %v2691 = vadd.f32 0.0, %v2690
    %v2692 = vpop.f32.mrb[0].mxu0
    %v2693 = vpop.f32.mrb[0].mxu0
    %2694 = vdwg.mxu0
    %2695 = vmatprep.subr.bf16.mxu0 %v767
    %2696 = vmatpush1.bf16.msra.mxu0 %v766
    %2697 = vmatprep.subr.bf16.mxu0 %v771
    %2698 = vmatpush1.bf16.msra.mxu0 %v770
    %2699 = vmatprep.subr.bf16.mxu0 %v775
    %2700 = vmatpush1.bf16.msra.mxu0 %v774
    %2701 = vmatprep.subr.bf16.mxu0 %v779
    %2702 = vmatpush1.bf16.msra.mxu0 %v778
    %2703 = vmatprep.subr.bf16.mxu0 %v783
    %2704 = vmatpush1.bf16.msra.mxu0 %v782
    %2705 = vmatprep.subr.bf16.mxu0 %v787
    %2706 = vmatpush1.bf16.msra.mxu0 %v786
    %2707 = vmatprep.subr.bf16.mxu0 %v791
    %2708 = vmatpush1.bf16.msra.mxu0 %v790
    %2709 = vmatprep.subr.bf16.mxu0 %v795
    %2710 = vmatpush1.bf16.msra.mxu0 %v794
    %2711 = vmatprep.subr.bf16.mxu0 0
    %2712 = vmatpush1.bf16.msra.mxu0 0
    %2713 = vmatprep.subr.bf16.mxu0 0
    %2714 = vmatpush1.bf16.msra.mxu0 0
    %2715 = vmatprep.subr.bf16.mxu0 0
    %2716 = vmatpush1.bf16.msra.mxu0 0
    %2717 = vmatprep.subr.bf16.mxu0 0
    %2718 = vmatpush1.bf16.msra.mxu0 0
    %2719 = vmatprep.subr.bf16.mxu0 0
    %2720 = vmatpush1.bf16.msra.mxu0 0
    %2721 = vmatprep.subr.bf16.mxu0 0
    %2722 = vmatpush1.bf16.msra.mxu0 0
    %2723 = vmatprep.subr.bf16.mxu0 0
    %2724 = vmatpush1.bf16.msra.mxu0 0
    %2725 = vmatprep.subr.bf16.mxu0 0
    %2726 = vmatpush1.bf16.msra.mxu0 0
    %2727 = vmatprep.mubr.bf16.mxu0 0
    %2728 = vmatmul.mubr.bf16.gmra.mrb[0].mxu0 %v2653
    %v2729 = vpop.f32.mrb[0].mxu0
    %v2730 = vadd.f32 0.0, %v2729
    %v2731 = vpop.f32.mrb[0].mxu0
    %v2732 = vadd.f32 0.0, %v2731
    %v2733 = vpop.f32.mrb[0].mxu0
    %v2734 = vpop.f32.mrb[0].mxu0
    %2735 = vdwg.mxu0
    %2736 = vmatprep.subr.bf16.mxu0 %v1007
    %2737 = vmatpush1.bf16.msra.mxu0 %v1006
    %2738 = vmatprep.subr.bf16.mxu0 %v1011
    %2739 = vmatpush1.bf16.msra.mxu0 %v1010
    %2740 = vmatprep.subr.bf16.mxu0 %v1015
    %2741 = vmatpush1.bf16.msra.mxu0 %v1014
    %2742 = vmatprep.subr.bf16.mxu0 %v1019
    %2743 = vmatpush1.bf16.msra.mxu0 %v1018
    %2744 = vmatprep.subr.bf16.mxu0 %v1023
    %2745 = vmatpush1.bf16.msra.mxu0 %v1022
    %2746 = vmatprep.subr.bf16.mxu0 %v1027
    %2747 = vmatpush1.bf16.msra.mxu0 %v1026
    %2748 = vmatprep.subr.bf16.mxu0 %v1031
    %2749 = vmatpush1.bf16.msra.mxu0 %v1030
    %2750 = vmatprep.subr.bf16.mxu0 %v1035
    %2751 = vmatpush1.bf16.msra.mxu0 %v1034
    %2752 = vmatprep.subr.bf16.mxu0 0
    %2753 = vmatpush1.bf16.msra.mxu0 0
    %2754 = vmatprep.subr.bf16.mxu0 0
    %2755 = vmatpush1.bf16.msra.mxu0 0
    %2756 = vmatprep.subr.bf16.mxu0 0
    %2757 = vmatpush1.bf16.msra.mxu0 0
    %2758 = vmatprep.subr.bf16.mxu0 0
    %2759 = vmatpush1.bf16.msra.mxu0 0
    %2760 = vmatprep.subr.bf16.mxu0 0
    %2761 = vmatpush1.bf16.msra.mxu0 0
    %2762 = vmatprep.subr.bf16.mxu0 0
    %2763 = vmatpush1.bf16.msra.mxu0 0
    %2764 = vmatprep.subr.bf16.mxu0 0
    %2765 = vmatpush1.bf16.msra.mxu0 0
    %2766 = vmatprep.subr.bf16.mxu0 0
    %2767 = vmatpush1.bf16.msra.mxu0 0
    %2768 = vmatprep.mubr.bf16.mxu0 0
    %2769 = vmatmul.mubr.bf16.gmra.mrb[0].mxu0 %v2652
    %v2770 = vpop.f32.mrb[0].mxu0
    %v2771 = vadd.f32 %v2689, %v2770
    %v2772 = vpop.f32.mrb[0].mxu0
    %v2773 = vadd.f32 %v2691, %v2772
    %v2774 = vpop.f32.mrb[0].mxu0
    %v2775 = vpop.f32.mrb[0].mxu0
    %2776 = vdwg.mxu0
    %2777 = vmatprep.subr.bf16.mxu0 %v1009
    %2778 = vmatpush1.bf16.msra.mxu0 %v1008
    %2779 = vmatprep.subr.bf16.mxu0 %v1013
    %2780 = vmatpush1.bf16.msra.mxu0 %v1012
    %2781 = vmatprep.subr.bf16.mxu0 %v1017
    %2782 = vmatpush1.bf16.msra.mxu0 %v1016
    %2783 = vmatprep.subr.bf16.mxu0 %v1021
    %2784 = vmatpush1.bf16.msra.mxu0 %v1020
    %2785 = vmatprep.subr.bf16.mxu0 %v1025
    %2786 = vmatpush1.bf16.msra.mxu0 %v1024
    %2787 = vmatprep.subr.bf16.mxu0 %v1029
    %2788 = vmatpush1.bf16.msra.mxu0 %v1028
    %2789 = vmatprep.subr.bf16.mxu0 %v1033
    %2790 = vmatpush1.bf16.msra.mxu0 %v1032
    %2791 = vmatprep.subr.bf16.mxu0 %v1037
    %2792 = vmatpush1.bf16.msra.mxu0 %v1036
    %2793 = vmatprep.subr.bf16.mxu0 0
    %2794 = vmatpush1.bf16.msra.mxu0 0
    %2795 = vmatprep.subr.bf16.mxu0 0
    %2796 = vmatpush1.bf16.msra.mxu0 0
    %2797 = vmatprep.subr.bf16.mxu0 0
    %2798 = vmatpush1.bf16.msra.mxu0 0
    %2799 = vmatprep.subr.bf16.mxu0 0
    %2800 = vmatpush1.bf16.msra.mxu0 0
    %2801 = vmatprep.subr.bf16.mxu0 0
    %2802 = vmatpush1.bf16.msra.mxu0 0
    %2803 = vmatprep.subr.bf16.mxu0 0
    %2804 = vmatpush1.bf16.msra.mxu0 0
    %2805 = vmatprep.subr.bf16.mxu0 0
    %2806 = vmatpush1.bf16.msra.mxu0 0
    %2807 = vmatprep.subr.bf16.mxu0 0
    %2808 = vmatpush1.bf16.msra.mxu0 0
    %2809 = vmatprep.mubr.bf16.mxu0 0
    %2810 = vmatmul.mubr.bf16.gmra.mrb[0].mxu0 %v2652
    %v2811 = vpop.f32.mrb[0].mxu0
    %v2812 = vadd.f32 %v2730, %v2811
    %v2813 = vpop.f32.mrb[0].mxu0
    %v2814 = vadd.f32 %v2732, %v2813
    %v2815 = vpop.f32.mrb[0].mxu0
    %v2816 = vpop.f32.mrb[0].mxu0
    %2817 = vdwg.mxu0
    %v2818 = vadd.f32 %v2771, %v1156
    %v2819 = vadd.f32 %v2773, %v1160
    %v2820 = vadd.f32 %v2812, %v1164
    %v2821 = vadd.f32 %v2814, %v1168
    %v2822 = vxor.u32 %v2818, 2147483648
    %v2823 = vxor.u32 %v2819, 2147483648
    %v2824 = vxor.u32 %v2820, 2147483648
    %v2825 = vmul.f32 %v2822, 1.442695
    %v2826 = vpow.pop %v2825
    %v2827 = vmul.f32 %v2823, 1.442695
    %v2828 = vpow.pop %v2827
    %v2829 = vmul.f32 %v2824, 1.442695
    %v2830 = vpow.pop %v2829
    %v2831 = vadd.f32 %v2826, 1.0
    %v2832 = vadd.f32 %v2828, 1.0
    %v2833 = vadd.f32 %v2830, 1.0
    %v2834 = vrcp.pop %v2831
    %v2835 = vmul.f32 1.0, %v2834
    %v2836 = vrcp.pop %v2832
    %v2837 = vmul.f32 1.0, %v2836
    %v2838 = vrcp.pop %v2833
    %v2839 = vmul.f32 1.0, %v2838
    %v2840 = vtanh.pop %v2821
    %v2841 = vmul.f32 %v2837, %v2514
    %v2842 = vmul.f32 %v2835, %v2840
    %v2843 = vadd.f32 %v2841, %v2842
    %v2844 = vtanh.pop %v2843
    %v2845 = vmul.f32 %v2839, %v2844
    %2846 = vst [vmem:[#allocation3 + $0x5] sm:$0x1] %v2845
    %s2847 = scalar_lea.vmem [#allocation2], 6
    %v2848 = vld [vmem:[%s2847] ss:$8 sm:$0xf]
    %2849 = vmatprep.subr.bf16.mxu0 %v471
    %2850 = vmatpush1.bf16.msra.mxu0 %v470
    %2851 = vmatprep.subr.bf16.mxu0 %v475
    %2852 = vmatpush1.bf16.msra.mxu0 %v474
    %2853 = vmatprep.subr.bf16.mxu0 %v479
    %2854 = vmatpush1.bf16.msra.mxu0 %v478
    %2855 = vmatprep.subr.bf16.mxu0 %v483
    %2856 = vmatpush1.bf16.msra.mxu0 %v482
    %2857 = vmatprep.subr.bf16.mxu0 %v487
    %2858 = vmatpush1.bf16.msra.mxu0 %v486
    %2859 = vmatprep.subr.bf16.mxu0 %v491
    %2860 = vmatpush1.bf16.msra.mxu0 %v490
    %2861 = vmatprep.subr.bf16.mxu0 %v495
    %2862 = vmatpush1.bf16.msra.mxu0 %v494
    %2863 = vmatprep.subr.bf16.mxu0 %v499
    %2864 = vmatpush1.bf16.msra.mxu0 %v498
    %2865 = vmatprep.subr.bf16.mxu0 0
    %2866 = vmatpush1.bf16.msra.mxu0 0
    %2867 = vmatprep.subr.bf16.mxu0 0
    %2868 = vmatpush1.bf16.msra.mxu0 0
    %2869 = vmatprep.subr.bf16.mxu0 0
    %2870 = vmatpush1.bf16.msra.mxu0 0
    %2871 = vmatprep.subr.bf16.mxu0 0
    %2872 = vmatpush1.bf16.msra.mxu0 0
    %2873 = vmatprep.subr.bf16.mxu0 0
    %2874 = vmatpush1.bf16.msra.mxu0 0
    %2875 = vmatprep.subr.bf16.mxu0 0
    %2876 = vmatpush1.bf16.msra.mxu0 0
    %2877 = vmatprep.subr.bf16.mxu0 0
    %2878 = vmatpush1.bf16.msra.mxu0 0
    %2879 = vmatprep.subr.bf16.mxu0 0
    %2880 = vmatpush1.bf16.msra.mxu0 0
    %2881 = vmatprep.mubr.bf16.mxu0 0
    %2882 = vmatmul.mubr.bf16.gmra.mrb[0].mxu0 %v2652
    %v2883 = vpop.f32.mrb[0].mxu0
    %v2884 = vadd.f32 0.0, %v2883
    %v2885 = vpop.f32.mrb[0].mxu0
    %v2886 = vadd.f32 0.0, %v2885
    %v2887 = vpop.f32.mrb[0].mxu0
    %v2888 = vpop.f32.mrb[0].mxu0
    %2889 = vdwg.mxu0
    %2890 = vmatprep.subr.bf16.mxu0 %v473
    %2891 = vmatpush1.bf16.msra.mxu0 %v472
    %2892 = vmatprep.subr.bf16.mxu0 %v477
    %2893 = vmatpush1.bf16.msra.mxu0 %v476
    %2894 = vmatprep.subr.bf16.mxu0 %v481
    %2895 = vmatpush1.bf16.msra.mxu0 %v480
    %2896 = vmatprep.subr.bf16.mxu0 %v485
    %2897 = vmatpush1.bf16.msra.mxu0 %v484
    %2898 = vmatprep.subr.bf16.mxu0 %v489
    %2899 = vmatpush1.bf16.msra.mxu0 %v488
    %2900 = vmatprep.subr.bf16.mxu0 %v493
    %2901 = vmatpush1.bf16.msra.mxu0 %v492
    %2902 = vmatprep.subr.bf16.mxu0 %v497
    %2903 = vmatpush1.bf16.msra.mxu0 %v496
    %2904 = vmatprep.subr.bf16.mxu0 %v501
    %2905 = vmatpush1.bf16.msra.mxu0 %v500
    %2906 = vmatprep.subr.bf16.mxu0 0
    %2907 = vmatpush1.bf16.msra.mxu0 0
    %2908 = vmatprep.subr.bf16.mxu0 0
    %2909 = vmatpush1.bf16.msra.mxu0 0
    %2910 = vmatprep.subr.bf16.mxu0 0
    %2911 = vmatpush1.bf16.msra.mxu0 0
    %2912 = vmatprep.subr.bf16.mxu0 0
    %2913 = vmatpush1.bf16.msra.mxu0 0
    %2914 = vmatprep.subr.bf16.mxu0 0
    %2915 = vmatpush1.bf16.msra.mxu0 0
    %2916 = vmatprep.subr.bf16.mxu0 0
    %2917 = vmatpush1.bf16.msra.mxu0 0
    %2918 = vmatprep.subr.bf16.mxu0 0
    %2919 = vmatpush1.bf16.msra.mxu0 0
    %2920 = vmatprep.subr.bf16.mxu0 0
    %2921 = vmatpush1.bf16.msra.mxu0 0
    %2922 = vmatprep.mubr.bf16.mxu0 0
    %2923 = vmatmul.mubr.bf16.gmra.mrb[0].mxu0 %v2652
    %v2924 = vpop.f32.mrb[0].mxu0
    %v2925 = vadd.f32 0.0, %v2924
    %v2926 = vpop.f32.mrb[0].mxu0
    %v2927 = vadd.f32 0.0, %v2926
    %v2928 = vpop.f32.mrb[0].mxu0
    %v2929 = vpop.f32.mrb[0].mxu0
    %2930 = vdwg.mxu0
    %v2935 = vcombine.low %v2884, %v2886
    %v2936 = vcombine.low %v2925, %v2927
    %v2938 = vunpack.c.l.s4 1966171168
    %v2939 = vunpack.c.0.s8 %v2938
    %v2940 = vlaneseq
    %v2941 = vshrl.u32 %v2940, 7
    %v2942 = vsub.s32 %v2939, %v2941
    %v2943 = vrot.slane %v2935, %v2942
    %v2945 = vunpack.c.l.s4 1966171168
    %v2946 = vunpack.c.0.s8 %v2945
    %v2947 = vlaneseq
    %v2948 = vshrl.u32 %v2947, 7
    %v2949 = vsub.s32 %v2946, %v2948
    %v2950 = vrot.slane %v2936, %v2949
    %v2951 = vcombine.low %v2943, %v2950
    %v2953 = vunpack.c.l.s4 1966171168
    %v2954 = vunpack.c.0.s8 %v2953
    %v2955 = vlaneseq
    %v2956 = vshrl.u32 %v2955, 7
    %v2957 = vsub.s32 %v2954, %v2956
    %v2958 = vrot.slane %v2951, %v2957
    %v2960 = vadd.f32 %v2848, %v2958
    %v2961 = vxor.u32 %v2960, 2147483648
    %v2962 = vmul.f32 %v2961, 1.442695
    %v2963 = vpow.pop %v2962
    %v2964 = vadd.f32 %v2963, 1.0
    %v2965 = vrcp.pop %v2964
    %v2966 = vmul.f32 1.0, %v2965
    %v2968 = vrot.slane %v2960, 3
    %v2970 = vtanh.pop %v2968
    %v2972 = vrot.slane %v2966, 1
    %v2974 = vmul.f32 %v2972, %v2647
    %v2975 = vmul.f32 %v2966, %v2970
    %v2976 = vadd.f32 %v2974, %v2975
    %v2977 = vtanh.pop %v2976
    %v2978 = vrot.slane %v2966, 2
    %v2980 = vmul.f32 %v2978, %v2977
    %v2981 = vpack.c.bf16 %v2980, %v2980
    %v2982 = vpack.c.bf16 %v2845, %v2845
    %2983 = vmatprep.subr.bf16.mxu0 %v765
    %2984 = vmatpush1.bf16.msra.mxu0 %v764
    %2985 = vmatprep.subr.bf16.mxu0 %v769
    %2986 = vmatpush1.bf16.msra.mxu0 %v768
    %2987 = vmatprep.subr.bf16.mxu0 %v773
    %2988 = vmatpush1.bf16.msra.mxu0 %v772
    %2989 = vmatprep.subr.bf16.mxu0 %v777
    %2990 = vmatpush1.bf16.msra.mxu0 %v776
    %2991 = vmatprep.subr.bf16.mxu0 %v781
    %2992 = vmatpush1.bf16.msra.mxu0 %v780
    %2993 = vmatprep.subr.bf16.mxu0 %v785
    %2994 = vmatpush1.bf16.msra.mxu0 %v784
    %2995 = vmatprep.subr.bf16.mxu0 %v789
    %2996 = vmatpush1.bf16.msra.mxu0 %v788
    %2997 = vmatprep.subr.bf16.mxu0 %v793
    %2998 = vmatpush1.bf16.msra.mxu0 %v792
    %2999 = vmatprep.subr.bf16.mxu0 0
    %3000 = vmatpush1.bf16.msra.mxu0 0
    %3001 = vmatprep.subr.bf16.mxu0 0
    %3002 = vmatpush1.bf16.msra.mxu0 0
    %3003 = vmatprep.subr.bf16.mxu0 0
    %3004 = vmatpush1.bf16.msra.mxu0 0
    %3005 = vmatprep.subr.bf16.mxu0 0
    %3006 = vmatpush1.bf16.msra.mxu0 0
    %3007 = vmatprep.subr.bf16.mxu0 0
    %3008 = vmatpush1.bf16.msra.mxu0 0
    %3009 = vmatprep.subr.bf16.mxu0 0
    %3010 = vmatpush1.bf16.msra.mxu0 0
    %3011 = vmatprep.subr.bf16.mxu0 0
    %3012 = vmatpush1.bf16.msra.mxu0 0
    %3013 = vmatprep.subr.bf16.mxu0 0
    %3014 = vmatpush1.bf16.msra.mxu0 0
    %3015 = vmatprep.mubr.bf16.mxu0 0
    %3016 = vmatmul.mubr.bf16.gmra.mrb[0].mxu0 %v2982
    %v3017 = vpop.f32.mrb[0].mxu0
    %v3018 = vadd.f32 0.0, %v3017
    %v3019 = vpop.f32.mrb[0].mxu0
    %v3020 = vadd.f32 0.0, %v3019
    %v3021 = vpop.f32.mrb[0].mxu0
    %v3022 = vpop.f32.mrb[0].mxu0
    %3023 = vdwg.mxu0
    %3024 = vmatprep.subr.bf16.mxu0 %v767
    %3025 = vmatpush1.bf16.msra.mxu0 %v766
    %3026 = vmatprep.subr.bf16.mxu0 %v771
    %3027 = vmatpush1.bf16.msra.mxu0 %v770
    %3028 = vmatprep.subr.bf16.mxu0 %v775
    %3029 = vmatpush1.bf16.msra.mxu0 %v774
    %3030 = vmatprep.subr.bf16.mxu0 %v779
    %3031 = vmatpush1.bf16.msra.mxu0 %v778
    %3032 = vmatprep.subr.bf16.mxu0 %v783
    %3033 = vmatpush1.bf16.msra.mxu0 %v782
    %3034 = vmatprep.subr.bf16.mxu0 %v787
    %3035 = vmatpush1.bf16.msra.mxu0 %v786
    %3036 = vmatprep.subr.bf16.mxu0 %v791
    %3037 = vmatpush1.bf16.msra.mxu0 %v790
    %3038 = vmatprep.subr.bf16.mxu0 %v795
    %3039 = vmatpush1.bf16.msra.mxu0 %v794
    %3040 = vmatprep.subr.bf16.mxu0 0
    %3041 = vmatpush1.bf16.msra.mxu0 0
    %3042 = vmatprep.subr.bf16.mxu0 0
    %3043 = vmatpush1.bf16.msra.mxu0 0
    %3044 = vmatprep.subr.bf16.mxu0 0
    %3045 = vmatpush1.bf16.msra.mxu0 0
    %3046 = vmatprep.subr.bf16.mxu0 0
    %3047 = vmatpush1.bf16.msra.mxu0 0
    %3048 = vmatprep.subr.bf16.mxu0 0
    %3049 = vmatpush1.bf16.msra.mxu0 0
    %3050 = vmatprep.subr.bf16.mxu0 0
    %3051 = vmatpush1.bf16.msra.mxu0 0
    %3052 = vmatprep.subr.bf16.mxu0 0
    %3053 = vmatpush1.bf16.msra.mxu0 0
    %3054 = vmatprep.subr.bf16.mxu0 0
    %3055 = vmatpush1.bf16.msra.mxu0 0
    %3056 = vmatprep.mubr.bf16.mxu0 0
    %3057 = vmatmul.mubr.bf16.gmra.mrb[0].mxu0 %v2982
    %v3058 = vpop.f32.mrb[0].mxu0
    %v3059 = vadd.f32 0.0, %v3058
    %v3060 = vpop.f32.mrb[0].mxu0
    %v3061 = vadd.f32 0.0, %v3060
    %v3062 = vpop.f32.mrb[0].mxu0
    %v3063 = vpop.f32.mrb[0].mxu0
    %3064 = vdwg.mxu0
    %3065 = vmatprep.subr.bf16.mxu0 %v1007
    %3066 = vmatpush1.bf16.msra.mxu0 %v1006
    %3067 = vmatprep.subr.bf16.mxu0 %v1011
    %3068 = vmatpush1.bf16.msra.mxu0 %v1010
    %3069 = vmatprep.subr.bf16.mxu0 %v1015
    %3070 = vmatpush1.bf16.msra.mxu0 %v1014
    %3071 = vmatprep.subr.bf16.mxu0 %v1019
    %3072 = vmatpush1.bf16.msra.mxu0 %v1018
    %3073 = vmatprep.subr.bf16.mxu0 %v1023
    %3074 = vmatpush1.bf16.msra.mxu0 %v1022
    %3075 = vmatprep.subr.bf16.mxu0 %v1027
    %3076 = vmatpush1.bf16.msra.mxu0 %v1026
    %3077 = vmatprep.subr.bf16.mxu0 %v1031
    %3078 = vmatpush1.bf16.msra.mxu0 %v1030
    %3079 = vmatprep.subr.bf16.mxu0 %v1035
    %3080 = vmatpush1.bf16.msra.mxu0 %v1034
    %3081 = vmatprep.subr.bf16.mxu0 0
    %3082 = vmatpush1.bf16.msra.mxu0 0
    %3083 = vmatprep.subr.bf16.mxu0 0
    %3084 = vmatpush1.bf16.msra.mxu0 0
    %3085 = vmatprep.subr.bf16.mxu0 0
    %3086 = vmatpush1.bf16.msra.mxu0 0
    %3087 = vmatprep.subr.bf16.mxu0 0
    %3088 = vmatpush1.bf16.msra.mxu0 0
    %3089 = vmatprep.subr.bf16.mxu0 0
    %3090 = vmatpush1.bf16.msra.mxu0 0
    %3091 = vmatprep.subr.bf16.mxu0 0
    %3092 = vmatpush1.bf16.msra.mxu0 0
    %3093 = vmatprep.subr.bf16.mxu0 0
    %3094 = vmatpush1.bf16.msra.mxu0 0
    %3095 = vmatprep.subr.bf16.mxu0 0
    %3096 = vmatpush1.bf16.msra.mxu0 0
    %3097 = vmatprep.mubr.bf16.mxu0 0
    %3098 = vmatmul.mubr.bf16.gmra.mrb[0].mxu0 %v2981
    %v3099 = vpop.f32.mrb[0].mxu0
    %v3100 = vadd.f32 %v3018, %v3099
    %v3101 = vpop.f32.mrb[0].mxu0
    %v3102 = vadd.f32 %v3020, %v3101
    %v3103 = vpop.f32.mrb[0].mxu0
    %v3104 = vpop.f32.mrb[0].mxu0
    %3105 = vdwg.mxu0
    %3106 = vmatprep.subr.bf16.mxu0 %v1009
    %3107 = vmatpush1.bf16.msra.mxu0 %v1008
    %3108 = vmatprep.subr.bf16.mxu0 %v1013
    %3109 = vmatpush1.bf16.msra.mxu0 %v1012
    %3110 = vmatprep.subr.bf16.mxu0 %v1017
    %3111 = vmatpush1.bf16.msra.mxu0 %v1016
    %3112 = vmatprep.subr.bf16.mxu0 %v1021
    %3113 = vmatpush1.bf16.msra.mxu0 %v1020
    %3114 = vmatprep.subr.bf16.mxu0 %v1025
    %3115 = vmatpush1.bf16.msra.mxu0 %v1024
    %3116 = vmatprep.subr.bf16.mxu0 %v1029
    %3117 = vmatpush1.bf16.msra.mxu0 %v1028
    %3118 = vmatprep.subr.bf16.mxu0 %v1033
    %3119 = vmatpush1.bf16.msra.mxu0 %v1032
    %3120 = vmatprep.subr.bf16.mxu0 %v1037
    %3121 = vmatpush1.bf16.msra.mxu0 %v1036
    %3122 = vmatprep.subr.bf16.mxu0 0
    %3123 = vmatpush1.bf16.msra.mxu0 0
    %3124 = vmatprep.subr.bf16.mxu0 0
    %3125 = vmatpush1.bf16.msra.mxu0 0
    %3126 = vmatprep.subr.bf16.mxu0 0
    %3127 = vmatpush1.bf16.msra.mxu0 0
    %3128 = vmatprep.subr.bf16.mxu0 0
    %3129 = vmatpush1.bf16.msra.mxu0 0
    %3130 = vmatprep.subr.bf16.mxu0 0
    %3131 = vmatpush1.bf16.msra.mxu0 0
    %3132 = vmatprep.subr.bf16.mxu0 0
    %3133 = vmatpush1.bf16.msra.mxu0 0
    %3134 = vmatprep.subr.bf16.mxu0 0
    %3135 = vmatpush1.bf16.msra.mxu0 0
    %3136 = vmatprep.subr.bf16.mxu0 0
    %3137 = vmatpush1.bf16.msra.mxu0 0
    %3138 = vmatprep.mubr.bf16.mxu0 0
    %3139 = vmatmul.mubr.bf16.gmra.mrb[0].mxu0 %v2981
    %v3140 = vpop.f32.mrb[0].mxu0
    %v3141 = vadd.f32 %v3059, %v3140
    %v3142 = vpop.f32.mrb[0].mxu0
    %v3143 = vadd.f32 %v3061, %v3142
    %v3144 = vpop.f32.mrb[0].mxu0
    %v3145 = vpop.f32.mrb[0].mxu0
    %3146 = vdwg.mxu0
    %v3147 = vadd.f32 %v3100, %v1156
    %v3148 = vadd.f32 %v3102, %v1160
    %v3149 = vadd.f32 %v3141, %v1164
    %v3150 = vadd.f32 %v3143, %v1168
    %v3151 = vxor.u32 %v3147, 2147483648
    %v3152 = vxor.u32 %v3148, 2147483648
    %v3153 = vxor.u32 %v3149, 2147483648
    %v3154 = vmul.f32 %v3151, 1.442695
    %v3155 = vpow.pop %v3154
    %v3156 = vmul.f32 %v3152, 1.442695
    %v3157 = vpow.pop %v3156
    %v3158 = vmul.f32 %v3153, 1.442695
    %v3159 = vpow.pop %v3158
    %v3160 = vadd.f32 %v3155, 1.0
    %v3161 = vadd.f32 %v3157, 1.0
    %v3162 = vadd.f32 %v3159, 1.0
    %v3163 = vrcp.pop %v3160
    %v3164 = vmul.f32 1.0, %v3163
    %v3165 = vrcp.pop %v3161
    %v3166 = vmul.f32 1.0, %v3165
    %v3167 = vrcp.pop %v3162
    %v3168 = vmul.f32 1.0, %v3167
    %v3169 = vtanh.pop %v3150
    %v3170 = vmul.f32 %v3166, %v2843
    %v3171 = vmul.f32 %v3164, %v3169
    %v3172 = vadd.f32 %v3170, %v3171
    %v3173 = vtanh.pop %v3172
    %v3174 = vmul.f32 %v3168, %v3173
    %3175 = vst [vmem:[#allocation3 + $0x6] sm:$0x1] %v3174
    %s3176 = scalar_lea.vmem [#allocation2], 7
    %v3177 = vld [vmem:[%s3176] ss:$8 sm:$0xf]
    %3178 = vmatprep.subr.bf16.mxu0 %v471
    %3179 = vmatpush1.bf16.msra.mxu0 %v470
    %3180 = vmatprep.subr.bf16.mxu0 %v475
    %3181 = vmatpush1.bf16.msra.mxu0 %v474
    %3182 = vmatprep.subr.bf16.mxu0 %v479
    %3183 = vmatpush1.bf16.msra.mxu0 %v478
    %3184 = vmatprep.subr.bf16.mxu0 %v483
    %3185 = vmatpush1.bf16.msra.mxu0 %v482
    %3186 = vmatprep.subr.bf16.mxu0 %v487
    %3187 = vmatpush1.bf16.msra.mxu0 %v486
    %3188 = vmatprep.subr.bf16.mxu0 %v491
    %3189 = vmatpush1.bf16.msra.mxu0 %v490
    %3190 = vmatprep.subr.bf16.mxu0 %v495
    %3191 = vmatpush1.bf16.msra.mxu0 %v494
    %3192 = vmatprep.subr.bf16.mxu0 %v499
    %3193 = vmatpush1.bf16.msra.mxu0 %v498
    %3194 = vmatprep.subr.bf16.mxu0 0
    %3195 = vmatpush1.bf16.msra.mxu0 0
    %3196 = vmatprep.subr.bf16.mxu0 0
    %3197 = vmatpush1.bf16.msra.mxu0 0
    %3198 = vmatprep.subr.bf16.mxu0 0
    %3199 = vmatpush1.bf16.msra.mxu0 0
    %3200 = vmatprep.subr.bf16.mxu0 0
    %3201 = vmatpush1.bf16.msra.mxu0 0
    %3202 = vmatprep.subr.bf16.mxu0 0
    %3203 = vmatpush1.bf16.msra.mxu0 0
    %3204 = vmatprep.subr.bf16.mxu0 0
    %3205 = vmatpush1.bf16.msra.mxu0 0
    %3206 = vmatprep.subr.bf16.mxu0 0
    %3207 = vmatpush1.bf16.msra.mxu0 0
    %3208 = vmatprep.subr.bf16.mxu0 0
    %3209 = vmatpush1.bf16.msra.mxu0 0
    %3210 = vmatprep.mubr.bf16.mxu0 0
    %3211 = vmatmul.mubr.bf16.gmra.mrb[0].mxu0 %v2981
    %v3212 = vpop.f32.mrb[0].mxu0
    %v3213 = vadd.f32 0.0, %v3212
    %v3214 = vpop.f32.mrb[0].mxu0
    %v3215 = vadd.f32 0.0, %v3214
    %v3216 = vpop.f32.mrb[0].mxu0
    %v3217 = vpop.f32.mrb[0].mxu0
    %3218 = vdwg.mxu0
    %3219 = vmatprep.subr.bf16.mxu0 %v473
    %3220 = vmatpush1.bf16.msra.mxu0 %v472
    %3221 = vmatprep.subr.bf16.mxu0 %v477
    %3222 = vmatpush1.bf16.msra.mxu0 %v476
    %3223 = vmatprep.subr.bf16.mxu0 %v481
    %3224 = vmatpush1.bf16.msra.mxu0 %v480
    %3225 = vmatprep.subr.bf16.mxu0 %v485
    %3226 = vmatpush1.bf16.msra.mxu0 %v484
    %3227 = vmatprep.subr.bf16.mxu0 %v489
    %3228 = vmatpush1.bf16.msra.mxu0 %v488
    %3229 = vmatprep.subr.bf16.mxu0 %v493
    %3230 = vmatpush1.bf16.msra.mxu0 %v492
    %3231 = vmatprep.subr.bf16.mxu0 %v497
    %3232 = vmatpush1.bf16.msra.mxu0 %v496
    %3233 = vmatprep.subr.bf16.mxu0 %v501
    %3234 = vmatpush1.bf16.msra.mxu0 %v500
    %3235 = vmatprep.subr.bf16.mxu0 0
    %3236 = vmatpush1.bf16.msra.mxu0 0
    %3237 = vmatprep.subr.bf16.mxu0 0
    %3238 = vmatpush1.bf16.msra.mxu0 0
    %3239 = vmatprep.subr.bf16.mxu0 0
    %3240 = vmatpush1.bf16.msra.mxu0 0
    %3241 = vmatprep.subr.bf16.mxu0 0
    %3242 = vmatpush1.bf16.msra.mxu0 0
    %3243 = vmatprep.subr.bf16.mxu0 0
    %3244 = vmatpush1.bf16.msra.mxu0 0
    %3245 = vmatprep.subr.bf16.mxu0 0
    %3246 = vmatpush1.bf16.msra.mxu0 0
    %3247 = vmatprep.subr.bf16.mxu0 0
    %3248 = vmatpush1.bf16.msra.mxu0 0
    %3249 = vmatprep.subr.bf16.mxu0 0
    %3250 = vmatpush1.bf16.msra.mxu0 0
    %3251 = vmatprep.mubr.bf16.mxu0 0
    %3252 = vmatmul.mubr.bf16.gmra.mrb[0].mxu0 %v2981
    %v3253 = vpop.f32.mrb[0].mxu0
    %v3254 = vadd.f32 0.0, %v3253
    %v3255 = vpop.f32.mrb[0].mxu0
    %v3256 = vadd.f32 0.0, %v3255
    %v3257 = vpop.f32.mrb[0].mxu0
    %v3258 = vpop.f32.mrb[0].mxu0
    %3259 = vdwg.mxu0
    %v3264 = vcombine.low %v3213, %v3215
    %v3265 = vcombine.low %v3254, %v3256
    %v3267 = vunpack.c.l.s4 1966171168
    %v3268 = vunpack.c.0.s8 %v3267
    %v3269 = vlaneseq
    %v3270 = vshrl.u32 %v3269, 7
    %v3271 = vsub.s32 %v3268, %v3270
    %v3272 = vrot.slane %v3264, %v3271
    %v3274 = vunpack.c.l.s4 1966171168
    %v3275 = vunpack.c.0.s8 %v3274
    %v3276 = vlaneseq
    %v3277 = vshrl.u32 %v3276, 7
    %v3278 = vsub.s32 %v3275, %v3277
    %v3279 = vrot.slane %v3265, %v3278
    %v3280 = vcombine.low %v3272, %v3279
    %v3282 = vunpack.c.l.s4 1966171168
    %v3283 = vunpack.c.0.s8 %v3282
    %v3284 = vlaneseq
    %v3285 = vshrl.u32 %v3284, 7
    %v3286 = vsub.s32 %v3283, %v3285
    %v3287 = vrot.slane %v3280, %v3286
    %v3289 = vadd.f32 %v3177, %v3287
    %v3290 = vxor.u32 %v3289, 2147483648
    %v3291 = vmul.f32 %v3290, 1.442695
    %v3292 = vpow.pop %v3291
    %v3293 = vadd.f32 %v3292, 1.0
    %v3294 = vrcp.pop %v3293
    %v3295 = vmul.f32 1.0, %v3294
    %v3297 = vrot.slane %v3289, 3
    %v3299 = vtanh.pop %v3297
    %v3301 = vrot.slane %v3295, 1
    %v3303 = vmul.f32 %v3301, %v2976
    %v3304 = vmul.f32 %v3295, %v3299
    %v3305 = vadd.f32 %v3303, %v3304
    %v3306 = vtanh.pop %v3305
    %v3307 = vrot.slane %v3295, 2
    %v3309 = vmul.f32 %v3307, %v3306
    %v3310 = vpack.c.bf16 %v3309, %v3309
    %v3311 = vpack.c.bf16 %v3174, %v3174
    %3312 = vmatprep.subr.bf16.mxu0 %v765
    %3313 = vmatpush1.bf16.msra.mxu0 %v764
    %3314 = vmatprep.subr.bf16.mxu0 %v769
    %3315 = vmatpush1.bf16.msra.mxu0 %v768
    %3316 = vmatprep.subr.bf16.mxu0 %v773
    %3317 = vmatpush1.bf16.msra.mxu0 %v772
    %3318 = vmatprep.subr.bf16.mxu0 %v777
    %3319 = vmatpush1.bf16.msra.mxu0 %v776
    %3320 = vmatprep.subr.bf16.mxu0 %v781
    %3321 = vmatpush1.bf16.msra.mxu0 %v780
    %3322 = vmatprep.subr.bf16.mxu0 %v785
    %3323 = vmatpush1.bf16.msra.mxu0 %v784
    %3324 = vmatprep.subr.bf16.mxu0 %v789
    %3325 = vmatpush1.bf16.msra.mxu0 %v788
    %3326 = vmatprep.subr.bf16.mxu0 %v793
    %3327 = vmatpush1.bf16.msra.mxu0 %v792
    %3328 = vmatprep.subr.bf16.mxu0 0
    %3329 = vmatpush1.bf16.msra.mxu0 0
    %3330 = vmatprep.subr.bf16.mxu0 0
    %3331 = vmatpush1.bf16.msra.mxu0 0
    %3332 = vmatprep.subr.bf16.mxu0 0
    %3333 = vmatpush1.bf16.msra.mxu0 0
    %3334 = vmatprep.subr.bf16.mxu0 0
    %3335 = vmatpush1.bf16.msra.mxu0 0
    %3336 = vmatprep.subr.bf16.mxu0 0
    %3337 = vmatpush1.bf16.msra.mxu0 0
    %3338 = vmatprep.subr.bf16.mxu0 0
    %3339 = vmatpush1.bf16.msra.mxu0 0
    %3340 = vmatprep.subr.bf16.mxu0 0
    %3341 = vmatpush1.bf16.msra.mxu0 0
    %3342 = vmatprep.subr.bf16.mxu0 0
    %3343 = vmatpush1.bf16.msra.mxu0 0
    %3344 = vmatprep.mubr.bf16.mxu0 0
    %3345 = vmatmul.mubr.bf16.gmra.mrb[0].mxu0 %v3311
    %v3346 = vpop.f32.mrb[0].mxu0
    %v3347 = vadd.f32 0.0, %v3346
    %v3348 = vpop.f32.mrb[0].mxu0
    %v3349 = vadd.f32 0.0, %v3348
    %v3350 = vpop.f32.mrb[0].mxu0
    %v3351 = vpop.f32.mrb[0].mxu0
    %3352 = vdwg.mxu0
    %3353 = vmatprep.subr.bf16.mxu0 %v767
    %3354 = vmatpush1.bf16.msra.mxu0 %v766
    %3355 = vmatprep.subr.bf16.mxu0 %v771
    %3356 = vmatpush1.bf16.msra.mxu0 %v770
    %3357 = vmatprep.subr.bf16.mxu0 %v775
    %3358 = vmatpush1.bf16.msra.mxu0 %v774
    %3359 = vmatprep.subr.bf16.mxu0 %v779
    %3360 = vmatpush1.bf16.msra.mxu0 %v778
    %3361 = vmatprep.subr.bf16.mxu0 %v783
    %3362 = vmatpush1.bf16.msra.mxu0 %v782
    %3363 = vmatprep.subr.bf16.mxu0 %v787
    %3364 = vmatpush1.bf16.msra.mxu0 %v786
    %3365 = vmatprep.subr.bf16.mxu0 %v791
    %3366 = vmatpush1.bf16.msra.mxu0 %v790
    %3367 = vmatprep.subr.bf16.mxu0 %v795
    %3368 = vmatpush1.bf16.msra.mxu0 %v794
    %3369 = vmatprep.subr.bf16.mxu0 0
    %3370 = vmatpush1.bf16.msra.mxu0 0
    %3371 = vmatprep.subr.bf16.mxu0 0
    %3372 = vmatpush1.bf16.msra.mxu0 0
    %3373 = vmatprep.subr.bf16.mxu0 0
    %3374 = vmatpush1.bf16.msra.mxu0 0
    %3375 = vmatprep.subr.bf16.mxu0 0
    %3376 = vmatpush1.bf16.msra.mxu0 0
    %3377 = vmatprep.subr.bf16.mxu0 0
    %3378 = vmatpush1.bf16.msra.mxu0 0
    %3379 = vmatprep.subr.bf16.mxu0 0
    %3380 = vmatpush1.bf16.msra.mxu0 0
    %3381 = vmatprep.subr.bf16.mxu0 0
    %3382 = vmatpush1.bf16.msra.mxu0 0
    %3383 = vmatprep.subr.bf16.mxu0 0
    %3384 = vmatpush1.bf16.msra.mxu0 0
    %3385 = vmatprep.mubr.bf16.mxu0 0
    %3386 = vmatmul.mubr.bf16.gmra.mrb[0].mxu0 %v3311
    %v3387 = vpop.f32.mrb[0].mxu0
    %v3388 = vadd.f32 0.0, %v3387
    %v3389 = vpop.f32.mrb[0].mxu0
    %v3390 = vadd.f32 0.0, %v3389
    %v3391 = vpop.f32.mrb[0].mxu0
    %v3392 = vpop.f32.mrb[0].mxu0
    %3393 = vdwg.mxu0
    %3394 = vmatprep.subr.bf16.mxu0 %v1007
    %3395 = vmatpush1.bf16.msra.mxu0 %v1006
    %3396 = vmatprep.subr.bf16.mxu0 %v1011
    %3397 = vmatpush1.bf16.msra.mxu0 %v1010
    %3398 = vmatprep.subr.bf16.mxu0 %v1015
    %3399 = vmatpush1.bf16.msra.mxu0 %v1014
    %3400 = vmatprep.subr.bf16.mxu0 %v1019
    %3401 = vmatpush1.bf16.msra.mxu0 %v1018
    %3402 = vmatprep.subr.bf16.mxu0 %v1023
    %3403 = vmatpush1.bf16.msra.mxu0 %v1022
    %3404 = vmatprep.subr.bf16.mxu0 %v1027
    %3405 = vmatpush1.bf16.msra.mxu0 %v1026
    %3406 = vmatprep.subr.bf16.mxu0 %v1031
    %3407 = vmatpush1.bf16.msra.mxu0 %v1030
    %3408 = vmatprep.subr.bf16.mxu0 %v1035
    %3409 = vmatpush1.bf16.msra.mxu0 %v1034
    %3410 = vmatprep.subr.bf16.mxu0 0
    %3411 = vmatpush1.bf16.msra.mxu0 0
    %3412 = vmatprep.subr.bf16.mxu0 0
    %3413 = vmatpush1.bf16.msra.mxu0 0
    %3414 = vmatprep.subr.bf16.mxu0 0
    %3415 = vmatpush1.bf16.msra.mxu0 0
    %3416 = vmatprep.subr.bf16.mxu0 0
    %3417 = vmatpush1.bf16.msra.mxu0 0
    %3418 = vmatprep.subr.bf16.mxu0 0
    %3419 = vmatpush1.bf16.msra.mxu0 0
    %3420 = vmatprep.subr.bf16.mxu0 0
    %3421 = vmatpush1.bf16.msra.mxu0 0
    %3422 = vmatprep.subr.bf16.mxu0 0
    %3423 = vmatpush1.bf16.msra.mxu0 0
    %3424 = vmatprep.subr.bf16.mxu0 0
    %3425 = vmatpush1.bf16.msra.mxu0 0
    %3426 = vmatprep.mubr.bf16.mxu0 0
    %3427 = vmatmul.mubr.bf16.gmra.mrb[0].mxu0 %v3310
    %v3428 = vpop.f32.mrb[0].mxu0
    %v3429 = vadd.f32 %v3347, %v3428
    %v3430 = vpop.f32.mrb[0].mxu0
    %v3431 = vadd.f32 %v3349, %v3430
    %v3432 = vpop.f32.mrb[0].mxu0
    %v3433 = vpop.f32.mrb[0].mxu0
    %3434 = vdwg.mxu0
    %3435 = vmatprep.subr.bf16.mxu0 %v1009
    %3436 = vmatpush1.bf16.msra.mxu0 %v1008
    %3437 = vmatprep.subr.bf16.mxu0 %v1013
    %3438 = vmatpush1.bf16.msra.mxu0 %v1012
    %3439 = vmatprep.subr.bf16.mxu0 %v1017
    %3440 = vmatpush1.bf16.msra.mxu0 %v1016
    %3441 = vmatprep.subr.bf16.mxu0 %v1021
    %3442 = vmatpush1.bf16.msra.mxu0 %v1020
    %3443 = vmatprep.subr.bf16.mxu0 %v1025
    %3444 = vmatpush1.bf16.msra.mxu0 %v1024
    %3445 = vmatprep.subr.bf16.mxu0 %v1029
    %3446 = vmatpush1.bf16.msra.mxu0 %v1028
    %3447 = vmatprep.subr.bf16.mxu0 %v1033
    %3448 = vmatpush1.bf16.msra.mxu0 %v1032
    %3449 = vmatprep.subr.bf16.mxu0 %v1037
    %3450 = vmatpush1.bf16.msra.mxu0 %v1036
    %3451 = vmatprep.subr.bf16.mxu0 0
    %3452 = vmatpush1.bf16.msra.mxu0 0
    %3453 = vmatprep.subr.bf16.mxu0 0
    %3454 = vmatpush1.bf16.msra.mxu0 0
    %3455 = vmatprep.subr.bf16.mxu0 0
    %3456 = vmatpush1.bf16.msra.mxu0 0
    %3457 = vmatprep.subr.bf16.mxu0 0
    %3458 = vmatpush1.bf16.msra.mxu0 0
    %3459 = vmatprep.subr.bf16.mxu0 0
    %3460 = vmatpush1.bf16.msra.mxu0 0
    %3461 = vmatprep.subr.bf16.mxu0 0
    %3462 = vmatpush1.bf16.msra.mxu0 0
    %3463 = vmatprep.subr.bf16.mxu0 0
    %3464 = vmatpush1.bf16.msra.mxu0 0
    %3465 = vmatprep.subr.bf16.mxu0 0
    %3466 = vmatpush1.bf16.msra.mxu0 0
    %3467 = vmatprep.mubr.bf16.mxu0 0
    %3468 = vmatmul.mubr.bf16.gmra.mrb[0].mxu0 %v3310
    %v3469 = vpop.f32.mrb[0].mxu0
    %v3470 = vadd.f32 %v3388, %v3469
    %v3471 = vpop.f32.mrb[0].mxu0
    %v3472 = vadd.f32 %v3390, %v3471
    %v3473 = vpop.f32.mrb[0].mxu0
    %v3474 = vpop.f32.mrb[0].mxu0
    %3475 = vdwg.mxu0
    %v3476 = vadd.f32 %v3429, %v1156
    %v3477 = vadd.f32 %v3431, %v1160
    %v3478 = vadd.f32 %v3470, %v1164
    %v3479 = vadd.f32 %v3472, %v1168
    %v3480 = vxor.u32 %v3476, 2147483648
    %v3481 = vxor.u32 %v3477, 2147483648
    %v3482 = vxor.u32 %v3478, 2147483648
    %v3483 = vmul.f32 %v3480, 1.442695
    %v3484 = vpow.pop %v3483
    %v3485 = vmul.f32 %v3481, 1.442695
    %v3486 = vpow.pop %v3485
    %v3487 = vmul.f32 %v3482, 1.442695
    %v3488 = vpow.pop %v3487
    %v3489 = vadd.f32 %v3484, 1.0
    %v3490 = vadd.f32 %v3486, 1.0
    %v3491 = vadd.f32 %v3488, 1.0
    %v3492 = vrcp.pop %v3489
    %v3493 = vmul.f32 1.0, %v3492
    %v3494 = vrcp.pop %v3490
    %v3495 = vmul.f32 1.0, %v3494
    %v3496 = vrcp.pop %v3491
    %v3497 = vmul.f32 1.0, %v3496
    %v3498 = vtanh.pop %v3479
    %v3499 = vmul.f32 %v3495, %v3172
    %v3500 = vmul.f32 %v3493, %v3498
    %v3501 = vadd.f32 %v3499, %v3500
    %v3502 = vtanh.pop %v3501
    %v3503 = vmul.f32 %v3497, %v3502
    %3504 = vst [vmem:[#allocation3 + $0x7] sm:$0x1] %v3503
    %v3505 = vld [vmem:[#allocation3] sm:$0xff]
    %v3506 = vpack.c.bf16 %v3505, %v3505
    %v3507 = vld [vmem:[#allocation15] sm:$0xf]
    %v3508 = vld [vmem:[#allocation15 + $0x4] sm:$0xf]
    %v3509 = vld [vmem:[#allocation15 + $0x8] sm:$0xf]
    %v3510 = vld [vmem:[#allocation15 + $0xc] sm:$0xf]
    %v3511 = vld [vmem:[#allocation15 + $0x10] sm:$0xf]
    %v3512 = vld [vmem:[#allocation15 + $0x14] sm:$0xf]
    %v3513 = vld [vmem:[#allocation15 + $0x18] sm:$0xf]
    %v3514 = vld [vmem:[#allocation15 + $0x1c] sm:$0xf]
    %v3515 = vld [vmem:[#allocation15 + $0x20] sm:$0xf]
    %v3516 = vld [vmem:[#allocation15 + $0x24] sm:$0xf]
    %v3517 = vld [vmem:[#allocation15 + $0x28] sm:$0xf]
    %v3518 = vld [vmem:[#allocation15 + $0x2c] sm:$0xf]
    %v3519 = vld [vmem:[#allocation15 + $0x30] sm:$0xf]
    %v3520 = vld [vmem:[#allocation15 + $0x34] sm:$0xf]
    %v3521 = vld [vmem:[#allocation15 + $0x38] sm:$0xf]
    %v3522 = vld [vmem:[#allocation15 + $0x3c] sm:$0xf]
    %v3523 = vld [vmem:[%s10] sm:$0x1]
    %v3525 = vlaneseq
    %v3526 = vshrl.u32 %v3525, 7
    %v3527 = vsub.s32 0, %v3526
    %v3528 = vrot.slane %v3523, %v3527
    %v3546 = vunpack.c.l.b16 %v3507
    %v3547 = vunpack.c.l.b16 %v3508
    %v3548 = vunpack.c.l.b16 %v3509
    %v3549 = vunpack.c.l.b16 %v3510
    %v3550 = vunpack.c.l.b16 %v3511
    %v3551 = vunpack.c.l.b16 %v3512
    %v3552 = vunpack.c.l.b16 %v3513
    %v3553 = vunpack.c.l.b16 %v3514
    %v3554 = vunpack.c.l.b16 %v3515
    %v3555 = vunpack.c.l.b16 %v3516
    %v3556 = vunpack.c.l.b16 %v3517
    %v3557 = vunpack.c.l.b16 %v3518
    %v3558 = vunpack.c.l.b16 %v3519
    %v3559 = vunpack.c.l.b16 %v3520
    %v3560 = vunpack.c.l.b16 %v3521
    %v3561 = vunpack.c.l.b16 %v3522
    %v3562 = vpack.c.b16 %v3547, %v3546
    %v3563 = vpack.c.b16 %v3549, %v3548
    %v3564 = vpack.c.b16 %v3551, %v3550
    %v3565 = vpack.c.b16 %v3553, %v3552
    %v3566 = vpack.c.b16 %v3555, %v3554
    %v3567 = vpack.c.b16 %v3557, %v3556
    %v3568 = vpack.c.b16 %v3559, %v3558
    %v3569 = vpack.c.b16 %v3561, %v3560
    %3578 = vmatprep.subr.bf16.mxu0 0
    %3579 = vmatpush1.bf16.msra.mxu0 %v3562
    %3580 = vmatprep.subr.bf16.mxu0 0
    %3581 = vmatpush1.bf16.msra.mxu0 %v3563
    %3582 = vmatprep.subr.bf16.mxu0 0
    %3583 = vmatpush1.bf16.msra.mxu0 %v3564
    %3584 = vmatprep.subr.bf16.mxu0 0
    %3585 = vmatpush1.bf16.msra.mxu0 %v3565
    %3586 = vmatprep.subr.bf16.mxu0 0
    %3587 = vmatpush1.bf16.msra.mxu0 %v3566
    %3588 = vmatprep.subr.bf16.mxu0 0
    %3589 = vmatpush1.bf16.msra.mxu0 %v3567
    %3590 = vmatprep.subr.bf16.mxu0 0
    %3591 = vmatpush1.bf16.msra.mxu0 %v3568
    %3592 = vmatprep.subr.bf16.mxu0 0
    %3593 = vmatpush1.bf16.msra.mxu0 %v3569
    %3594 = vmatprep.subr.bf16.mxu0 0
    %3595 = vmatpush1.bf16.msra.mxu0 0
    %3596 = vmatprep.subr.bf16.mxu0 0
    %3597 = vmatpush1.bf16.msra.mxu0 0
    %3598 = vmatprep.subr.bf16.mxu0 0
    %3599 = vmatpush1.bf16.msra.mxu0 0
    %3600 = vmatprep.subr.bf16.mxu0 0
    %3601 = vmatpush1.bf16.msra.mxu0 0
    %3602 = vmatprep.subr.bf16.mxu0 0
    %3603 = vmatpush1.bf16.msra.mxu0 0
    %3604 = vmatprep.subr.bf16.mxu0 0
    %3605 = vmatpush1.bf16.msra.mxu0 0
    %3606 = vmatprep.subr.bf16.mxu0 0
    %3607 = vmatpush1.bf16.msra.mxu0 0
    %3608 = vmatprep.subr.bf16.mxu0 0
    %3609 = vmatpush1.bf16.msra.mxu0 0
    %3610 = vmatprep.mubr.bf16.mxu0 0
    %3611 = vmatmul.mubr.bf16.gmra.mrb[0].mxu0 %v3506
    %v3612 = vpop.f32.mrb[0].mxu0
    %v3613 = vadd.f32 %v3528, %v3612
    %v3614 = vpop.f32.mrb[0].mxu0
    %v3615 = vpop.f32.mrb[0].mxu0
    %v3616 = vpop.f32.mrb[0].mxu0
    %3617 = vdwg.mxu0
    %3618 = vst [vmem:[#allocation16] sm:$0xff] %v3613
    %3619 = vst [vmem:[#allocation17] sm:$0x1] %v3309
    %3620 = vst [vmem:[#allocation17 + $0x1] sm:$0x1] %v3503
    %3621 = vst [vmem:[#allocation19] sm:$0x1] %v3305
    %3622 = vst [vmem:[#allocation19 + $0x1] sm:$0x1] %v3501
    // Predicated region
    $region74: #{tpu_custom_call.1} parent=1 // pred_check
      _
    $region75: #{tpu_custom_call.1} parent=1 // pred_check_branch
      %3624 = sbr.rel (0) target = $region77
    $region76: #{tpu_custom_call.1} parent=1 // pred_region
      %s3626 = ssub.s32 128, 128
      %3627 = vsyncadd [#allocation6], %s3626
      %s3629 = sshll.u32 [#allocation16], 4
      %s3630 = int_to_ptr.vmem [resolvable:$true] %s3629
      %3632 = dma.vmem_to_hbm [thread:$0]  %s3630, 128, %s11, [#allocation6]
    $region77: #{tpu_custom_call.1} parent=1 // pred_fallthru
      _
    // Predicated region
    $region78: #{tpu_custom_call.1} parent=1 // pred_check
      _
    $region79: #{tpu_custom_call.1} parent=1 // pred_check_branch
      %3634 = sbr.rel (0) target = $region81
    $region80: #{tpu_custom_call.1} parent=1 // pred_region
      %s3636 = ssub.s32 32, 32
      %3637 = vsyncadd [#allocation18], %s3636
      %s3639 = sshll.u32 [#allocation17], 4
      %s3640 = int_to_ptr.vmem [resolvable:$true] %s3639
      %3642 = dma.vmem_to_hbm [thread:$0]  %s3640, 32, %s12, [#allocation18]
    $region81: #{tpu_custom_call.1} parent=1 // pred_fallthru
      _
    // Predicated region
    $region82: #{tpu_custom_call.1} parent=1 // pred_check
      _
    $region83: #{tpu_custom_call.1} parent=1 // pred_check_branch
      %3644 = sbr.rel (0) target = $region85
    $region84: #{tpu_custom_call.1} parent=1 // pred_region
      %s3646 = ssub.s32 32, 32
      %3647 = vsyncadd [#allocation18], %s3646
      %s3649 = sshll.u32 [#allocation19], 4
      %s3650 = int_to_ptr.vmem [resolvable:$true] %s3649
      %3652 = dma.vmem_to_hbm [thread:$0]  %s3650, 32, %s13, [#allocation18]
    $region85: #{tpu_custom_call.1} parent=1 // pred_fallthru
      _
    // Predicated region
    $region86: #{tpu_custom_call.1} parent=1 // pred_check
      _
    $region87: #{tpu_custom_call.1} parent=1 // pred_check_branch
      %3654 = sbr.rel (0) target = $region89
    $region88: #{tpu_custom_call.1} parent=1 // pred_region
      %3655 = dma.done [#allocation6], 128
    $region89: #{tpu_custom_call.1} parent=1 // pred_fallthru
      _
    // Predicated region
    $region90: #{tpu_custom_call.1} parent=1 // pred_check
      _
    $region91: #{tpu_custom_call.1} parent=1 // pred_check_branch
      %3657 = sbr.rel (0) target = $region93
    $region92: #{tpu_custom_call.1} parent=1 // pred_region
      %3658 = dma.done [#allocation18], 32
    $region93: #{tpu_custom_call.1} parent=1 // pred_fallthru
      _
    // Predicated region
    $region94: #{tpu_custom_call.1} parent=1 // pred_check
      _
    $region95: #{tpu_custom_call.1} parent=1 // pred_check_branch
      %3660 = sbr.rel (0) target = $region97
    $region96: #{tpu_custom_call.1} parent=1 // pred_region
      %3661 = dma.done [#allocation18], 32
    $region97: #{tpu_custom_call.1} parent=1 // pred_fallthru
      _
    %3662 = vsyncpa [#allocation5], 1
    %3663 = vsyncpa [#allocation8], 1
    %3664 = vsyncpa [#allocation11], 1
    %3665 = vsyncpa [#allocation14], 1
    %3666 = vsyncpa [#allocation6], 1
    %3667 = vsyncpa [#allocation18], 1

</llo_original>
